<compile_context>
chip_gen: v7x
topology: tpu7x:2x2x1
jax: 0.10.0
libtpu: 0.0.40
codegen_flags: <defaults>
</compile_context>

<pallas_src>
import functools

import jax
import jax.numpy as jnp
import numpy as np
from jax import lax
from jax.experimental import pallas as pl
from jax.experimental.pallas import tpu as pltpu


# ----------------------------------------------------------------------------
# Fused kernel: 1x1 conv + BN + ReLU  ->  3x3 conv (pad=1) + BN
#   x_ref : (1, Hp, Wp, Cin)     spatially padded input image (VMEM resident per batch step)
#   w1    : (Cin, Cmid)          BN-folded 1x1 weights
#   b1    : (1, Cmid)            BN shift for stage 1
#   w2    : (3, 3, Cmid, Cout)   BN-folded 3x3 weights (HWIO)
#   b2    : (1, Cout)            BN shift for stage 2
#   o_ref : (1, TH, Wo, Cout)    output row tile
#   h_scr : VMEM scratch for the intermediate:
#             im2col path : (ROWS_IN, Wo, 3*Cmid)
#             tap path    : (ROWS_IN, Wp, Cmid)
# ----------------------------------------------------------------------------
def _one_three_kernel(x_ref, w1_ref, b1_ref, w2_ref, b2_ref, o_ref, h_scr, *,
                      th, wo, stride, h_img, w_img, im2col):
    rows_in = (th - 1) * stride + 3
    wp = x_ref.shape[2]
    cin = x_ref.shape[3]
    cmid = w1_ref.shape[1]
    cout = o_ref.shape[3]

    r = pl.program_id(1)
    # th is always a multiple of 8, so the row offset is sublane-aligned.
    row0 = pl.multiple_of(r * (th * stride), 8)

    # ---- Stage 1: 1x1 conv + folded BN + ReLU on the needed row window ----
    # wp % 8 == 0, so these reshapes are pure relabels (no sublane relayout).
    xwin = x_ref[0, pl.ds(row0, rows_in), :, :]                 # (rows_in, Wp, Cin)
    h = jnp.dot(xwin.reshape(rows_in * wp, cin), w1_ref[...],
                preferred_element_type=jnp.float32)
    h = jnp.maximum(h + b1_ref[...], 0.0).reshape(rows_in, wp, cmid)

    # Zero the spatial zero-padding ring (and the alignment pad rows/cols): padded x pixels
    # would otherwise leak ReLU(b1) into the 3x3 conv.  Cheap (few VPU ops/elem) vs. matmul.
    rows = lax.broadcasted_iota(jnp.int32, (rows_in, wp, 1), 0) + row0
    cols = lax.broadcasted_iota(jnp.int32, (rows_in, wp, 1), 1)
    valid = (rows >= 1) & (rows <= h_img) & (cols >= 1) & (cols <= w_img)
    h = jnp.where(valid, h, 0.0)

    # ---- Stage 2: 3x3 conv + folded BN, value-chain accumulation (no VMEM RMW) ----
    # b2 folded into the accumulator init.
    acc = jnp.broadcast_to(b2_ref[...], (th * wo, cout))

    if im2col:
        # kw-im2col: (rows_in, wo, 3*Cmid); 3 taps with K = 3*Cmid fill the MXU better.
        # Only taken when stride == 1 and Cmid % 128 == 0, so the concat / reshapes below
        # are lane/sublane aligned.
        h3 = jnp.concatenate([h[:, kw:kw + wo, :] for kw in range(3)], axis=-1)
        h_scr[...] = h3.astype(h_scr.dtype)
        for kh in range(3):
            patch = h_scr[kh:kh + th]                            # (th, wo, 3*Cmid)
            w2k = w2_ref[kh].reshape(3 * cmid, cout)             # (3*Cmid, Cout), aligned
            acc = acc + jnp.dot(patch.reshape(th * wo, 3 * cmid), w2k,
                                preferred_element_type=jnp.float32)
    else:
        h_scr[...] = h.astype(h_scr.dtype)
        for kh in range(3):
            for kw in range(3):
                if stride == 1:
                    patch = h_scr[kh:kh + th, kw:kw + wo, :]     # (th, wo, Cmid)
                else:
                    patch = h_scr[pl.ds(kh, th, stride), pl.ds(kw, wo, stride), :]
                acc = acc + jnp.dot(patch.reshape(th * wo, cmid), w2_ref[kh, kw],
                                    preferred_element_type=jnp.float32)

    # wo % 8 == 0 -> free reshape; lane axis stays Cout.
    o_ref[0] = acc.reshape(th, wo, cout).astype(o_ref.dtype)


def _pick_row_tile(ho, stride, target=32):
    """Pick a row tile that is a multiple of 8, minimizing total stage-1 rows computed."""
    target = max(8, (int(target) // 8) * 8)
    best_t, best_cost = 8, None
    t = 8
    while t <= target:
        n_tiles = -(-ho // t)
        cost = n_tiles * ((t - 1) * stride + 3)   # total intermediate rows computed
        if best_cost is None or cost < best_cost or (cost == best_cost and t > best_t):
            best_t, best_cost = t, cost
        t += 8
    return best_t


def _vmem_limit_bytes(footprint_bytes):
    """Size the Mosaic VMEM limit from the real footprint; fail loudly if it can't fit."""
    try:
        phys = int(pltpu.get_tpu_info().vmem_capacity_bytes)
    except Exception:
        phys = 128 * 1024 * 1024
    cap = (phys * 3) // 4                        # leave headroom for compiler scratch
    need = (footprint_bytes * 5) // 4 + (4 << 20)
    if need > cap:
        raise ValueError(
            f"One_Three_Conv Pallas kernel needs ~{need / 2**20:.1f} MiB VMEM but only "
            f"~{cap / 2**20:.1f} MiB is budgeted on this TPU; reduce row_tile or use "
            f"compute_dtype=jnp.bfloat16.")
    return int(max(32 << 20, min(need, cap)))


# ----------------------------------------------------------------------------
# Forward pass, NHWC native (preferred — avoids boundary transposes)
# ----------------------------------------------------------------------------
def one_three_conv_forward_nhwc(x_nhwc, folded, *, stride=1,
                                compute_dtype=jnp.float32, row_tile=32):
    n, h, w, cin = x_nhwc.shape
    w1 = folded["w1_mat"].astype(compute_dtype)       # (Cin, Cmid)
    w2 = folded["w2_hwio"].astype(compute_dtype)      # (3, 3, Cmid, Cout)
    b1 = folded["b1_vec"].astype(jnp.float32)         # (1, Cmid)
    b2 = folded["b2_vec"].astype(jnp.float32)         # (1, Cout)
    cmid, cout = w1.shape[1], w2.shape[-1]

    ho = (h - 1) // stride + 1
    wo = (w - 1) // stride + 1
    th = _pick_row_tile(ho, stride, row_tile)
    ho_c = -(-ho // th) * th                           # computed output rows (mult of th)
    wo_c = -(-wo // 8) * 8                             # computed output cols (mult of 8)
    rows_in = (th - 1) * stride + 3
    hp = max(h + 2, (ho_c - 1) * stride + 3)
    wp = -(-max(w + 2, (wo_c - 1) * stride + 3) // 8) * 8   # mult of 8 -> free reshapes

    # im2col-along-kw path only when it is guaranteed relayout-free.
    im2col = (stride == 1) and (cmid % 128 == 0)

    # Single spatial zero-pad of the (small, Cin-channel) input; left/top pad is exactly 1,
    # right/bottom pad includes the alignment padding (masked inside the kernel).
    xp = jnp.pad(x_nhwc, ((0, 0), (1, hp - h - 1), (1, wp - w - 1), (0, 0))).astype(compute_dtype)

    kernel = functools.partial(_one_three_kernel, th=th, wo=wo_c, stride=stride,
                               h_img=h, w_img=w, im2col=im2col)

    cs = jnp.dtype(compute_dtype).itemsize
    scr_shape = (rows_in, wo_c, 3 * cmid) if im2col else (rows_in, wp, cmid)
    scr_elems = scr_shape[0] * scr_shape[1] * scr_shape[2]
    footprint = (2 * hp * wp * cin * cs                          # x block (double buffered)
                 + 2 * (cin * cmid * cs + 9 * cmid * cout * cs   # weights (double buffered)
                        + (cmid + cout) * 4)                     # biases
                 + 2 * th * wo_c * cout * 4                      # output tile (double buffered)
                 + scr_elems * cs                                # intermediate scratch
                 + rows_in * wp * cmid * 4                       # live h value allowance
                 + th * wo_c * cout * 4                          # live acc value allowance
                 + (rows_in * wo_c * 3 * cmid * 4 if im2col else 0))
    vmem_limit = _vmem_limit_bytes(footprint)

    y = pl.pallas_call(
        kernel,
        out_shape=jax.ShapeDtypeStruct((n, ho_c, wo_c, cout), jnp.float32),
        grid_spec=pltpu.PrefetchScalarGridSpec(
            num_scalar_prefetch=0,
            grid=(n, ho_c // th),
            in_specs=[
                # Whole padded image per batch; index_map constant over the row axis so
                # Pallas only re-DMAs it when the batch index changes.
                pl.BlockSpec((1, hp, wp, cin), lambda b, r: (b, 0, 0, 0)),
                pl.BlockSpec((cin, cmid), lambda b, r: (0, 0)),
                pl.BlockSpec((1, cmid), lambda b, r: (0, 0)),
                pl.BlockSpec((3, 3, cmid, cout), lambda b, r: (0, 0, 0, 0)),
                pl.BlockSpec((1, cout), lambda b, r: (0, 0)),
            ],
            out_specs=pl.BlockSpec((1, th, wo_c, cout), lambda b, r: (b, r, 0, 0)),
            scratch_shapes=[pltpu.VMEM(scr_shape, compute_dtype)],
        ),
        compiler_params=pltpu.CompilerParams(
            # Batch axis sharded across cores; rows 'arbitrary' when n >= 2 so both v7x
            # TensorCores keep the once-per-image DMA property.
            dimension_semantics=("parallel", "parallel" if n == 1 else "arbitrary"),
            vmem_limit_bytes=vmem_limit,
        ),
    )(xp, w1, b1, w2, b2)

    # Strip the alignment padding (extra rows/cols are masked garbage = b2).
    return y[:, :ho, :wo, :]


# ----------------------------------------------------------------------------
# Forward pass, NCHW wrapper (matches the PyTorch module contract)
# ----------------------------------------------------------------------------
def one_three_conv_forward(x_nchw, folded, *, stride=1,
                           compute_dtype=jnp.float32, row_tile=32):
    # Boundary transposes only; prefer one_three_conv_forward_nhwc to avoid them.
    x_nhwc = jnp.transpose(x_nchw, (0, 2, 3, 1))
    y_nhwc = one_three_conv_forward_nhwc(x_nhwc, folded, stride=stride,
                                         compute_dtype=compute_dtype, row_tile=row_tile)
    return jnp.transpose(y_nhwc, (0, 3, 1, 2))


# ----------------------------------------------------------------------------
# Parameter construction + BN folding (inference mode)
# ----------------------------------------------------------------------------
def make_params(key, in_planes, out_planes):
    inter_planes = in_planes // 4
    k = jax.random.split(key, 10)
    eps = 1e-5

    # Conv weights (PyTorch layout: OIHW), no bias.
    w1 = jax.random.normal(k[0], (inter_planes, in_planes, 1, 1), jnp.float32) * 0.1
    w2 = jax.random.normal(k[1], (out_planes, inter_planes, 3, 3), jnp.float32) * 0.1

    # BatchNorm params + running stats (eval mode).
    g1 = 1.0 + 0.1 * jax.random.normal(k[2], (inter_planes,), jnp.float32)
    b1 = 0.1 * jax.random.normal(k[3], (inter_planes,), jnp.float32)
    m1 = 0.1 * jax.random.normal(k[4], (inter_planes,), jnp.float32)
    v1 = 1.0 + 0.1 * jax.random.uniform(k[5], (inter_planes,), jnp.float32)

    g2 = 1.0 + 0.1 * jax.random.normal(k[6], (out_planes,), jnp.float32)
    b2 = 0.1 * jax.random.normal(k[7], (out_planes,), jnp.float32)
    m2 = 0.1 * jax.random.normal(k[8], (out_planes,), jnp.float32)
    v2 = 1.0 + 0.1 * jax.random.uniform(k[9], (out_planes,), jnp.float32)

    scale1 = g1 / jnp.sqrt(v1 + eps)
    shift1 = b1 - m1 * scale1
    scale2 = g2 / jnp.sqrt(v2 + eps)
    shift2 = b2 - m2 * scale2

    # Fold BN scale into the (bias-free) conv weights; BN shift becomes the bias.
    w1_mat = jnp.transpose(w1[:, :, 0, 0], (1, 0)) * scale1[None, :]         # (Cin, Cmid)
    b1_vec = shift1[None, :]                                                 # (1, Cmid)
    w2_hwio = jnp.transpose(w2, (2, 3, 1, 0)) * scale2[None, None, None, :]  # (3,3,Cmid,Cout)
    b2_vec = shift2[None, :]                                                 # (1, Cout)

    raw = dict(w1=w1, w2=w2, g1=g1, b1=b1, m1=m1, v1=v1,
               g2=g2, b2=b2, m2=m2, v2=v2, eps=eps)
    folded = dict(w1_mat=w1_mat, b1_vec=b1_vec, w2_hwio=w2_hwio, b2_vec=b2_vec)
    return raw, folded


# ----------------------------------------------------------------------------
# Pure-JAX reference (for correctness check)
# ----------------------------------------------------------------------------
def reference_forward(x_nchw, raw, *, stride=1):
    eps = raw["eps"]
    y = lax.conv_general_dilated(
        x_nchw, raw["w1"], window_strides=(1, 1), padding="VALID",
        dimension_numbers=("NCHW", "OIHW", "NCHW"))
    y = (y - raw["m1"][None, :, None, None]) / jnp.sqrt(raw["v1"][None, :, None, None] + eps)
    y = y * raw["g1"][None, :, None, None] + raw["b1"][None, :, None, None]
    y = jnp.maximum(y, 0.0)
    z = lax.conv_general_dilated(
        y, raw["w2"], window_strides=(stride, stride), padding=((1, 1), (1, 1)),
        dimension_numbers=("NCHW", "OIHW", "NCHW"))
    z = (z - raw["m2"][None, :, None, None]) / jnp.sqrt(raw["v2"][None, :, None, None] + eps)
    z = z * raw["g2"][None, :, None, None] + raw["b2"][None, :, None, None]
    return z


if __name__ == "__main__":
    key = jax.random.PRNGKey(0)
    k_x, k_p = jax.random.split(key)

    # Small shapes consistent with the module (in_planes divisible by 4). W=14 exercises the
    # width-alignment padding path; row_tile=8 exercises the multi-row-tile halo path.
    N, IN_PLANES, OUT_PLANES, H, W = 2, 8, 16, 16, 14
    STRIDE = 1

    x = jax.random.normal(k_x, (N, IN_PLANES, H, W), jnp.float32)
    raw, folded = make_params(k_p, IN_PLANES, OUT_PLANES)

    ref = jax.block_until_ready(reference_forward(x, raw, stride=STRIDE))

    # f32 matmul path (tight check), 2 row tiles.
    fwd_f32 = jax.jit(functools.partial(one_three_conv_forward, stride=STRIDE,
                                        compute_dtype=jnp.float32, row_tile=8))
    out = jax.block_until_ready(fwd_f32(x, folded))
    np.testing.assert_allclose(np.asarray(out), np.asarray(ref), rtol=1e-4, atol=1e-4)

    # bf16 matmul operands (recommended on all TPU generations), f32 accumulation.
    fwd_bf16 = jax.jit(functools.partial(one_three_conv_forward, stride=STRIDE,
                                         compute_dtype=jnp.bfloat16, row_tile=32))
    out_bf16 = jax.block_until_ready(fwd_bf16(x, folded))
    np.testing.assert_allclose(np.asarray(out_bf16), np.asarray(ref), rtol=3e-2, atol=3e-2)

    print("KERNEL_OK")
</pallas_src>

<mosaic_0001>
module attributes {stable_mosaic.version = 11 : i64} {
  func.func @_one_three_kernel(%arg0: i32, %arg1: i32, %arg2: memref<1x18x24x8xf32, #tpu.memory_space<vmem>>, %arg3: memref<8x2xf32, #tpu.memory_space<vmem>>, %arg4: memref<1x2xf32, #tpu.memory_space<vmem>>, %arg5: memref<3x3x2x16xf32, #tpu.memory_space<vmem>>, %arg6: memref<1x16xf32, #tpu.memory_space<vmem>>, %arg7: memref<1x8x16x16xf32, #tpu.memory_space<vmem>>, %arg8: memref<10x24x2xf32, #tpu.memory_space<vmem>>) attributes {dimension_semantics = [#tpu.dimension_semantics<parallel>, #tpu.dimension_semantics<arbitrary>], iteration_bounds = array<i64: 2, 2>, scalar_prefetch = 0 : i64, scratch_operands = 1 : i64, tpu.core_type = #tpu.core_type<tc>, window_params = [{transform_indices = @transform_0, window_bounds = array<i64: 1, 18, 24, 8>}, {pipeline_mode = #tpu.pipeline_mode<synchronous>, transform_indices = @transform_1, window_bounds = array<i64: 8, 2>}, {pipeline_mode = #tpu.pipeline_mode<synchronous>, transform_indices = @transform_2, window_bounds = array<i64: 1, 2>}, {pipeline_mode = #tpu.pipeline_mode<synchronous>, transform_indices = @transform_3, window_bounds = array<i64: 3, 3, 2, 16>}, {pipeline_mode = #tpu.pipeline_mode<synchronous>, transform_indices = @transform_4, window_bounds = array<i64: 1, 16>}, {transform_indices = @transform_5, window_bounds = array<i64: 1, 8, 16, 16>}]} {
    %c8_i32 = arith.constant 8 : i32
    %0 = arith.muli %arg1, %c8_i32 : i32
    %1 = tpu.assume_multiple %0, 8 : i32
    %c0 = arith.constant 0 : index
    %2 = arith.index_cast %1 : i32 to index
    %c0_0 = arith.constant 0 : index
    %c0_1 = arith.constant 0 : index
    %3 = vector.load %arg2[%c0, %2, %c0_0, %c0_1] : memref<1x18x24x8xf32, #tpu.memory_space<vmem>>, vector<1x10x24x8xf32>
    %4 = vector.shape_cast %3 : vector<1x10x24x8xf32> to vector<10x24x8xf32>
    %5 = vector.shape_cast %4 : vector<10x24x8xf32> to vector<240x8xf32>
    %c0_2 = arith.constant 0 : index
    %c0_3 = arith.constant 0 : index
    %6 = vector.load %arg3[%c0_2, %c0_3] : memref<8x2xf32, #tpu.memory_space<vmem>>, vector<8x2xf32>
    %cst = arith.constant dense<0.000000e+00> : vector<240x2xf32>
    %7 = tpu.matmul %5, %6, %cst {dimension_numbers = #tpu.dot_dimension_numbers<[1], [0], [0], [1], [0, 0, 1, 1], [], []>} : vector<240x8xf32>, vector<8x2xf32>, vector<240x2xf32> -> vector<240x2xf32>
    %c0_4 = arith.constant 0 : index
    %c0_5 = arith.constant 0 : index
    %8 = vector.load %arg4[%c0_4, %c0_5] : memref<1x2xf32, #tpu.memory_space<vmem>>, vector<1x2xf32>
    %9 = vector.broadcast %8 : vector<1x2xf32> to vector<240x2xf32>
    %10 = arith.addf %7, %9 : vector<240x2xf32>
    %cst_6 = arith.constant 0.000000e+00 : f32
    %11 = vector.broadcast %cst_6 : f32 to vector<240x2xf32>
    %12 = arith.maximumf %10, %11 : vector<240x2xf32>
    %13 = vector.shape_cast %12 : vector<240x2xf32> to vector<10x24x2xf32>
    %14 = tpu.iota {dimensions = array<i32: 0>} : vector<10x24x1xi32>
    %15 = vector.broadcast %1 : i32 to vector<10x24x1xi32>
    %16 = arith.addi %14, %15 : vector<10x24x1xi32>
    %17 = tpu.iota {dimensions = array<i32: 1>} : vector<10x24x1xi32>
    %c1_i32 = arith.constant 1 : i32
    %18 = vector.broadcast %c1_i32 : i32 to vector<10x24x1xi32>
    %19 = arith.cmpi sge, %16, %18 : vector<10x24x1xi32>
    %c16_i32 = arith.constant 16 : i32
    %20 = vector.broadcast %c16_i32 : i32 to vector<10x24x1xi32>
    %21 = arith.cmpi sle, %16, %20 : vector<10x24x1xi32>
    %22 = arith.andi %19, %21 : vector<10x24x1xi1>
    %c1_i32_7 = arith.constant 1 : i32
    %23 = vector.broadcast %c1_i32_7 : i32 to vector<10x24x1xi32>
    %24 = arith.cmpi sge, %17, %23 : vector<10x24x1xi32>
    %25 = arith.andi %22, %24 : vector<10x24x1xi1>
    %c14_i32 = arith.constant 14 : i32
    %26 = vector.broadcast %c14_i32 : i32 to vector<10x24x1xi32>
    %27 = arith.cmpi sle, %17, %26 : vector<10x24x1xi32>
    %28 = arith.andi %25, %27 : vector<10x24x1xi1>
    %cst_8 = arith.constant 0.000000e+00 : f32
    %29 = vector.shape_cast %28 : vector<10x24x1xi1> to vector<10x24x1xi1>
    %30 = vector.broadcast %29 : vector<10x24x1xi1> to vector<10x24x2xi1>
    %31 = vector.broadcast %cst_8 : f32 to vector<10x24x2xf32>
    %32 = arith.select %30, %13, %31 : vector<10x24x2xi1>, vector<10x24x2xf32>
    %c0_9 = arith.constant 0 : index
    %c0_10 = arith.constant 0 : index
    %33 = vector.load %arg6[%c0_9, %c0_10] : memref<1x16xf32, #tpu.memory_space<vmem>>, vector<1x16xf32>
    %34 = vector.shape_cast %33 : vector<1x16xf32> to vector<1x16xf32>
    %35 = vector.broadcast %34 : vector<1x16xf32> to vector<128x16xf32>
    %c0_11 = arith.constant 0 : index
    %c0_12 = arith.constant 0 : index
    %c0_13 = arith.constant 0 : index
    %36 = vector.load %arg8[%c0_11, %c0_12, %c0_13] : memref<10x24x2xf32, #tpu.memory_space<vmem>>, vector<10x24x2xf32>
    tpu.vector_store %arg8[%c0_11, %c0_12, %c0_13], %32 {strides = array<i32>} : memref<10x24x2xf32, #tpu.memory_space<vmem>>, vector<10x24x2xf32>,
    %c0_14 = arith.constant 0 : index
    %c0_15 = arith.constant 0 : index
    %c0_16 = arith.constant 0 : index
    %37 = vector.load %arg8[%c0_14, %c0_15, %c0_16] : memref<10x24x2xf32, #tpu.memory_space<vmem>>, vector<8x16x2xf32>
    %38 = vector.shape_cast %37 : vector<8x16x2xf32> to vector<128x2xf32>
    %c0_17 = arith.constant 0 : index
    %c0_18 = arith.constant 0 : index
    %c0_19 = arith.constant 0 : index
    %c0_20 = arith.constant 0 : index
    %39 = vector.load %arg5[%c0_17, %c0_18, %c0_19, %c0_20] : memref<3x3x2x16xf32, #tpu.memory_space<vmem>>, vector<1x1x2x16xf32>
    %40 = vector.shape_cast %39 : vector<1x1x2x16xf32> to vector<2x16xf32>
    %cst_21 = arith.constant dense<0.000000e+00> : vector<128x16xf32>
    %41 = tpu.matmul %38, %40, %cst_21 {dimension_numbers = #tpu.dot_dimension_numbers<[1], [0], [0], [1], [0, 0, 1, 1], [], []>} : vector<128x2xf32>, vector<2x16xf32>, vector<128x16xf32> -> vector<128x16xf32>
    %42 = arith.addf %35, %41 : vector<128x16xf32>
    %c0_22 = arith.constant 0 : index
    %c1 = arith.constant 1 : index
    %c0_23 = arith.constant 0 : index
    %43 = vector.load %arg8[%c0_22, %c1, %c0_23] : memref<10x24x2xf32, #tpu.memory_space<vmem>>, vector<8x16x2xf32>
    %44 = vector.shape_cast %43 : vector<8x16x2xf32> to vector<128x2xf32>
    %c0_24 = arith.constant 0 : index
    %c1_25 = arith.constant 1 : index
    %c0_26 = arith.constant 0 : index
    %c0_27 = arith.constant 0 : index
    %45 = vector.load %arg5[%c0_24, %c1_25, %c0_26, %c0_27] : memref<3x3x2x16xf32, #tpu.memory_space<vmem>>, vector<1x1x2x16xf32>
    %46 = vector.shape_cast %45 : vector<1x1x2x16xf32> to vector<2x16xf32>
    %cst_28 = arith.constant dense<0.000000e+00> : vector<128x16xf32>
    %47 = tpu.matmul %44, %46, %cst_28 {dimension_numbers = #tpu.dot_dimension_numbers<[1], [0], [0], [1], [0, 0, 1, 1], [], []>} : vector<128x2xf32>, vector<2x16xf32>, vector<128x16xf32> -> vector<128x16xf32>
    %48 = arith.addf %42, %47 : vector<128x16xf32>
    %c0_29 = arith.constant 0 : index
    %c2 = arith.constant 2 : index
    %c0_30 = arith.constant 0 : index
    %49 = vector.load %arg8[%c0_29, %c2, %c0_30] : memref<10x24x2xf32, #tpu.memory_space<vmem>>, vector<8x16x2xf32>
    %50 = vector.shape_cast %49 : vector<8x16x2xf32> to vector<128x2xf32>
    %c0_31 = arith.constant 0 : index
    %c2_32 = arith.constant 2 : index
    %c0_33 = arith.constant 0 : index
    %c0_34 = arith.constant 0 : index
    %51 = vector.load %arg5[%c0_31, %c2_32, %c0_33, %c0_34] : memref<3x3x2x16xf32, #tpu.memory_space<vmem>>, vector<1x1x2x16xf32>
    %52 = vector.shape_cast %51 : vector<1x1x2x16xf32> to vector<2x16xf32>
    %cst_35 = arith.constant dense<0.000000e+00> : vector<128x16xf32>
    %53 = tpu.matmul %50, %52, %cst_35 {dimension_numbers = #tpu.dot_dimension_numbers<[1], [0], [0], [1], [0, 0, 1, 1], [], []>} : vector<128x2xf32>, vector<2x16xf32>, vector<128x16xf32> -> vector<128x16xf32>
    %54 = arith.addf %48, %53 : vector<128x16xf32>
    %c1_36 = arith.constant 1 : index
    %c0_37 = arith.constant 0 : index
    %c0_38 = arith.constant 0 : index
    %55 = vector.load %arg8[%c1_36, %c0_37, %c0_38] : memref<10x24x2xf32, #tpu.memory_space<vmem>>, vector<8x16x2xf32>
    %56 = vector.shape_cast %55 : vector<8x16x2xf32> to vector<128x2xf32>
    %c1_39 = arith.constant 1 : index
    %c0_40 = arith.constant 0 : index
    %c0_41 = arith.constant 0 : index
    %c0_42 = arith.constant 0 : index
    %57 = vector.load %arg5[%c1_39, %c0_40, %c0_41, %c0_42] : memref<3x3x2x16xf32, #tpu.memory_space<vmem>>, vector<1x1x2x16xf32>
    %58 = vector.shape_cast %57 : vector<1x1x2x16xf32> to vector<2x16xf32>
    %cst_43 = arith.constant dense<0.000000e+00> : vector<128x16xf32>
    %59 = tpu.matmul %56, %58, %cst_43 {dimension_numbers = #tpu.dot_dimension_numbers<[1], [0], [0], [1], [0, 0, 1, 1], [], []>} : vector<128x2xf32>, vector<2x16xf32>, vector<128x16xf32> -> vector<128x16xf32>
    %60 = arith.addf %54, %59 : vector<128x16xf32>
    %c1_44 = arith.constant 1 : index
    %c1_45 = arith.constant 1 : index
    %c0_46 = arith.constant 0 : index
    %61 = vector.load %arg8[%c1_44, %c1_45, %c0_46] : memref<10x24x2xf32, #tpu.memory_space<vmem>>, vector<8x16x2xf32>
    %62 = vector.shape_cast %61 : vector<8x16x2xf32> to vector<128x2xf32>
    %c1_47 = arith.constant 1 : index
    %c1_48 = arith.constant 1 : index
    %c0_49 = arith.constant 0 : index
    %c0_50 = arith.constant 0 : index
    %63 = vector.load %arg5[%c1_47, %c1_48, %c0_49, %c0_50] : memref<3x3x2x16xf32, #tpu.memory_space<vmem>>, vector<1x1x2x16xf32>
    %64 = vector.shape_cast %63 : vector<1x1x2x16xf32> to vector<2x16xf32>
    %cst_51 = arith.constant dense<0.000000e+00> : vector<128x16xf32>
    %65 = tpu.matmul %62, %64, %cst_51 {dimension_numbers = #tpu.dot_dimension_numbers<[1], [0], [0], [1], [0, 0, 1, 1], [], []>} : vector<128x2xf32>, vector<2x16xf32>, vector<128x16xf32> -> vector<128x16xf32>
    %66 = arith.addf %60, %65 : vector<128x16xf32>
    %c1_52 = arith.constant 1 : index
    %c2_53 = arith.constant 2 : index
    %c0_54 = arith.constant 0 : index
    %67 = vector.load %arg8[%c1_52, %c2_53, %c0_54] : memref<10x24x2xf32, #tpu.memory_space<vmem>>, vector<8x16x2xf32>
    %68 = vector.shape_cast %67 : vector<8x16x2xf32> to vector<128x2xf32>
    %c1_55 = arith.constant 1 : index
    %c2_56 = arith.constant 2 : index
    %c0_57 = arith.constant 0 : index
    %c0_58 = arith.constant 0 : index
    %69 = vector.load %arg5[%c1_55, %c2_56, %c0_57, %c0_58] : memref<3x3x2x16xf32, #tpu.memory_space<vmem>>, vector<1x1x2x16xf32>
    %70 = vector.shape_cast %69 : vector<1x1x2x16xf32> to vector<2x16xf32>
    %cst_59 = arith.constant dense<0.000000e+00> : vector<128x16xf32>
    %71 = tpu.matmul %68, %70, %cst_59 {dimension_numbers = #tpu.dot_dimension_numbers<[1], [0], [0], [1], [0, 0, 1, 1], [], []>} : vector<128x2xf32>, vector<2x16xf32>, vector<128x16xf32> -> vector<128x16xf32>
    %72 = arith.addf %66, %71 : vector<128x16xf32>
    %c2_60 = arith.constant 2 : index
    %c0_61 = arith.constant 0 : index
    %c0_62 = arith.constant 0 : index
    %73 = vector.load %arg8[%c2_60, %c0_61, %c0_62] : memref<10x24x2xf32, #tpu.memory_space<vmem>>, vector<8x16x2xf32>
    %74 = vector.shape_cast %73 : vector<8x16x2xf32> to vector<128x2xf32>
    %c2_63 = arith.constant 2 : index
    %c0_64 = arith.constant 0 : index
    %c0_65 = arith.constant 0 : index
    %c0_66 = arith.constant 0 : index
    %75 = vector.load %arg5[%c2_63, %c0_64, %c0_65, %c0_66] : memref<3x3x2x16xf32, #tpu.memory_space<vmem>>, vector<1x1x2x16xf32>
    %76 = vector.shape_cast %75 : vector<1x1x2x16xf32> to vector<2x16xf32>
    %cst_67 = arith.constant dense<0.000000e+00> : vector<128x16xf32>
    %77 = tpu.matmul %74, %76, %cst_67 {dimension_numbers = #tpu.dot_dimension_numbers<[1], [0], [0], [1], [0, 0, 1, 1], [], []>} : vector<128x2xf32>, vector<2x16xf32>, vector<128x16xf32> -> vector<128x16xf32>
    %78 = arith.addf %72, %77 : vector<128x16xf32>
    %c2_68 = arith.constant 2 : index
    %c1_69 = arith.constant 1 : index
    %c0_70 = arith.constant 0 : index
    %79 = vector.load %arg8[%c2_68, %c1_69, %c0_70] : memref<10x24x2xf32, #tpu.memory_space<vmem>>, vector<8x16x2xf32>
    %80 = vector.shape_cast %79 : vector<8x16x2xf32> to vector<128x2xf32>
    %c2_71 = arith.constant 2 : index
    %c1_72 = arith.constant 1 : index
    %c0_73 = arith.constant 0 : index
    %c0_74 = arith.constant 0 : index
    %81 = vector.load %arg5[%c2_71, %c1_72, %c0_73, %c0_74] : memref<3x3x2x16xf32, #tpu.memory_space<vmem>>, vector<1x1x2x16xf32>
    %82 = vector.shape_cast %81 : vector<1x1x2x16xf32> to vector<2x16xf32>
    %cst_75 = arith.constant dense<0.000000e+00> : vector<128x16xf32>
    %83 = tpu.matmul %80, %82, %cst_75 {dimension_numbers = #tpu.dot_dimension_numbers<[1], [0], [0], [1], [0, 0, 1, 1], [], []>} : vector<128x2xf32>, vector<2x16xf32>, vector<128x16xf32> -> vector<128x16xf32>
    %84 = arith.addf %78, %83 : vector<128x16xf32>
    %c2_76 = arith.constant 2 : index
    %c2_77 = arith.constant 2 : index
    %c0_78 = arith.constant 0 : index
    %85 = vector.load %arg8[%c2_76, %c2_77, %c0_78] : memref<10x24x2xf32, #tpu.memory_space<vmem>>, vector<8x16x2xf32>
    %86 = vector.shape_cast %85 : vector<8x16x2xf32> to vector<128x2xf32>
    %c2_79 = arith.constant 2 : index
    %c2_80 = arith.constant 2 : index
    %c0_81 = arith.constant 0 : index
    %c0_82 = arith.constant 0 : index
    %87 = vector.load %arg5[%c2_79, %c2_80, %c0_81, %c0_82] : memref<3x3x2x16xf32, #tpu.memory_space<vmem>>, vector<1x1x2x16xf32>
    %88 = vector.shape_cast %87 : vector<1x1x2x16xf32> to vector<2x16xf32>
    %cst_83 = arith.constant dense<0.000000e+00> : vector<128x16xf32>
    %89 = tpu.matmul %86, %88, %cst_83 {dimension_numbers = #tpu.dot_dimension_numbers<[1], [0], [0], [1], [0, 0, 1, 1], [], []>} : vector<128x2xf32>, vector<2x16xf32>, vector<128x16xf32> -> vector<128x16xf32>
    %90 = arith.addf %84, %89 : vector<128x16xf32>
    %91 = vector.shape_cast %90 : vector<128x16xf32> to vector<8x16x16xf32>
    %c0_84 = arith.constant 0 : index
    %c0_85 = arith.constant 0 : index
    %c0_86 = arith.constant 0 : index
    %c0_87 = arith.constant 0 : index
    %92 = vector.load %arg7[%c0_84, %c0_85, %c0_86, %c0_87] : memref<1x8x16x16xf32, #tpu.memory_space<vmem>>, vector<1x8x16x16xf32>
    %93 = vector.shape_cast %92 : vector<1x8x16x16xf32> to vector<8x16x16xf32>
    %94 = vector.shape_cast %91 : vector<8x16x16xf32> to vector<1x8x16x16xf32>
    tpu.vector_store %arg7[%c0_84, %c0_85, %c0_86, %c0_87], %94 {strides = array<i32>} : memref<1x8x16x16xf32, #tpu.memory_space<vmem>>, vector<1x8x16x16xf32>,
    return
  }
  func.func @transform_0(%arg0: i32, %arg1: i32) -> (i32, i32, i32, i32) {
    %c0_i32 = arith.constant 0 : i32
    %c0_i32_0 = arith.constant 0 : i32
    %c0_i32_1 = arith.constant 0 : i32
    %c0_i32_2 = arith.constant 0 : i32
    return %arg0, %c0_i32, %c0_i32_0, %c0_i32_1 : i32, i32, i32, i32
  }
  func.func @transform_1(%arg0: i32, %arg1: i32) -> (i32, i32) {
    %c0_i32 = arith.constant 0 : i32
    %c0_i32_0 = arith.constant 0 : i32
    %c0_i32_1 = arith.constant 0 : i32
    return %c0_i32, %c0_i32_0 : i32, i32
  }
  func.func @transform_2(%arg0: i32, %arg1: i32) -> (i32, i32) {
    %c0_i32 = arith.constant 0 : i32
    %c0_i32_0 = arith.constant 0 : i32
    %c0_i32_1 = arith.constant 0 : i32
    return %c0_i32, %c0_i32_0 : i32, i32
  }
  func.func @transform_3(%arg0: i32, %arg1: i32) -> (i32, i32, i32, i32) {
    %c0_i32 = arith.constant 0 : i32
    %c0_i32_0 = arith.constant 0 : i32
    %c0_i32_1 = arith.constant 0 : i32
    %c0_i32_2 = arith.constant 0 : i32
    %c0_i32_3 = arith.constant 0 : i32
    return %c0_i32, %c0_i32_0, %c0_i32_1, %c0_i32_2 : i32, i32, i32, i32
  }
  func.func @transform_4(%arg0: i32, %arg1: i32) -> (i32, i32) {
    %c0_i32 = arith.constant 0 : i32
    %c0_i32_0 = arith.constant 0 : i32
    %c0_i32_1 = arith.constant 0 : i32
    return %c0_i32, %c0_i32_0 : i32, i32
  }
  func.func @transform_5(%arg0: i32, %arg1: i32) -> (i32, i32, i32, i32) {
    %c0_i32 = arith.constant 0 : i32
    %c0_i32_0 = arith.constant 0 : i32
    %c0_i32_1 = arith.constant 0 : i32
    return %arg0, %arg1, %c0_i32, %c0_i32_0 : i32, i32, i32, i32
  }
}

</mosaic_0001>

<llo_original>
// kernel: one_three_conv_forward.1
$region0: #{one_three_conv_forward.1}
  #allocation0 [shape = 'u32[]', space=smem, size = 0x4, offset = 0x4, fixed_abs, tag = 'smem constant byte address 0x4 - core index']
  #allocation1 [shape = 'u32[144,128]{1,0:T(1,128)}', space=vmem, size = 0x12000, scoped, tag = 'internal scratch']
  #allocation2 [shape = 'f32[10,24,2]{2,1,0:T(8,128)}', space=vmem, size = 0x1e000, scoped, tag = 'scratch operand']
  %s0 = inlined_call_operand.vmem [shape: f32[2,18,24,8], index: 0, kind: input, shape index: {}]
  %s1 = inlined_call_operand.vmem [shape: f32[8,2], index: 1, kind: input, shape index: {}]
  %s2 = inlined_call_operand.vmem [shape: f32[1,2], index: 2, kind: input, shape index: {}]
  %s3 = inlined_call_operand.vmem [shape: f32[3,3,2,16], index: 3, kind: input, shape index: {}]
  %s4 = inlined_call_operand.vmem [shape: f32[1,16], index: 4, kind: input, shape index: {}]
  %s5 = inlined_call_operand.vmem [shape: f32[2,16,16,16], index: 5, kind: output, shape index: {}]
  %s6 = sld [smem:[#allocation0]]
  $region53: #{one_three_conv_forward.1} parent=0
    _
  %s8 = ssub.s32 1, %s6
  %s9 = scalar_select 0, %s8, %s6
  loop: start=0, step=1, limit=6
  $region2: #{one_three_conv_forward.1} parent=0 // loop_pre_header
    _
  $region3: #{one_three_conv_forward.1} parent=0 // loop_header
    %s11 = sphi 0, %s15
    %p12 = scmp.ge.s32.totalorder %s11, 6
    %s18 = sphi 0, %s30
    %s19 = sphi 0, %s26
    %s20 = sphi 0, %s18
    %s21 = sphi 0, %s19
    %s22 = sphi 0, %s20
    %s23 = sphi 0, %s21
    %s33 = sphi 0, %s35
    %s36 = sphi 0, %s33
    %s37 = sphi 0, %s36
    %s53 = sphi 0, %s37
    %s57 = sphi 0, %s57
    %s59 = sphi 0, %s57
    %s60 = sphi 0, %s59
    %s74 = sphi 0, %s60
    %s78 = sphi 0, %s78
    %s80 = sphi 0, %s78
    %s81 = sphi 0, %s80
    %s95 = sphi 0, %s81
    %s99 = sphi 0, %s99
    %s101 = sphi 0, %s99
    %s102 = sphi 0, %s101
    %s116 = sphi 0, %s102
    %s120 = sphi 0, %s120
    %s122 = sphi 0, %s120
    %s123 = sphi 0, %s122
    %s137 = sphi 0, %s123
    %s145 = sphi 0, %s147
    %s148 = sphi 0, %s145
    %s149 = sphi 0, %s148
    %s165 = sphi 0, %s149
  $region4: #{one_three_conv_forward.1} parent=0 // loop_header_branch
    %14 = sbr.rel (%p12) target = $region8
  $region5: #{one_three_conv_forward.1} parent=0 // loop_body
    %s16 = ssub.s32 %s11, 1
    %s17 = ssub.s32 %s11, 2
    %s24 = sadd.s32 1, %s19
    %p25 = scmp.ge.s32.totalorder %s24, 2
    %s26 = scalar_select %p25, 0, %s24
    %s27 = sadd.s32 1, %s18
    %s28 = scalar_select %p25, %s27, %s18
    %p29 = scmp.ge.s32.totalorder %s28, 2
    %s30 = scalar_select %p29, 0, %s28
    %s31 = ssub.s32 %s18, %s30
    %p32 = scmp.eq.s32.totalorder %s31, 0
    %s34 = sadd.s32 %s33, 1
    %s35 = scalar_select %p32, %s33, %s34
    %p38 = pneg %p32
    %p39 = scmp.eq.s32.totalorder %s11, 3
    %p40 = por %p38, %p39
    %p41 = scmp.ne.s32.totalorder %s33, %s36
    %p42 = scmp.eq.s32.totalorder %s11, 0
    %p43 = por %p41, %p42
    %p44 = scmp.ne.s32.totalorder %s33, %s36
    %p45 = scmp.eq.s32.totalorder %s16, 3
    %p46 = por %p44, %p45
    %p47 = scmp.ne.s32.totalorder %s36, %s37
    %p48 = scmp.eq.s32.totalorder %s16, 0
    %p49 = por %p47, %p48
    %p50 = scmp.ne.s32.totalorder %s36, %s37
    %p51 = scmp.eq.s32.totalorder %s17, 3
    %p52 = por %p50, %p51
    %p54 = scmp.ne.s32.totalorder %s37, %s53
    %p55 = scmp.eq.s32.totalorder %s17, 0
    %p56 = por %p54, %p55
    %s58 = sadd.s32 %s57, 1
    %p61 = scmp.eq.s32.totalorder %s11, 3
    %p62 = scmp.ne.s32.totalorder %s57, %s59
    %p63 = scmp.eq.s32.totalorder %s11, 0
    %p64 = por %p62, %p63
    %p65 = scmp.ne.s32.totalorder %s57, %s59
    %p66 = scmp.eq.s32.totalorder %s16, 3
    %p67 = por %p65, %p66
    %p68 = scmp.ne.s32.totalorder %s59, %s60
    %p69 = scmp.eq.s32.totalorder %s16, 0
    %p70 = por %p68, %p69
    %p71 = scmp.ne.s32.totalorder %s59, %s60
    %p72 = scmp.eq.s32.totalorder %s17, 3
    %p73 = por %p71, %p72
    %p75 = scmp.ne.s32.totalorder %s60, %s74
    %p76 = scmp.eq.s32.totalorder %s17, 0
    %p77 = por %p75, %p76
    %s79 = sadd.s32 %s78, 1
    %p82 = scmp.eq.s32.totalorder %s11, 3
    %p83 = scmp.ne.s32.totalorder %s78, %s80
    %p84 = scmp.eq.s32.totalorder %s11, 0
    %p85 = por %p83, %p84
    %p86 = scmp.ne.s32.totalorder %s78, %s80
    %p87 = scmp.eq.s32.totalorder %s16, 3
    %p88 = por %p86, %p87
    %p89 = scmp.ne.s32.totalorder %s80, %s81
    %p90 = scmp.eq.s32.totalorder %s16, 0
    %p91 = por %p89, %p90
    %p92 = scmp.ne.s32.totalorder %s80, %s81
    %p93 = scmp.eq.s32.totalorder %s17, 3
    %p94 = por %p92, %p93
    %p96 = scmp.ne.s32.totalorder %s81, %s95
    %p97 = scmp.eq.s32.totalorder %s17, 0
    %p98 = por %p96, %p97
    %s100 = sadd.s32 %s99, 1
    %p103 = scmp.eq.s32.totalorder %s11, 3
    %p104 = scmp.ne.s32.totalorder %s99, %s101
    %p105 = scmp.eq.s32.totalorder %s11, 0
    %p106 = por %p104, %p105
    %p107 = scmp.ne.s32.totalorder %s99, %s101
    %p108 = scmp.eq.s32.totalorder %s16, 3
    %p109 = por %p107, %p108
    %p110 = scmp.ne.s32.totalorder %s101, %s102
    %p111 = scmp.eq.s32.totalorder %s16, 0
    %p112 = por %p110, %p111
    %p113 = scmp.ne.s32.totalorder %s101, %s102
    %p114 = scmp.eq.s32.totalorder %s17, 3
    %p115 = por %p113, %p114
    %p117 = scmp.ne.s32.totalorder %s102, %s116
    %p118 = scmp.eq.s32.totalorder %s17, 0
    %p119 = por %p117, %p118
    %s121 = sadd.s32 %s120, 1
    %p124 = scmp.eq.s32.totalorder %s11, 3
    %p125 = scmp.ne.s32.totalorder %s120, %s122
    %p126 = scmp.eq.s32.totalorder %s11, 0
    %p127 = por %p125, %p126
    %p128 = scmp.ne.s32.totalorder %s120, %s122
    %p129 = scmp.eq.s32.totalorder %s16, 3
    %p130 = por %p128, %p129
    %p131 = scmp.ne.s32.totalorder %s122, %s123
    %p132 = scmp.eq.s32.totalorder %s16, 0
    %p133 = por %p131, %p132
    %p134 = scmp.ne.s32.totalorder %s122, %s123
    %p135 = scmp.eq.s32.totalorder %s17, 3
    %p136 = por %p134, %p135
    %p138 = scmp.ne.s32.totalorder %s123, %s137
    %p139 = scmp.eq.s32.totalorder %s17, 0
    %p140 = por %p138, %p139
    %s141 = ssub.s32 %s18, %s30
    %s142 = ssub.s32 %s19, %s26
    %s143 = sor.u32 %s141, %s142
    %p144 = scmp.eq.s32.totalorder %s143, 0
    %s146 = sadd.s32 %s145, 1
    %s147 = scalar_select %p144, %s145, %s146
    %p150 = pneg %p144
    %p151 = scmp.eq.s32.totalorder %s11, 3
    %p152 = por %p150, %p151
    %p153 = scmp.ne.s32.totalorder %s145, %s148
    %p154 = scmp.eq.s32.totalorder %s11, 0
    %p155 = por %p153, %p154
    %p156 = scmp.ne.s32.totalorder %s145, %s148
    %p157 = scmp.eq.s32.totalorder %s16, 3
    %p158 = por %p156, %p157
    %p159 = scmp.ne.s32.totalorder %s148, %s149
    %p160 = scmp.eq.s32.totalorder %s16, 0
    %p161 = por %p159, %p160
    %p162 = scmp.ne.s32.totalorder %s148, %s149
    %p163 = scmp.eq.s32.totalorder %s17, 3
    %p164 = por %p162, %p163
    %p166 = scmp.ne.s32.totalorder %s149, %s165
    %p167 = scmp.eq.s32.totalorder %s17, 0
    %p168 = por %p166, %p167
    %p169 = scmp.le.s32.totalorder 1, %s11
    %p170 = scmp.lt.s32.totalorder %s11, 5
    %p171 = pnand %p169, %p170
    %p172 = pneg %p171
    // Predicated region
    $region9: #{one_three_conv_forward.1} parent=5 // pred_check
      _
    $region10: #{one_three_conv_forward.1} parent=5 // pred_check_branch
      %174 = sbr.rel (%p171) target = $region12
    $region11: #{one_three_conv_forward.1} parent=5 // pred_region
      %s175 = ssub.s32 %s11, 1
      // Predicated region
      $region13: #{one_three_conv_forward.1} parent=11 // pred_check
        %p176 = pneg %p70
      $region14: #{one_three_conv_forward.1} parent=11 // pred_check_branch
        %178 = sbr.rel (%p176) target = $region16
      $region15: #{one_three_conv_forward.1} parent=11 // pred_region
        _
      $region16: #{one_three_conv_forward.1} parent=11 // pred_fallthru
        _
      // Predicated region
      $region17: #{one_three_conv_forward.1} parent=11 // pred_check
        %p179 = pneg %p91
      $region18: #{one_three_conv_forward.1} parent=11 // pred_check_branch
        %181 = sbr.rel (%p179) target = $region20
      $region19: #{one_three_conv_forward.1} parent=11 // pred_region
        _
      $region20: #{one_three_conv_forward.1} parent=11 // pred_fallthru
        _
      // Predicated region
      $region21: #{one_three_conv_forward.1} parent=11 // pred_check
        %p182 = pneg %p112
      $region22: #{one_three_conv_forward.1} parent=11 // pred_check_branch
        %184 = sbr.rel (%p182) target = $region24
      $region23: #{one_three_conv_forward.1} parent=11 // pred_region
        _
      $region24: #{one_three_conv_forward.1} parent=11 // pred_fallthru
        _
      // Predicated region
      $region25: #{one_three_conv_forward.1} parent=11 // pred_check
        %p185 = pneg %p133
      $region26: #{one_three_conv_forward.1} parent=11 // pred_check_branch
        %187 = sbr.rel (%p185) target = $region28
      $region27: #{one_three_conv_forward.1} parent=11 // pred_region
        _
      $region28: #{one_three_conv_forward.1} parent=11 // pred_fallthru
        _
    $region12: #{one_three_conv_forward.1} parent=5 // pred_fallthru
      _
    %p188 = scmp.lt.s32.totalorder %s11, 4
    // Predicated region
    $region29: #{one_three_conv_forward.1} parent=5 // pred_check
      %p189 = pneg %p188
    $region30: #{one_three_conv_forward.1} parent=5 // pred_check_branch
      %191 = sbr.rel (%p189) target = $region32
    $region31: #{one_three_conv_forward.1} parent=5 // pred_region
      // Predicated region
      $region33: #{one_three_conv_forward.1} parent=31 // pred_check
        %p192 = pneg %p43
      $region34: #{one_three_conv_forward.1} parent=31 // pred_check_branch
        %194 = sbr.rel (%p192) target = $region36
      $region35: #{one_three_conv_forward.1} parent=31 // pred_region
        %p195 = scmp.lt.s32.totalorder %s18, 1
        %s196 = scalar_select %p195, %s18, 1
        %s197 = smul.addr %s196, 54
        %s198 = smul.addr %s197, 8
        %s199 = scalar_lea.vmem %s0, %s198
      $region36: #{one_three_conv_forward.1} parent=31 // pred_fallthru
        _
    $region32: #{one_three_conv_forward.1} parent=5 // pred_fallthru
      _
    %p200 = scmp.le.s32.totalorder 1, %s11
    %p201 = scmp.lt.s32.totalorder %s11, 5
    %p202 = pnand %p200, %p201
    %p203 = pneg %p202
    // Predicated region
    $region37: #{one_three_conv_forward.1} parent=5 // pred_check
      _
    $region38: #{one_three_conv_forward.1} parent=5 // pred_check_branch
      %205 = sbr.rel (%p202) target = $region40
    $region39: #{one_three_conv_forward.1} parent=5 // pred_region
      %s206 = ssub.s32 %s11, 1
      %p207 = scmp.lt.s32.totalorder %s20, 1
      %s208 = scalar_select %p207, %s20, 1
      %s209 = smul.addr %s208, 54
      %s210 = smul.addr %s209, 8
      %s211 = scalar_lea.vmem %s0, %s210
      %p212 = pneg %p49
      %p213 = pneg %p46
      %p214 = pneg %p70
      %p215 = pneg %p67
      %p216 = pneg %p91
      %p217 = pneg %p88
      %p218 = pneg %p112
      %p219 = pneg %p109
      %p220 = pneg %p133
      %p221 = pneg %p130
      %p222 = pneg %p161
      %p223 = pneg %p158
      %s224 = smul.u32 8, %s21
      %p225 = scmp.lt.s32.totalorder %s20, 1
      %s226 = scalar_select %p225, %s20, 1
      %p227 = scmp.lt.s32.totalorder %s224, 15
      %s228 = scalar_select %p227, %s224, 15
      %s229 = smul.addr %s228, 2
      %s230 = smul.addr %s226, 32
      %s231 = sadd.s32 %s229, %s230
      %s232 = smul.addr %s231, 8
      %s233 = scalar_lea.vmem %s5, %s232
      %p234 = scmp.lt.s32.totalorder %s20, 1
      %s235 = scalar_select %p234, %s20, 1
      %s236 = smul.addr %s235, 54
      %s237 = smul.addr %s236, 8
      %s238 = scalar_lea.vmem %s0, %s237
      %s239 = smul.u32 8, %s21
      %p240 = scmp.lt.s32.totalorder %s20, 1
      %s241 = scalar_select %p240, %s20, 1
      %p242 = scmp.lt.s32.totalorder %s239, 15
      %s243 = scalar_select %p242, %s239, 15
      %s244 = smul.addr %s243, 2
      %s245 = smul.addr %s241, 32
      %s246 = sadd.s32 %s244, %s245
      %s247 = smul.addr %s246, 8
      %s248 = scalar_lea.vmem %s5, %s247
      %s249 = smul.u32 8, %s21
      %s250 = smul.u32 %s21, 8
      %s251 = smul.u32 %s250, 24
      %s252 = scalar_lea.vmem %s238, %s251
      %v253 = vld [vmem:[%s252] sm:$0xff]
      %v254 = vld [vmem:[%s252 + $0x8] sm:$0xff]
      %v255 = vld [vmem:[%s252 + $0x10] sm:$0xff]
      %v256 = vld [vmem:[%s252 + $0x18] sm:$0xff]
      %v257 = vld [vmem:[%s252 + $0x20] sm:$0xff]
      %v258 = vld [vmem:[%s252 + $0x28] sm:$0xff]
      %v259 = vld [vmem:[%s252 + $0x30] sm:$0xff]
      %v260 = vld [vmem:[%s252 + $0x38] sm:$0xff]
      %v261 = vld [vmem:[%s252 + $0x40] sm:$0xff]
      %v262 = vld [vmem:[%s252 + $0x48] sm:$0xff]
      %v263 = vld [vmem:[%s252 + $0x50] sm:$0xff]
      %v264 = vld [vmem:[%s252 + $0x58] sm:$0xff]
      %v265 = vld [vmem:[%s252 + $0x60] sm:$0xff]
      %v266 = vld [vmem:[%s252 + $0x68] sm:$0xff]
      %v267 = vld [vmem:[%s252 + $0x70] sm:$0xff]
      %v268 = vld [vmem:[%s252 + $0x78] sm:$0xff]
      %v269 = vld [vmem:[%s252 + $0x80] sm:$0xff]
      %v270 = vld [vmem:[%s252 + $0x88] sm:$0xff]
      %v271 = vld [vmem:[%s252 + $0x90] sm:$0xff]
      %v272 = vld [vmem:[%s252 + $0x98] sm:$0xff]
      %v273 = vld [vmem:[%s252 + $0xa0] sm:$0xff]
      %v274 = vld [vmem:[%s252 + $0xa8] sm:$0xff]
      %v275 = vld [vmem:[%s252 + $0xb0] sm:$0xff]
      %v276 = vld [vmem:[%s252 + $0xb8] sm:$0xff]
      %v277 = vld [vmem:[%s252 + $0xc0] sm:$0xff]
      %v278 = vld [vmem:[%s252 + $0xc8] sm:$0xff]
      %v279 = vld [vmem:[%s252 + $0xd0] sm:$0xff]
      %v280 = vld [vmem:[%s252 + $0xd8] sm:$0xff]
      %v281 = vld [vmem:[%s252 + $0xe0] sm:$0xff]
      %v282 = vld [vmem:[%s252 + $0xe8] sm:$0xff]
      %v283 = vld [vmem:[%s1] sm:$0xff]
      %v284 = vld [vmem:[%s2] sm:$0x1]
      %v286 = vlaneseq
      %v287 = vshrl.u32 %v286, 7
      %v288 = vsub.s32 0, %v287
      %v289 = vrot.slane %v284, %v288
      %vm291 = vcmask 64512
      %v293 = vsel %vm291, %v253, 0
      %v296 = vsel %vm291, %v254, 0
      %v299 = vsel %vm291, %v255, 0
      %v302 = vsel %vm291, %v256, 0
      %v305 = vsel %vm291, %v257, 0
      %v308 = vsel %vm291, %v258, 0
      %v311 = vsel %vm291, %v259, 0
      %v314 = vsel %vm291, %v260, 0
      %v317 = vsel %vm291, %v261, 0
      %v320 = vsel %vm291, %v262, 0
      %v323 = vsel %vm291, %v263, 0
      %v326 = vsel %vm291, %v264, 0
      %v329 = vsel %vm291, %v265, 0
      %v332 = vsel %vm291, %v266, 0
      %v335 = vsel %vm291, %v267, 0
      %v338 = vsel %vm291, %v268, 0
      %v341 = vsel %vm291, %v269, 0
      %v344 = vsel %vm291, %v270, 0
      %v347 = vsel %vm291, %v271, 0
      %v350 = vsel %vm291, %v272, 0
      %v353 = vsel %vm291, %v273, 0
      %v356 = vsel %vm291, %v274, 0
      %v359 = vsel %vm291, %v275, 0
      %v362 = vsel %vm291, %v276, 0
      %v365 = vsel %vm291, %v277, 0
      %v368 = vsel %vm291, %v278, 0
      %v371 = vsel %vm291, %v279, 0
      %v374 = vsel %vm291, %v280, 0
      %v377 = vsel %vm291, %v281, 0
      %v380 = vsel %vm291, %v282, 0
      %382 = vmatprep.subr.mxu0 0.0
      %383 = vmatpush1.msra.mxu0 %v283
      %384 = vmatprep.subr.mxu0 0.0
      %385 = vmatpush1.msra.mxu0 0.0
      %386 = vmatprep.subr.mxu0 0.0
      %387 = vmatpush1.msra.mxu0 0.0
      %388 = vmatprep.subr.mxu0 0.0
      %389 = vmatpush1.msra.mxu0 0.0
      %390 = vmatprep.subr.mxu0 0.0
      %391 = vmatpush1.msra.mxu0 0.0
      %392 = vmatprep.subr.mxu0 0.0
      %393 = vmatpush1.msra.mxu0 0.0
      %394 = vmatprep.subr.mxu0 0.0
      %395 = vmatpush1.msra.mxu0 0.0
      %396 = vmatprep.subr.mxu0 0.0
      %397 = vmatpush1.msra.mxu0 0.0
      %398 = vmatprep.subr.mxu0 0.0
      %399 = vmatpush1.msra.mxu0 0.0
      %400 = vmatprep.subr.mxu0 0.0
      %401 = vmatpush1.msra.mxu0 0.0
      %402 = vmatprep.subr.mxu0 0.0
      %403 = vmatpush1.msra.mxu0 0.0
      %404 = vmatprep.subr.mxu0 0.0
      %405 = vmatpush1.msra.mxu0 0.0
      %406 = vmatprep.subr.mxu0 0.0
      %407 = vmatpush1.msra.mxu0 0.0
      %408 = vmatprep.subr.mxu0 0.0
      %409 = vmatpush1.msra.mxu0 0.0
      %410 = vmatprep.subr.mxu0 0.0
      %411 = vmatpush1.msra.mxu0 0.0
      %412 = vmatprep.subr.mxu0 0.0
      %413 = vmatpush1.msra.mxu0 0.0
      %414 = vmatprep.subr.mxu0 0.0
      %415 = vmatpush1.msra.mxu0 0.0
      %416 = vmatprep.subr.mxu0 0.0
      %417 = vmatpush1.msra.mxu0 0.0
      %418 = vmatprep.subr.mxu0 0.0
      %419 = vmatpush1.msra.mxu0 0.0
      %420 = vmatprep.subr.mxu0 0.0
      %421 = vmatpush1.msra.mxu0 0.0
      %422 = vmatprep.subr.mxu0 0.0
      %423 = vmatpush1.msra.mxu0 0.0
      %424 = vmatprep.subr.mxu0 0.0
      %425 = vmatpush1.msra.mxu0 0.0
      %426 = vmatprep.subr.mxu0 0.0
      %427 = vmatpush1.msra.mxu0 0.0
      %428 = vmatprep.subr.mxu0 0.0
      %429 = vmatpush1.msra.mxu0 0.0
      %430 = vmatprep.subr.mxu0 0.0
      %431 = vmatpush1.msra.mxu0 0.0
      %432 = vmatprep.subr.mxu0 0.0
      %433 = vmatpush1.msra.mxu0 0.0
      %434 = vmatprep.subr.mxu0 0.0
      %435 = vmatpush1.msra.mxu0 0.0
      %436 = vmatprep.subr.mxu0 0.0
      %437 = vmatpush1.msra.mxu0 0.0
      %438 = vmatprep.subr.mxu0 0.0
      %439 = vmatpush1.msra.mxu0 0.0
      %440 = vmatprep.subr.mxu0 0.0
      %441 = vmatpush1.msra.mxu0 0.0
      %442 = vmatprep.subr.mxu0 0.0
      %443 = vmatpush1.msra.mxu0 0.0
      %444 = vmatprep.subr.mxu0 0.0
      %445 = vmatpush1.msra.mxu0 0.0
      %446 = vmatprep.mubr.f32.mxu0 0.0
      %447 = vmatmul.mubr.f32.gmra.mrb[0].mxu0 %v293
      %v448 = vpop.f32.mrb[0].mxu0
      %v449 = vadd.f32 %v289, %v448
      %v450 = vpop.f32.mrb[0].mxu0
      %451 = vmatprep.mubr.f32.mxu0 0.0
      %452 = vmatmul.mubr.f32.gmra.mrb[0].mxu0 %v296
      %v453 = vpop.f32.mrb[0].mxu0
      %v454 = vadd.f32 %v289, %v453
      %v455 = vpop.f32.mrb[0].mxu0
      %456 = vmatprep.mubr.f32.mxu0 0.0
      %457 = vmatmul.mubr.f32.gmra.mrb[0].mxu0 %v299
      %v458 = vpop.f32.mrb[0].mxu0
      %v459 = vadd.f32 %v289, %v458
      %v460 = vpop.f32.mrb[0].mxu0
      %461 = vmatprep.mubr.f32.mxu0 0.0
      %462 = vmatmul.mubr.f32.gmra.mrb[0].mxu0 %v302
      %v463 = vpop.f32.mrb[0].mxu0
      %v464 = vadd.f32 %v289, %v463
      %v465 = vpop.f32.mrb[0].mxu0
      %466 = vmatprep.mubr.f32.mxu0 0.0
      %467 = vmatmul.mubr.f32.gmra.mrb[0].mxu0 %v305
      %v468 = vpop.f32.mrb[0].mxu0
      %v469 = vadd.f32 %v289, %v468
      %v470 = vpop.f32.mrb[0].mxu0
      %471 = vmatprep.mubr.f32.mxu0 0.0
      %472 = vmatmul.mubr.f32.gmra.mrb[0].mxu0 %v308
      %v473 = vpop.f32.mrb[0].mxu0
      %v474 = vadd.f32 %v289, %v473
      %v475 = vpop.f32.mrb[0].mxu0
      %476 = vmatprep.mubr.f32.mxu0 0.0
      %477 = vmatmul.mubr.f32.gmra.mrb[0].mxu0 %v311
      %v478 = vpop.f32.mrb[0].mxu0
      %v479 = vadd.f32 %v289, %v478
      %v480 = vpop.f32.mrb[0].mxu0
      %481 = vmatprep.mubr.f32.mxu0 0.0
      %482 = vmatmul.mubr.f32.gmra.mrb[0].mxu0 %v314
      %v483 = vpop.f32.mrb[0].mxu0
      %v484 = vadd.f32 %v289, %v483
      %v485 = vpop.f32.mrb[0].mxu0
      %486 = vmatprep.mubr.f32.mxu0 0.0
      %487 = vmatmul.mubr.f32.gmra.mrb[0].mxu0 %v317
      %v488 = vpop.f32.mrb[0].mxu0
      %v489 = vadd.f32 %v289, %v488
      %v490 = vpop.f32.mrb[0].mxu0
      %491 = vmatprep.mubr.f32.mxu0 0.0
      %492 = vmatmul.mubr.f32.gmra.mrb[0].mxu0 %v320
      %v493 = vpop.f32.mrb[0].mxu0
      %v494 = vadd.f32 %v289, %v493
      %v495 = vpop.f32.mrb[0].mxu0
      %496 = vmatprep.mubr.f32.mxu0 0.0
      %497 = vmatmul.mubr.f32.gmra.mrb[0].mxu0 %v323
      %v498 = vpop.f32.mrb[0].mxu0
      %v499 = vadd.f32 %v289, %v498
      %v500 = vpop.f32.mrb[0].mxu0
      %501 = vmatprep.mubr.f32.mxu0 0.0
      %502 = vmatmul.mubr.f32.gmra.mrb[0].mxu0 %v326
      %v503 = vpop.f32.mrb[0].mxu0
      %v504 = vadd.f32 %v289, %v503
      %v505 = vpop.f32.mrb[0].mxu0
      %506 = vmatprep.mubr.f32.mxu0 0.0
      %507 = vmatmul.mubr.f32.gmra.mrb[0].mxu0 %v329
      %v508 = vpop.f32.mrb[0].mxu0
      %v509 = vadd.f32 %v289, %v508
      %v510 = vpop.f32.mrb[0].mxu0
      %511 = vmatprep.mubr.f32.mxu0 0.0
      %512 = vmatmul.mubr.f32.gmra.mrb[0].mxu0 %v332
      %v513 = vpop.f32.mrb[0].mxu0
      %v514 = vadd.f32 %v289, %v513
      %v515 = vpop.f32.mrb[0].mxu0
      %516 = vmatprep.mubr.f32.mxu0 0.0
      %517 = vmatmul.mubr.f32.gmra.mrb[0].mxu0 %v335
      %v518 = vpop.f32.mrb[0].mxu0
      %v519 = vadd.f32 %v289, %v518
      %v520 = vpop.f32.mrb[0].mxu0
      %521 = vmatprep.mubr.f32.mxu0 0.0
      %522 = vmatmul.mubr.f32.gmra.mrb[0].mxu0 %v338
      %v523 = vpop.f32.mrb[0].mxu0
      %v524 = vadd.f32 %v289, %v523
      %v525 = vpop.f32.mrb[0].mxu0
      %526 = vmatprep.mubr.f32.mxu0 0.0
      %527 = vmatmul.mubr.f32.gmra.mrb[0].mxu0 %v341
      %v528 = vpop.f32.mrb[0].mxu0
      %v529 = vadd.f32 %v289, %v528
      %v530 = vpop.f32.mrb[0].mxu0
      %531 = vmatprep.mubr.f32.mxu0 0.0
      %532 = vmatmul.mubr.f32.gmra.mrb[0].mxu0 %v344
      %v533 = vpop.f32.mrb[0].mxu0
      %v534 = vadd.f32 %v289, %v533
      %v535 = vpop.f32.mrb[0].mxu0
      %536 = vmatprep.mubr.f32.mxu0 0.0
      %537 = vmatmul.mubr.f32.gmra.mrb[0].mxu0 %v347
      %v538 = vpop.f32.mrb[0].mxu0
      %v539 = vadd.f32 %v289, %v538
      %v540 = vpop.f32.mrb[0].mxu0
      %541 = vmatprep.mubr.f32.mxu0 0.0
      %542 = vmatmul.mubr.f32.gmra.mrb[0].mxu0 %v350
      %v543 = vpop.f32.mrb[0].mxu0
      %v544 = vadd.f32 %v289, %v543
      %v545 = vpop.f32.mrb[0].mxu0
      %546 = vmatprep.mubr.f32.mxu0 0.0
      %547 = vmatmul.mubr.f32.gmra.mrb[0].mxu0 %v353
      %v548 = vpop.f32.mrb[0].mxu0
      %v549 = vadd.f32 %v289, %v548
      %v550 = vpop.f32.mrb[0].mxu0
      %551 = vmatprep.mubr.f32.mxu0 0.0
      %552 = vmatmul.mubr.f32.gmra.mrb[0].mxu0 %v356
      %v553 = vpop.f32.mrb[0].mxu0
      %v554 = vadd.f32 %v289, %v553
      %v555 = vpop.f32.mrb[0].mxu0
      %556 = vmatprep.mubr.f32.mxu0 0.0
      %557 = vmatmul.mubr.f32.gmra.mrb[0].mxu0 %v359
      %v558 = vpop.f32.mrb[0].mxu0
      %v559 = vadd.f32 %v289, %v558
      %v560 = vpop.f32.mrb[0].mxu0
      %561 = vmatprep.mubr.f32.mxu0 0.0
      %562 = vmatmul.mubr.f32.gmra.mrb[0].mxu0 %v362
      %v563 = vpop.f32.mrb[0].mxu0
      %v564 = vadd.f32 %v289, %v563
      %v565 = vpop.f32.mrb[0].mxu0
      %566 = vmatprep.mubr.f32.mxu0 0.0
      %567 = vmatmul.mubr.f32.gmra.mrb[0].mxu0 %v365
      %v568 = vpop.f32.mrb[0].mxu0
      %v569 = vadd.f32 %v289, %v568
      %v570 = vpop.f32.mrb[0].mxu0
      %571 = vmatprep.mubr.f32.mxu0 0.0
      %572 = vmatmul.mubr.f32.gmra.mrb[0].mxu0 %v368
      %v573 = vpop.f32.mrb[0].mxu0
      %v574 = vadd.f32 %v289, %v573
      %v575 = vpop.f32.mrb[0].mxu0
      %576 = vmatprep.mubr.f32.mxu0 0.0
      %577 = vmatmul.mubr.f32.gmra.mrb[0].mxu0 %v371
      %v578 = vpop.f32.mrb[0].mxu0
      %v579 = vadd.f32 %v289, %v578
      %v580 = vpop.f32.mrb[0].mxu0
      %581 = vmatprep.mubr.f32.mxu0 0.0
      %582 = vmatmul.mubr.f32.gmra.mrb[0].mxu0 %v374
      %v583 = vpop.f32.mrb[0].mxu0
      %v584 = vadd.f32 %v289, %v583
      %v585 = vpop.f32.mrb[0].mxu0
      %586 = vmatprep.mubr.f32.mxu0 0.0
      %587 = vmatmul.mubr.f32.gmra.mrb[0].mxu0 %v377
      %v588 = vpop.f32.mrb[0].mxu0
      %v589 = vadd.f32 %v289, %v588
      %v590 = vpop.f32.mrb[0].mxu0
      %591 = vmatprep.mubr.f32.mxu0 0.0
      %592 = vmatmul.mubr.f32.gmra.mrb[0].mxu0 %v380
      %v593 = vpop.f32.mrb[0].mxu0
      %v594 = vadd.f32 %v289, %v593
      %v595 = vpop.f32.mrb[0].mxu0
      %596 = vdwg.mxu0
      %v597 = vmax.f32 %v449, 0.0
      %v598 = vmax.f32 %v454, 0.0
      %v599 = vmax.f32 %v459, 0.0
      %v600 = vmax.f32 %v464, 0.0
      %v601 = vmax.f32 %v469, 0.0
      %v602 = vmax.f32 %v474, 0.0
      %v603 = vmax.f32 %v479, 0.0
      %v604 = vmax.f32 %v484, 0.0
      %v605 = vmax.f32 %v489, 0.0
      %v606 = vmax.f32 %v494, 0.0
      %v607 = vmax.f32 %v499, 0.0
      %v608 = vmax.f32 %v504, 0.0
      %v609 = vmax.f32 %v509, 0.0
      %v610 = vmax.f32 %v514, 0.0
      %v611 = vmax.f32 %v519, 0.0
      %v612 = vmax.f32 %v524, 0.0
      %v613 = vmax.f32 %v529, 0.0
      %v614 = vmax.f32 %v534, 0.0
      %v615 = vmax.f32 %v539, 0.0
      %v616 = vmax.f32 %v544, 0.0
      %v617 = vmax.f32 %v549, 0.0
      %v618 = vmax.f32 %v554, 0.0
      %v619 = vmax.f32 %v559, 0.0
      %v620 = vmax.f32 %v564, 0.0
      %v621 = vmax.f32 %v569, 0.0
      %v622 = vmax.f32 %v574, 0.0
      %v623 = vmax.f32 %v579, 0.0
      %v624 = vmax.f32 %v584, 0.0
      %v625 = vmax.f32 %v589, 0.0
      %v626 = vmax.f32 %v594, 0.0
      %v627 = vstv %s250
      %v628 = vadd.s32 %v627, 1
      %v629 = vadd.s32 %v627, 2
      %v630 = vadd.s32 %v627, 3
      %v631 = vadd.s32 %v627, 4
      %v632 = vadd.s32 %v627, 5
      %v633 = vadd.s32 %v627, 6
      %v634 = vadd.s32 %v627, 7
      %v635 = vadd.s32 %v627, 8
      %v636 = vadd.s32 %v627, 9
      %v637 = vlaneseq
      %v638 = vshrl.u32 %v637, 7
      %v639 = vadd.s32 %v638, 8
      %v640 = vadd.s32 %v638, 16
      %vm641 = vcmp.ge.s32.totalorder %v627, 1
      %vm642 = vcmp.ge.s32.totalorder %v628, 1
      %vm643 = vcmp.ge.s32.totalorder %v629, 1
      %vm644 = vcmp.ge.s32.totalorder %v630, 1
      %vm645 = vcmp.ge.s32.totalorder %v631, 1
      %vm646 = vcmp.ge.s32.totalorder %v632, 1
      %vm647 = vcmp.ge.s32.totalorder %v633, 1
      %vm648 = vcmp.ge.s32.totalorder %v634, 1
      %vm649 = vcmp.ge.s32.totalorder %v635, 1
      %vm650 = vcmp.ge.s32.totalorder %v636, 1
      %vm651 = vcmp.le.s32.totalorder %v627, 16
      %vm652 = vcmp.le.s32.totalorder %v628, 16
      %vm653 = vcmp.le.s32.totalorder %v629, 16
      %vm654 = vcmp.le.s32.totalorder %v630, 16
      %vm655 = vcmp.le.s32.totalorder %v631, 16
      %vm656 = vcmp.le.s32.totalorder %v632, 16
      %vm657 = vcmp.le.s32.totalorder %v633, 16
      %vm658 = vcmp.le.s32.totalorder %v634, 16
      %vm659 = vcmp.le.s32.totalorder %v635, 16
      %vm660 = vcmp.le.s32.totalorder %v636, 16
      %vm661 = vmand %vm641, %vm651
      %vm662 = vmand %vm642, %vm652
      %vm663 = vmand %vm643, %vm653
      %vm664 = vmand %vm644, %vm654
      %vm665 = vmand %vm645, %vm655
      %vm666 = vmand %vm646, %vm656
      %vm667 = vmand %vm647, %vm657
      %vm668 = vmand %vm648, %vm658
      %vm669 = vmand %vm649, %vm659
      %vm670 = vmand %vm650, %vm660
      %vm671 = vcmp.ge.s32.totalorder %v638, 1
      %vm672 = vcmp.ge.s32.totalorder %v639, 1
      %vm673 = vcmp.ge.s32.totalorder %v640, 1
      %vm674 = vmand %vm661, %vm671
      %vm675 = vmand %vm661, %vm672
      %vm676 = vmand %vm661, %vm673
      %vm677 = vmand %vm662, %vm671
      %vm678 = vmand %vm662, %vm672
      %vm679 = vmand %vm662, %vm673
      %vm680 = vmand %vm663, %vm671
      %vm681 = vmand %vm663, %vm672
      %vm682 = vmand %vm663, %vm673
      %vm683 = vmand %vm664, %vm671
      %vm684 = vmand %vm664, %vm672
      %vm685 = vmand %vm664, %vm673
      %vm686 = vmand %vm665, %vm671
      %vm687 = vmand %vm665, %vm672
      %vm688 = vmand %vm665, %vm673
      %vm689 = vmand %vm666, %vm671
      %vm690 = vmand %vm666, %vm672
      %vm691 = vmand %vm666, %vm673
      %vm692 = vmand %vm667, %vm671
      %vm693 = vmand %vm667, %vm672
      %vm694 = vmand %vm667, %vm673
      %vm695 = vmand %vm668, %vm671
      %vm696 = vmand %vm668, %vm672
      %vm697 = vmand %vm668, %vm673
      %vm698 = vmand %vm669, %vm671
      %vm699 = vmand %vm669, %vm672
      %vm700 = vmand %vm669, %vm673
      %vm701 = vmand %vm670, %vm671
      %vm702 = vmand %vm670, %vm672
      %vm703 = vmand %vm670, %vm673
      %vm704 = vcmp.le.s32.totalorder %v638, 14
      %vm705 = vcmp.le.s32.totalorder %v639, 14
      %vm706 = vcmp.le.s32.totalorder %v640, 14
      %vm707 = vmand %vm674, %vm704
      %vm708 = vmand %vm675, %vm705
      %vm709 = vmand %vm676, %vm706
      %vm710 = vmand %vm677, %vm704
      %vm711 = vmand %vm678, %vm705
      %vm712 = vmand %vm679, %vm706
      %vm713 = vmand %vm680, %vm704
      %vm714 = vmand %vm681, %vm705
      %vm715 = vmand %vm682, %vm706
      %vm716 = vmand %vm683, %vm704
      %vm717 = vmand %vm684, %vm705
      %vm718 = vmand %vm685, %vm706
      %vm719 = vmand %vm686, %vm704
      %vm720 = vmand %vm687, %vm705
      %vm721 = vmand %vm688, %vm706
      %vm722 = vmand %vm689, %vm704
      %vm723 = vmand %vm690, %vm705
      %vm724 = vmand %vm691, %vm706
      %vm725 = vmand %vm692, %vm704
      %vm726 = vmand %vm693, %vm705
      %vm727 = vmand %vm694, %vm706
      %vm728 = vmand %vm695, %vm704
      %vm729 = vmand %vm696, %vm705
      %vm730 = vmand %vm697, %vm706
      %vm731 = vmand %vm698, %vm704
      %vm732 = vmand %vm699, %vm705
      %vm733 = vmand %vm700, %vm706
      %vm734 = vmand %vm701, %vm704
      %vm735 = vmand %vm702, %vm705
      %vm736 = vmand %vm703, %vm706
      %v737 = vsel %vm707, 1, 0
      %v738 = vsel %vm708, 1, 0
      %v739 = vsel %vm709, 1, 0
      %v740 = vsel %vm710, 1, 0
      %v741 = vsel %vm711, 1, 0
      %v742 = vsel %vm712, 1, 0
      %v743 = vsel %vm713, 1, 0
      %v744 = vsel %vm714, 1, 0
      %v745 = vsel %vm715, 1, 0
      %v746 = vsel %vm716, 1, 0
      %v747 = vsel %vm717, 1, 0
      %v748 = vsel %vm718, 1, 0
      %v749 = vsel %vm719, 1, 0
      %v750 = vsel %vm720, 1, 0
      %v751 = vsel %vm721, 1, 0
      %v752 = vsel %vm722, 1, 0
      %v753 = vsel %vm723, 1, 0
      %v754 = vsel %vm724, 1, 0
      %v755 = vsel %vm725, 1, 0
      %v756 = vsel %vm726, 1, 0
      %v757 = vsel %vm727, 1, 0
      %v758 = vsel %vm728, 1, 0
      %v759 = vsel %vm729, 1, 0
      %v760 = vsel %vm730, 1, 0
      %v761 = vsel %vm731, 1, 0
      %v762 = vsel %vm732, 1, 0
      %v763 = vsel %vm733, 1, 0
      %v764 = vsel %vm734, 1, 0
      %v765 = vsel %vm735, 1, 0
      %v766 = vsel %vm736, 1, 0
      %vm767 = vcmp.eq.s32.totalorder %v737, 1
      %vm768 = vcmp.eq.s32.totalorder %v738, 1
      %vm769 = vcmp.eq.s32.totalorder %v739, 1
      %vm770 = vcmp.eq.s32.totalorder %v740, 1
      %vm771 = vcmp.eq.s32.totalorder %v741, 1
      %vm772 = vcmp.eq.s32.totalorder %v742, 1
      %vm773 = vcmp.eq.s32.totalorder %v743, 1
      %vm774 = vcmp.eq.s32.totalorder %v744, 1
      %vm775 = vcmp.eq.s32.totalorder %v745, 1
      %vm776 = vcmp.eq.s32.totalorder %v746, 1
      %vm777 = vcmp.eq.s32.totalorder %v747, 1
      %vm778 = vcmp.eq.s32.totalorder %v748, 1
      %vm779 = vcmp.eq.s32.totalorder %v749, 1
      %vm780 = vcmp.eq.s32.totalorder %v750, 1
      %vm781 = vcmp.eq.s32.totalorder %v751, 1
      %vm782 = vcmp.eq.s32.totalorder %v752, 1
      %vm783 = vcmp.eq.s32.totalorder %v753, 1
      %vm784 = vcmp.eq.s32.totalorder %v754, 1
      %vm785 = vcmp.eq.s32.totalorder %v755, 1
      %vm786 = vcmp.eq.s32.totalorder %v756, 1
      %vm787 = vcmp.eq.s32.totalorder %v757, 1
      %vm788 = vcmp.eq.s32.totalorder %v758, 1
      %vm789 = vcmp.eq.s32.totalorder %v759, 1
      %vm790 = vcmp.eq.s32.totalorder %v760, 1
      %vm791 = vcmp.eq.s32.totalorder %v761, 1
      %vm792 = vcmp.eq.s32.totalorder %v762, 1
      %vm793 = vcmp.eq.s32.totalorder %v763, 1
      %vm794 = vcmp.eq.s32.totalorder %v764, 1
      %vm795 = vcmp.eq.s32.totalorder %v765, 1
      %vm796 = vcmp.eq.s32.totalorder %v766, 1
      %v797 = vsel %vm767, %v597, 0.0
      %v798 = vsel %vm768, %v598, 0.0
      %v799 = vsel %vm769, %v599, 0.0
      %v800 = vsel %vm770, %v600, 0.0
      %v801 = vsel %vm771, %v601, 0.0
      %v802 = vsel %vm772, %v602, 0.0
      %v803 = vsel %vm773, %v603, 0.0
      %v804 = vsel %vm774, %v604, 0.0
      %v805 = vsel %vm775, %v605, 0.0
      %v806 = vsel %vm776, %v606, 0.0
      %v807 = vsel %vm777, %v607, 0.0
      %v808 = vsel %vm778, %v608, 0.0
      %v809 = vsel %vm779, %v609, 0.0
      %v810 = vsel %vm780, %v610, 0.0
      %v811 = vsel %vm781, %v611, 0.0
      %v812 = vsel %vm782, %v612, 0.0
      %v813 = vsel %vm783, %v613, 0.0
      %v814 = vsel %vm784, %v614, 0.0
      %v815 = vsel %vm785, %v615, 0.0
      %v816 = vsel %vm786, %v616, 0.0
      %v817 = vsel %vm787, %v617, 0.0
      %v818 = vsel %vm788, %v618, 0.0
      %v819 = vsel %vm789, %v619, 0.0
      %v820 = vsel %vm790, %v620, 0.0
      %v821 = vsel %vm791, %v621, 0.0
      %v822 = vsel %vm792, %v622, 0.0
      %v823 = vsel %vm793, %v623, 0.0
      %v824 = vsel %vm794, %v624, 0.0
      %v825 = vsel %vm795, %v625, 0.0
      %v826 = vsel %vm796, %v626, 0.0
      %v827 = vld [vmem:[%s4] sm:$0x1]
      %v829 = vlaneseq
      %v830 = vshrl.u32 %v829, 7
      %v831 = vsub.s32 0, %v830
      %v832 = vrot.slane %v827, %v831
      %vm834 = vcmask 15360
      %835 = vst.msk [vmem:[#allocation2] sm:$0xff] %vm834, %v797
      %836 = vst.msk [vmem:[#allocation2 + $0x8] sm:$0xff] %vm834, %v798
      %837 = vst.msk [vmem:[#allocation2 + $0x10] sm:$0xff] %vm834, %v799
      %838 = vst.msk [vmem:[#allocation2 + $0x18] sm:$0xff] %vm834, %v800
      %839 = vst.msk [vmem:[#allocation2 + $0x20] sm:$0xff] %vm834, %v801
      %840 = vst.msk [vmem:[#allocation2 + $0x28] sm:$0xff] %vm834, %v802
      %841 = vst.msk [vmem:[#allocation2 + $0x30] sm:$0xff] %vm834, %v803
      %842 = vst.msk [vmem:[#allocation2 + $0x38] sm:$0xff] %vm834, %v804
      %843 = vst.msk [vmem:[#allocation2 + $0x40] sm:$0xff] %vm834, %v805
      %844 = vst.msk [vmem:[#allocation2 + $0x48] sm:$0xff] %vm834, %v806
      %845 = vst.msk [vmem:[#allocation2 + $0x50] sm:$0xff] %vm834, %v807
      %846 = vst.msk [vmem:[#allocation2 + $0x58] sm:$0xff] %vm834, %v808
      %847 = vst.msk [vmem:[#allocation2 + $0x60] sm:$0xff] %vm834, %v809
      %848 = vst.msk [vmem:[#allocation2 + $0x68] sm:$0xff] %vm834, %v810
      %849 = vst.msk [vmem:[#allocation2 + $0x70] sm:$0xff] %vm834, %v811
      %850 = vst.msk [vmem:[#allocation2 + $0x78] sm:$0xff] %vm834, %v812
      %851 = vst.msk [vmem:[#allocation2 + $0x80] sm:$0xff] %vm834, %v813
      %852 = vst.msk [vmem:[#allocation2 + $0x88] sm:$0xff] %vm834, %v814
      %853 = vst.msk [vmem:[#allocation2 + $0x90] sm:$0xff] %vm834, %v815
      %854 = vst.msk [vmem:[#allocation2 + $0x98] sm:$0xff] %vm834, %v816
      %855 = vst.msk [vmem:[#allocation2 + $0xa0] sm:$0xff] %vm834, %v817
      %856 = vst.msk [vmem:[#allocation2 + $0xa8] sm:$0xff] %vm834, %v818
      %857 = vst.msk [vmem:[#allocation2 + $0xb0] sm:$0xff] %vm834, %v819
      %858 = vst.msk [vmem:[#allocation2 + $0xb8] sm:$0xff] %vm834, %v820
      %859 = vst.msk [vmem:[#allocation2 + $0xc0] sm:$0xff] %vm834, %v821
      %860 = vst.msk [vmem:[#allocation2 + $0xc8] sm:$0xff] %vm834, %v822
      %861 = vst.msk [vmem:[#allocation2 + $0xd0] sm:$0xff] %vm834, %v823
      %862 = vst.msk [vmem:[#allocation2 + $0xd8] sm:$0xff] %vm834, %v824
      %863 = vst.msk [vmem:[#allocation2 + $0xe0] sm:$0xff] %vm834, %v825
      %864 = vst.msk [vmem:[#allocation2 + $0xe8] sm:$0xff] %vm834, %v826
      %v865 = vld [vmem:[#allocation2] sm:$0xff]
      %v866 = vld [vmem:[#allocation2 + $0x8] sm:$0xff]
      %v867 = vld [vmem:[#allocation2 + $0x18] sm:$0xff]
      %v868 = vld [vmem:[#allocation2 + $0x20] sm:$0xff]
      %v869 = vld [vmem:[#allocation2 + $0x30] sm:$0xff]
      %v870 = vld [vmem:[#allocation2 + $0x38] sm:$0xff]
      %v871 = vld [vmem:[#allocation2 + $0x48] sm:$0xff]
      %v872 = vld [vmem:[#allocation2 + $0x50] sm:$0xff]
      %v873 = vld [vmem:[#allocation2 + $0x60] sm:$0xff]
      %v874 = vld [vmem:[#allocation2 + $0x68] sm:$0xff]
      %v875 = vld [vmem:[#allocation2 + $0x78] sm:$0xff]
      %v876 = vld [vmem:[#allocation2 + $0x80] sm:$0xff]
      %v877 = vld [vmem:[#allocation2 + $0x90] sm:$0xff]
      %v878 = vld [vmem:[#allocation2 + $0x98] sm:$0xff]
      %v879 = vld [vmem:[#allocation2 + $0xa8] sm:$0xff]
      %v880 = vld [vmem:[#allocation2 + $0xb0] sm:$0xff]
      %v881 = vld [vmem:[%s3] sm:$0x3]
      %v883 = vsel %vm834, %v865, 0
      %v886 = vsel %vm834, %v866, 0
      %v889 = vsel %vm834, %v867, 0
      %v892 = vsel %vm834, %v868, 0
      %v895 = vsel %vm834, %v869, 0
      %v898 = vsel %vm834, %v870, 0
      %v901 = vsel %vm834, %v871, 0
      %v904 = vsel %vm834, %v872, 0
      %v907 = vsel %vm834, %v873, 0
      %v910 = vsel %vm834, %v874, 0
      %v913 = vsel %vm834, %v875, 0
      %v916 = vsel %vm834, %v876, 0
      %v919 = vsel %vm834, %v877, 0
      %v922 = vsel %vm834, %v878, 0
      %v925 = vsel %vm834, %v879, 0
      %v928 = vsel %vm834, %v880, 0
      %vm930 = vcmask 1041408
      %v932 = vsel %vm930, %v881, 0
      %934 = vmatprep.subr.mxu0 0.0
      %935 = vmatpush1.msra.mxu0 %v932
      %936 = vmatprep.subr.mxu0 0.0
      %937 = vmatpush1.msra.mxu0 0.0
      %938 = vmatprep.subr.mxu0 0.0
      %939 = vmatpush1.msra.mxu0 0.0
      %940 = vmatprep.subr.mxu0 0.0
      %941 = vmatpush1.msra.mxu0 0.0
      %942 = vmatprep.subr.mxu0 0.0
      %943 = vmatpush1.msra.mxu0 0.0
      %944 = vmatprep.subr.mxu0 0.0
      %945 = vmatpush1.msra.mxu0 0.0
      %946 = vmatprep.subr.mxu0 0.0
      %947 = vmatpush1.msra.mxu0 0.0
      %948 = vmatprep.subr.mxu0 0.0
      %949 = vmatpush1.msra.mxu0 0.0
      %950 = vmatprep.subr.mxu0 0.0
      %951 = vmatpush1.msra.mxu0 0.0
      %952 = vmatprep.subr.mxu0 0.0
      %953 = vmatpush1.msra.mxu0 0.0
      %954 = vmatprep.subr.mxu0 0.0
      %955 = vmatpush1.msra.mxu0 0.0
      %956 = vmatprep.subr.mxu0 0.0
      %957 = vmatpush1.msra.mxu0 0.0
      %958 = vmatprep.subr.mxu0 0.0
      %959 = vmatpush1.msra.mxu0 0.0
      %960 = vmatprep.subr.mxu0 0.0
      %961 = vmatpush1.msra.mxu0 0.0
      %962 = vmatprep.subr.mxu0 0.0
      %963 = vmatpush1.msra.mxu0 0.0
      %964 = vmatprep.subr.mxu0 0.0
      %965 = vmatpush1.msra.mxu0 0.0
      %966 = vmatprep.subr.mxu0 0.0
      %967 = vmatpush1.msra.mxu0 0.0
      %968 = vmatprep.subr.mxu0 0.0
      %969 = vmatpush1.msra.mxu0 0.0
      %970 = vmatprep.subr.mxu0 0.0
      %971 = vmatpush1.msra.mxu0 0.0
      %972 = vmatprep.subr.mxu0 0.0
      %973 = vmatpush1.msra.mxu0 0.0
      %974 = vmatprep.subr.mxu0 0.0
      %975 = vmatpush1.msra.mxu0 0.0
      %976 = vmatprep.subr.mxu0 0.0
      %977 = vmatpush1.msra.mxu0 0.0
      %978 = vmatprep.subr.mxu0 0.0
      %979 = vmatpush1.msra.mxu0 0.0
      %980 = vmatprep.subr.mxu0 0.0
      %981 = vmatpush1.msra.mxu0 0.0
      %982 = vmatprep.subr.mxu0 0.0
      %983 = vmatpush1.msra.mxu0 0.0
      %984 = vmatprep.subr.mxu0 0.0
      %985 = vmatpush1.msra.mxu0 0.0
      %986 = vmatprep.subr.mxu0 0.0
      %987 = vmatpush1.msra.mxu0 0.0
      %988 = vmatprep.subr.mxu0 0.0
      %989 = vmatpush1.msra.mxu0 0.0
      %990 = vmatprep.subr.mxu0 0.0
      %991 = vmatpush1.msra.mxu0 0.0
      %992 = vmatprep.subr.mxu0 0.0
      %993 = vmatpush1.msra.mxu0 0.0
      %994 = vmatprep.subr.mxu0 0.0
      %995 = vmatpush1.msra.mxu0 0.0
      %996 = vmatprep.subr.mxu0 0.0
      %997 = vmatpush1.msra.mxu0 0.0
      %998 = vmatprep.mubr.f32.mxu0 0.0
      %999 = vmatmul.mubr.f32.gmra.mrb[0].mxu0 %v883
      %v1000 = vpop.f32.mrb[0].mxu0
      %v1001 = vadd.f32 0.0, %v1000
      %v1002 = vpop.f32.mrb[0].mxu0
      %1003 = vmatprep.mubr.f32.mxu0 0.0
      %1004 = vmatmul.mubr.f32.gmra.mrb[0].mxu0 %v886
      %v1005 = vpop.f32.mrb[0].mxu0
      %v1006 = vadd.f32 0.0, %v1005
      %v1007 = vpop.f32.mrb[0].mxu0
      %1008 = vmatprep.mubr.f32.mxu0 0.0
      %1009 = vmatmul.mubr.f32.gmra.mrb[0].mxu0 %v889
      %v1010 = vpop.f32.mrb[0].mxu0
      %v1011 = vadd.f32 0.0, %v1010
      %v1012 = vpop.f32.mrb[0].mxu0
      %1013 = vmatprep.mubr.f32.mxu0 0.0
      %1014 = vmatmul.mubr.f32.gmra.mrb[0].mxu0 %v892
      %v1015 = vpop.f32.mrb[0].mxu0
      %v1016 = vadd.f32 0.0, %v1015
      %v1017 = vpop.f32.mrb[0].mxu0
      %1018 = vmatprep.mubr.f32.mxu0 0.0
      %1019 = vmatmul.mubr.f32.gmra.mrb[0].mxu0 %v895
      %v1020 = vpop.f32.mrb[0].mxu0
      %v1021 = vadd.f32 0.0, %v1020
      %v1022 = vpop.f32.mrb[0].mxu0
      %1023 = vmatprep.mubr.f32.mxu0 0.0
      %1024 = vmatmul.mubr.f32.gmra.mrb[0].mxu0 %v898
      %v1025 = vpop.f32.mrb[0].mxu0
      %v1026 = vadd.f32 0.0, %v1025
      %v1027 = vpop.f32.mrb[0].mxu0
      %1028 = vmatprep.mubr.f32.mxu0 0.0
      %1029 = vmatmul.mubr.f32.gmra.mrb[0].mxu0 %v901
      %v1030 = vpop.f32.mrb[0].mxu0
      %v1031 = vadd.f32 0.0, %v1030
      %v1032 = vpop.f32.mrb[0].mxu0
      %1033 = vmatprep.mubr.f32.mxu0 0.0
      %1034 = vmatmul.mubr.f32.gmra.mrb[0].mxu0 %v904
      %v1035 = vpop.f32.mrb[0].mxu0
      %v1036 = vadd.f32 0.0, %v1035
      %v1037 = vpop.f32.mrb[0].mxu0
      %1038 = vmatprep.mubr.f32.mxu0 0.0
      %1039 = vmatmul.mubr.f32.gmra.mrb[0].mxu0 %v907
      %v1040 = vpop.f32.mrb[0].mxu0
      %v1041 = vadd.f32 0.0, %v1040
      %v1042 = vpop.f32.mrb[0].mxu0
      %1043 = vmatprep.mubr.f32.mxu0 0.0
      %1044 = vmatmul.mubr.f32.gmra.mrb[0].mxu0 %v910
      %v1045 = vpop.f32.mrb[0].mxu0
      %v1046 = vadd.f32 0.0, %v1045
      %v1047 = vpop.f32.mrb[0].mxu0
      %1048 = vmatprep.mubr.f32.mxu0 0.0
      %1049 = vmatmul.mubr.f32.gmra.mrb[0].mxu0 %v913
      %v1050 = vpop.f32.mrb[0].mxu0
      %v1051 = vadd.f32 0.0, %v1050
      %v1052 = vpop.f32.mrb[0].mxu0
      %1053 = vmatprep.mubr.f32.mxu0 0.0
      %1054 = vmatmul.mubr.f32.gmra.mrb[0].mxu0 %v916
      %v1055 = vpop.f32.mrb[0].mxu0
      %v1056 = vadd.f32 0.0, %v1055
      %v1057 = vpop.f32.mrb[0].mxu0
      %1058 = vmatprep.mubr.f32.mxu0 0.0
      %1059 = vmatmul.mubr.f32.gmra.mrb[0].mxu0 %v919
      %v1060 = vpop.f32.mrb[0].mxu0
      %v1061 = vadd.f32 0.0, %v1060
      %v1062 = vpop.f32.mrb[0].mxu0
      %1063 = vmatprep.mubr.f32.mxu0 0.0
      %1064 = vmatmul.mubr.f32.gmra.mrb[0].mxu0 %v922
      %v1065 = vpop.f32.mrb[0].mxu0
      %v1066 = vadd.f32 0.0, %v1065
      %v1067 = vpop.f32.mrb[0].mxu0
      %1068 = vmatprep.mubr.f32.mxu0 0.0
      %1069 = vmatmul.mubr.f32.gmra.mrb[0].mxu0 %v925
      %v1070 = vpop.f32.mrb[0].mxu0
      %v1071 = vadd.f32 0.0, %v1070
      %v1072 = vpop.f32.mrb[0].mxu0
      %1073 = vmatprep.mubr.f32.mxu0 0.0
      %1074 = vmatmul.mubr.f32.gmra.mrb[0].mxu0 %v928
      %v1075 = vpop.f32.mrb[0].mxu0
      %v1076 = vadd.f32 0.0, %v1075
      %v1077 = vpop.f32.mrb[0].mxu0
      %1078 = vdwg.mxu0
      %v1079 = vadd.f32 %v832, %v1001
      %v1080 = vadd.f32 %v832, %v1006
      %v1081 = vadd.f32 %v832, %v1011
      %v1082 = vadd.f32 %v832, %v1016
      %v1083 = vadd.f32 %v832, %v1021
      %v1084 = vadd.f32 %v832, %v1026
      %v1085 = vadd.f32 %v832, %v1031
      %v1086 = vadd.f32 %v832, %v1036
      %v1087 = vadd.f32 %v832, %v1041
      %v1088 = vadd.f32 %v832, %v1046
      %v1089 = vadd.f32 %v832, %v1051
      %v1090 = vadd.f32 %v832, %v1056
      %v1091 = vadd.f32 %v832, %v1061
      %v1092 = vadd.f32 %v832, %v1066
      %v1093 = vadd.f32 %v832, %v1071
      %v1094 = vadd.f32 %v832, %v1076
      %v1095 = vld [vmem:[#allocation2 + $0x1] sm:$0xff]
      %v1096 = vld [vmem:[#allocation2 + $0x9] sm:$0xff]
      %v1097 = vld [vmem:[#allocation2 + $0x19] sm:$0xff]
      %v1098 = vld [vmem:[#allocation2 + $0x21] sm:$0xff]
      %v1099 = vld [vmem:[#allocation2 + $0x31] sm:$0xff]
      %v1100 = vld [vmem:[#allocation2 + $0x39] sm:$0xff]
      %v1101 = vld [vmem:[#allocation2 + $0x49] sm:$0xff]
      %v1102 = vld [vmem:[#allocation2 + $0x51] sm:$0xff]
      %v1103 = vld [vmem:[#allocation2 + $0x61] sm:$0xff]
      %v1104 = vld [vmem:[#allocation2 + $0x69] sm:$0xff]
      %v1105 = vld [vmem:[#allocation2 + $0x79] sm:$0xff]
      %v1106 = vld [vmem:[#allocation2 + $0x81] sm:$0xff]
      %v1107 = vld [vmem:[#allocation2 + $0x91] sm:$0xff]
      %v1108 = vld [vmem:[#allocation2 + $0x99] sm:$0xff]
      %v1109 = vld [vmem:[#allocation2 + $0xa9] sm:$0xff]
      %v1110 = vld [vmem:[#allocation2 + $0xb1] sm:$0xff]
      %s1111 = scalar_lea.vmem %s3, 2
      %v1112 = vld [vmem:[%s1111] sm:$0x3]
      %v1114 = vsel %vm834, %v1095, 0
      %v1117 = vsel %vm834, %v1096, 0
      %v1120 = vsel %vm834, %v1097, 0
      %v1123 = vsel %vm834, %v1098, 0
      %v1126 = vsel %vm834, %v1099, 0
      %v1129 = vsel %vm834, %v1100, 0
      %v1132 = vsel %vm834, %v1101, 0
      %v1135 = vsel %vm834, %v1102, 0
      %v1138 = vsel %vm834, %v1103, 0
      %v1141 = vsel %vm834, %v1104, 0
      %v1144 = vsel %vm834, %v1105, 0
      %v1147 = vsel %vm834, %v1106, 0
      %v1150 = vsel %vm834, %v1107, 0
      %v1153 = vsel %vm834, %v1108, 0
      %v1156 = vsel %vm834, %v1109, 0
      %v1159 = vsel %vm834, %v1110, 0
      %v1162 = vsel %vm930, %v1112, 0
      %1164 = vmatprep.subr.mxu0 0.0
      %1165 = vmatpush1.msra.mxu0 %v1162
      %1166 = vmatprep.subr.mxu0 0.0
      %1167 = vmatpush1.msra.mxu0 0.0
      %1168 = vmatprep.subr.mxu0 0.0
      %1169 = vmatpush1.msra.mxu0 0.0
      %1170 = vmatprep.subr.mxu0 0.0
      %1171 = vmatpush1.msra.mxu0 0.0
      %1172 = vmatprep.subr.mxu0 0.0
      %1173 = vmatpush1.msra.mxu0 0.0
      %1174 = vmatprep.subr.mxu0 0.0
      %1175 = vmatpush1.msra.mxu0 0.0
      %1176 = vmatprep.subr.mxu0 0.0
      %1177 = vmatpush1.msra.mxu0 0.0
      %1178 = vmatprep.subr.mxu0 0.0
      %1179 = vmatpush1.msra.mxu0 0.0
      %1180 = vmatprep.subr.mxu0 0.0
      %1181 = vmatpush1.msra.mxu0 0.0
      %1182 = vmatprep.subr.mxu0 0.0
      %1183 = vmatpush1.msra.mxu0 0.0
      %1184 = vmatprep.subr.mxu0 0.0
      %1185 = vmatpush1.msra.mxu0 0.0
      %1186 = vmatprep.subr.mxu0 0.0
      %1187 = vmatpush1.msra.mxu0 0.0
      %1188 = vmatprep.subr.mxu0 0.0
      %1189 = vmatpush1.msra.mxu0 0.0
      %1190 = vmatprep.subr.mxu0 0.0
      %1191 = vmatpush1.msra.mxu0 0.0
      %1192 = vmatprep.subr.mxu0 0.0
      %1193 = vmatpush1.msra.mxu0 0.0
      %1194 = vmatprep.subr.mxu0 0.0
      %1195 = vmatpush1.msra.mxu0 0.0
      %1196 = vmatprep.subr.mxu0 0.0
      %1197 = vmatpush1.msra.mxu0 0.0
      %1198 = vmatprep.subr.mxu0 0.0
      %1199 = vmatpush1.msra.mxu0 0.0
      %1200 = vmatprep.subr.mxu0 0.0
      %1201 = vmatpush1.msra.mxu0 0.0
      %1202 = vmatprep.subr.mxu0 0.0
      %1203 = vmatpush1.msra.mxu0 0.0
      %1204 = vmatprep.subr.mxu0 0.0
      %1205 = vmatpush1.msra.mxu0 0.0
      %1206 = vmatprep.subr.mxu0 0.0
      %1207 = vmatpush1.msra.mxu0 0.0
      %1208 = vmatprep.subr.mxu0 0.0
      %1209 = vmatpush1.msra.mxu0 0.0
      %1210 = vmatprep.subr.mxu0 0.0
      %1211 = vmatpush1.msra.mxu0 0.0
      %1212 = vmatprep.subr.mxu0 0.0
      %1213 = vmatpush1.msra.mxu0 0.0
      %1214 = vmatprep.subr.mxu0 0.0
      %1215 = vmatpush1.msra.mxu0 0.0
      %1216 = vmatprep.subr.mxu0 0.0
      %1217 = vmatpush1.msra.mxu0 0.0
      %1218 = vmatprep.subr.mxu0 0.0
      %1219 = vmatpush1.msra.mxu0 0.0
      %1220 = vmatprep.subr.mxu0 0.0
      %1221 = vmatpush1.msra.mxu0 0.0
      %1222 = vmatprep.subr.mxu0 0.0
      %1223 = vmatpush1.msra.mxu0 0.0
      %1224 = vmatprep.subr.mxu0 0.0
      %1225 = vmatpush1.msra.mxu0 0.0
      %1226 = vmatprep.subr.mxu0 0.0
      %1227 = vmatpush1.msra.mxu0 0.0
      %1228 = vmatprep.mubr.f32.mxu0 0.0
      %1229 = vmatmul.mubr.f32.gmra.mrb[0].mxu0 %v1114
      %v1230 = vpop.f32.mrb[0].mxu0
      %v1231 = vadd.f32 0.0, %v1230
      %v1232 = vpop.f32.mrb[0].mxu0
      %1233 = vmatprep.mubr.f32.mxu0 0.0
      %1234 = vmatmul.mubr.f32.gmra.mrb[0].mxu0 %v1117
      %v1235 = vpop.f32.mrb[0].mxu0
      %v1236 = vadd.f32 0.0, %v1235
      %v1237 = vpop.f32.mrb[0].mxu0
      %1238 = vmatprep.mubr.f32.mxu0 0.0
      %1239 = vmatmul.mubr.f32.gmra.mrb[0].mxu0 %v1120
      %v1240 = vpop.f32.mrb[0].mxu0
      %v1241 = vadd.f32 0.0, %v1240
      %v1242 = vpop.f32.mrb[0].mxu0
      %1243 = vmatprep.mubr.f32.mxu0 0.0
      %1244 = vmatmul.mubr.f32.gmra.mrb[0].mxu0 %v1123
      %v1245 = vpop.f32.mrb[0].mxu0
      %v1246 = vadd.f32 0.0, %v1245
      %v1247 = vpop.f32.mrb[0].mxu0
      %1248 = vmatprep.mubr.f32.mxu0 0.0
      %1249 = vmatmul.mubr.f32.gmra.mrb[0].mxu0 %v1126
      %v1250 = vpop.f32.mrb[0].mxu0
      %v1251 = vadd.f32 0.0, %v1250
      %v1252 = vpop.f32.mrb[0].mxu0
      %1253 = vmatprep.mubr.f32.mxu0 0.0
      %1254 = vmatmul.mubr.f32.gmra.mrb[0].mxu0 %v1129
      %v1255 = vpop.f32.mrb[0].mxu0
      %v1256 = vadd.f32 0.0, %v1255
      %v1257 = vpop.f32.mrb[0].mxu0
      %1258 = vmatprep.mubr.f32.mxu0 0.0
      %1259 = vmatmul.mubr.f32.gmra.mrb[0].mxu0 %v1132
      %v1260 = vpop.f32.mrb[0].mxu0
      %v1261 = vadd.f32 0.0, %v1260
      %v1262 = vpop.f32.mrb[0].mxu0
      %1263 = vmatprep.mubr.f32.mxu0 0.0
      %1264 = vmatmul.mubr.f32.gmra.mrb[0].mxu0 %v1135
      %v1265 = vpop.f32.mrb[0].mxu0
      %v1266 = vadd.f32 0.0, %v1265
      %v1267 = vpop.f32.mrb[0].mxu0
      %1268 = vmatprep.mubr.f32.mxu0 0.0
      %1269 = vmatmul.mubr.f32.gmra.mrb[0].mxu0 %v1138
      %v1270 = vpop.f32.mrb[0].mxu0
      %v1271 = vadd.f32 0.0, %v1270
      %v1272 = vpop.f32.mrb[0].mxu0
      %1273 = vmatprep.mubr.f32.mxu0 0.0
      %1274 = vmatmul.mubr.f32.gmra.mrb[0].mxu0 %v1141
      %v1275 = vpop.f32.mrb[0].mxu0
      %v1276 = vadd.f32 0.0, %v1275
      %v1277 = vpop.f32.mrb[0].mxu0
      %1278 = vmatprep.mubr.f32.mxu0 0.0
      %1279 = vmatmul.mubr.f32.gmra.mrb[0].mxu0 %v1144
      %v1280 = vpop.f32.mrb[0].mxu0
      %v1281 = vadd.f32 0.0, %v1280
      %v1282 = vpop.f32.mrb[0].mxu0
      %1283 = vmatprep.mubr.f32.mxu0 0.0
      %1284 = vmatmul.mubr.f32.gmra.mrb[0].mxu0 %v1147
      %v1285 = vpop.f32.mrb[0].mxu0
      %v1286 = vadd.f32 0.0, %v1285
      %v1287 = vpop.f32.mrb[0].mxu0
      %1288 = vmatprep.mubr.f32.mxu0 0.0
      %1289 = vmatmul.mubr.f32.gmra.mrb[0].mxu0 %v1150
      %v1290 = vpop.f32.mrb[0].mxu0
      %v1291 = vadd.f32 0.0, %v1290
      %v1292 = vpop.f32.mrb[0].mxu0
      %1293 = vmatprep.mubr.f32.mxu0 0.0
      %1294 = vmatmul.mubr.f32.gmra.mrb[0].mxu0 %v1153
      %v1295 = vpop.f32.mrb[0].mxu0
      %v1296 = vadd.f32 0.0, %v1295
      %v1297 = vpop.f32.mrb[0].mxu0
      %1298 = vmatprep.mubr.f32.mxu0 0.0
      %1299 = vmatmul.mubr.f32.gmra.mrb[0].mxu0 %v1156
      %v1300 = vpop.f32.mrb[0].mxu0
      %v1301 = vadd.f32 0.0, %v1300
      %v1302 = vpop.f32.mrb[0].mxu0
      %1303 = vmatprep.mubr.f32.mxu0 0.0
      %1304 = vmatmul.mubr.f32.gmra.mrb[0].mxu0 %v1159
      %v1305 = vpop.f32.mrb[0].mxu0
      %v1306 = vadd.f32 0.0, %v1305
      %v1307 = vpop.f32.mrb[0].mxu0
      %1308 = vdwg.mxu0
      %v1309 = vadd.f32 %v1079, %v1231
      %v1310 = vadd.f32 %v1080, %v1236
      %v1311 = vadd.f32 %v1081, %v1241
      %v1312 = vadd.f32 %v1082, %v1246
      %v1313 = vadd.f32 %v1083, %v1251
      %v1314 = vadd.f32 %v1084, %v1256
      %v1315 = vadd.f32 %v1085, %v1261
      %v1316 = vadd.f32 %v1086, %v1266
      %v1317 = vadd.f32 %v1087, %v1271
      %v1318 = vadd.f32 %v1088, %v1276
      %v1319 = vadd.f32 %v1089, %v1281
      %v1320 = vadd.f32 %v1090, %v1286
      %v1321 = vadd.f32 %v1091, %v1291
      %v1322 = vadd.f32 %v1092, %v1296
      %v1323 = vadd.f32 %v1093, %v1301
      %v1324 = vadd.f32 %v1094, %v1306
      %v1325 = vld [vmem:[#allocation2 + $0x2] sm:$0xff]
      %v1326 = vld [vmem:[#allocation2 + $0xa] sm:$0xff]
      %v1327 = vld [vmem:[#allocation2 + $0x1a] sm:$0xff]
      %v1328 = vld [vmem:[#allocation2 + $0x22] sm:$0xff]
      %v1329 = vld [vmem:[#allocation2 + $0x32] sm:$0xff]
      %v1330 = vld [vmem:[#allocation2 + $0x3a] sm:$0xff]
      %v1331 = vld [vmem:[#allocation2 + $0x4a] sm:$0xff]
      %v1332 = vld [vmem:[#allocation2 + $0x52] sm:$0xff]
      %v1333 = vld [vmem:[#allocation2 + $0x62] sm:$0xff]
      %v1334 = vld [vmem:[#allocation2 + $0x6a] sm:$0xff]
      %v1335 = vld [vmem:[#allocation2 + $0x7a] sm:$0xff]
      %v1336 = vld [vmem:[#allocation2 + $0x82] sm:$0xff]
      %v1337 = vld [vmem:[#allocation2 + $0x92] sm:$0xff]
      %v1338 = vld [vmem:[#allocation2 + $0x9a] sm:$0xff]
      %v1339 = vld [vmem:[#allocation2 + $0xaa] sm:$0xff]
      %v1340 = vld [vmem:[#allocation2 + $0xb2] sm:$0xff]
      %s1341 = scalar_lea.vmem %s3, 4
      %v1342 = vld [vmem:[%s1341] sm:$0x3]
      %v1344 = vsel %vm834, %v1325, 0
      %v1347 = vsel %vm834, %v1326, 0
      %v1350 = vsel %vm834, %v1327, 0
      %v1353 = vsel %vm834, %v1328, 0
      %v1356 = vsel %vm834, %v1329, 0
      %v1359 = vsel %vm834, %v1330, 0
      %v1362 = vsel %vm834, %v1331, 0
      %v1365 = vsel %vm834, %v1332, 0
      %v1368 = vsel %vm834, %v1333, 0
      %v1371 = vsel %vm834, %v1334, 0
      %v1374 = vsel %vm834, %v1335, 0
      %v1377 = vsel %vm834, %v1336, 0
      %v1380 = vsel %vm834, %v1337, 0
      %v1383 = vsel %vm834, %v1338, 0
      %v1386 = vsel %vm834, %v1339, 0
      %v1389 = vsel %vm834, %v1340, 0
      %v1392 = vsel %vm930, %v1342, 0
      %1394 = vmatprep.subr.mxu0 0.0
      %1395 = vmatpush1.msra.mxu0 %v1392
      %1396 = vmatprep.subr.mxu0 0.0
      %1397 = vmatpush1.msra.mxu0 0.0
      %1398 = vmatprep.subr.mxu0 0.0
      %1399 = vmatpush1.msra.mxu0 0.0
      %1400 = vmatprep.subr.mxu0 0.0
      %1401 = vmatpush1.msra.mxu0 0.0
      %1402 = vmatprep.subr.mxu0 0.0
      %1403 = vmatpush1.msra.mxu0 0.0
      %1404 = vmatprep.subr.mxu0 0.0
      %1405 = vmatpush1.msra.mxu0 0.0
      %1406 = vmatprep.subr.mxu0 0.0
      %1407 = vmatpush1.msra.mxu0 0.0
      %1408 = vmatprep.subr.mxu0 0.0
      %1409 = vmatpush1.msra.mxu0 0.0
      %1410 = vmatprep.subr.mxu0 0.0
      %1411 = vmatpush1.msra.mxu0 0.0
      %1412 = vmatprep.subr.mxu0 0.0
      %1413 = vmatpush1.msra.mxu0 0.0
      %1414 = vmatprep.subr.mxu0 0.0
      %1415 = vmatpush1.msra.mxu0 0.0
      %1416 = vmatprep.subr.mxu0 0.0
      %1417 = vmatpush1.msra.mxu0 0.0
      %1418 = vmatprep.subr.mxu0 0.0
      %1419 = vmatpush1.msra.mxu0 0.0
      %1420 = vmatprep.subr.mxu0 0.0
      %1421 = vmatpush1.msra.mxu0 0.0
      %1422 = vmatprep.subr.mxu0 0.0
      %1423 = vmatpush1.msra.mxu0 0.0
      %1424 = vmatprep.subr.mxu0 0.0
      %1425 = vmatpush1.msra.mxu0 0.0
      %1426 = vmatprep.subr.mxu0 0.0
      %1427 = vmatpush1.msra.mxu0 0.0
      %1428 = vmatprep.subr.mxu0 0.0
      %1429 = vmatpush1.msra.mxu0 0.0
      %1430 = vmatprep.subr.mxu0 0.0
      %1431 = vmatpush1.msra.mxu0 0.0
      %1432 = vmatprep.subr.mxu0 0.0
      %1433 = vmatpush1.msra.mxu0 0.0
      %1434 = vmatprep.subr.mxu0 0.0
      %1435 = vmatpush1.msra.mxu0 0.0
      %1436 = vmatprep.subr.mxu0 0.0
      %1437 = vmatpush1.msra.mxu0 0.0
      %1438 = vmatprep.subr.mxu0 0.0
      %1439 = vmatpush1.msra.mxu0 0.0
      %1440 = vmatprep.subr.mxu0 0.0
      %1441 = vmatpush1.msra.mxu0 0.0
      %1442 = vmatprep.subr.mxu0 0.0
      %1443 = vmatpush1.msra.mxu0 0.0
      %1444 = vmatprep.subr.mxu0 0.0
      %1445 = vmatpush1.msra.mxu0 0.0
      %1446 = vmatprep.subr.mxu0 0.0
      %1447 = vmatpush1.msra.mxu0 0.0
      %1448 = vmatprep.subr.mxu0 0.0
      %1449 = vmatpush1.msra.mxu0 0.0
      %1450 = vmatprep.subr.mxu0 0.0
      %1451 = vmatpush1.msra.mxu0 0.0
      %1452 = vmatprep.subr.mxu0 0.0
      %1453 = vmatpush1.msra.mxu0 0.0
      %1454 = vmatprep.subr.mxu0 0.0
      %1455 = vmatpush1.msra.mxu0 0.0
      %1456 = vmatprep.subr.mxu0 0.0
      %1457 = vmatpush1.msra.mxu0 0.0
      %1458 = vmatprep.mubr.f32.mxu0 0.0
      %1459 = vmatmul.mubr.f32.gmra.mrb[0].mxu0 %v1344
      %v1460 = vpop.f32.mrb[0].mxu0
      %v1461 = vadd.f32 0.0, %v1460
      %v1462 = vpop.f32.mrb[0].mxu0
      %1463 = vmatprep.mubr.f32.mxu0 0.0
      %1464 = vmatmul.mubr.f32.gmra.mrb[0].mxu0 %v1347
      %v1465 = vpop.f32.mrb[0].mxu0
      %v1466 = vadd.f32 0.0, %v1465
      %v1467 = vpop.f32.mrb[0].mxu0
      %1468 = vmatprep.mubr.f32.mxu0 0.0
      %1469 = vmatmul.mubr.f32.gmra.mrb[0].mxu0 %v1350
      %v1470 = vpop.f32.mrb[0].mxu0
      %v1471 = vadd.f32 0.0, %v1470
      %v1472 = vpop.f32.mrb[0].mxu0
      %1473 = vmatprep.mubr.f32.mxu0 0.0
      %1474 = vmatmul.mubr.f32.gmra.mrb[0].mxu0 %v1353
      %v1475 = vpop.f32.mrb[0].mxu0
      %v1476 = vadd.f32 0.0, %v1475
      %v1477 = vpop.f32.mrb[0].mxu0
      %1478 = vmatprep.mubr.f32.mxu0 0.0
      %1479 = vmatmul.mubr.f32.gmra.mrb[0].mxu0 %v1356
      %v1480 = vpop.f32.mrb[0].mxu0
      %v1481 = vadd.f32 0.0, %v1480
      %v1482 = vpop.f32.mrb[0].mxu0
      %1483 = vmatprep.mubr.f32.mxu0 0.0
      %1484 = vmatmul.mubr.f32.gmra.mrb[0].mxu0 %v1359
      %v1485 = vpop.f32.mrb[0].mxu0
      %v1486 = vadd.f32 0.0, %v1485
      %v1487 = vpop.f32.mrb[0].mxu0
      %1488 = vmatprep.mubr.f32.mxu0 0.0
      %1489 = vmatmul.mubr.f32.gmra.mrb[0].mxu0 %v1362
      %v1490 = vpop.f32.mrb[0].mxu0
      %v1491 = vadd.f32 0.0, %v1490
      %v1492 = vpop.f32.mrb[0].mxu0
      %1493 = vmatprep.mubr.f32.mxu0 0.0
      %1494 = vmatmul.mubr.f32.gmra.mrb[0].mxu0 %v1365
      %v1495 = vpop.f32.mrb[0].mxu0
      %v1496 = vadd.f32 0.0, %v1495
      %v1497 = vpop.f32.mrb[0].mxu0
      %1498 = vmatprep.mubr.f32.mxu0 0.0
      %1499 = vmatmul.mubr.f32.gmra.mrb[0].mxu0 %v1368
      %v1500 = vpop.f32.mrb[0].mxu0
      %v1501 = vadd.f32 0.0, %v1500
      %v1502 = vpop.f32.mrb[0].mxu0
      %1503 = vmatprep.mubr.f32.mxu0 0.0
      %1504 = vmatmul.mubr.f32.gmra.mrb[0].mxu0 %v1371
      %v1505 = vpop.f32.mrb[0].mxu0
      %v1506 = vadd.f32 0.0, %v1505
      %v1507 = vpop.f32.mrb[0].mxu0
      %1508 = vmatprep.mubr.f32.mxu0 0.0
      %1509 = vmatmul.mubr.f32.gmra.mrb[0].mxu0 %v1374
      %v1510 = vpop.f32.mrb[0].mxu0
      %v1511 = vadd.f32 0.0, %v1510
      %v1512 = vpop.f32.mrb[0].mxu0
      %1513 = vmatprep.mubr.f32.mxu0 0.0
      %1514 = vmatmul.mubr.f32.gmra.mrb[0].mxu0 %v1377
      %v1515 = vpop.f32.mrb[0].mxu0
      %v1516 = vadd.f32 0.0, %v1515
      %v1517 = vpop.f32.mrb[0].mxu0
      %1518 = vmatprep.mubr.f32.mxu0 0.0
      %1519 = vmatmul.mubr.f32.gmra.mrb[0].mxu0 %v1380
      %v1520 = vpop.f32.mrb[0].mxu0
      %v1521 = vadd.f32 0.0, %v1520
      %v1522 = vpop.f32.mrb[0].mxu0
      %1523 = vmatprep.mubr.f32.mxu0 0.0
      %1524 = vmatmul.mubr.f32.gmra.mrb[0].mxu0 %v1383
      %v1525 = vpop.f32.mrb[0].mxu0
      %v1526 = vadd.f32 0.0, %v1525
      %v1527 = vpop.f32.mrb[0].mxu0
      %1528 = vmatprep.mubr.f32.mxu0 0.0
      %1529 = vmatmul.mubr.f32.gmra.mrb[0].mxu0 %v1386
      %v1530 = vpop.f32.mrb[0].mxu0
      %v1531 = vadd.f32 0.0, %v1530
      %v1532 = vpop.f32.mrb[0].mxu0
      %1533 = vmatprep.mubr.f32.mxu0 0.0
      %1534 = vmatmul.mubr.f32.gmra.mrb[0].mxu0 %v1389
      %v1535 = vpop.f32.mrb[0].mxu0
      %v1536 = vadd.f32 0.0, %v1535
      %v1537 = vpop.f32.mrb[0].mxu0
      %1538 = vdwg.mxu0
      %v1539 = vadd.f32 %v1309, %v1461
      %v1540 = vadd.f32 %v1310, %v1466
      %v1541 = vadd.f32 %v1311, %v1471
      %v1542 = vadd.f32 %v1312, %v1476
      %v1543 = vadd.f32 %v1313, %v1481
      %v1544 = vadd.f32 %v1314, %v1486
      %v1545 = vadd.f32 %v1315, %v1491
      %v1546 = vadd.f32 %v1316, %v1496
      %v1547 = vadd.f32 %v1317, %v1501
      %v1548 = vadd.f32 %v1318, %v1506
      %v1549 = vadd.f32 %v1319, %v1511
      %v1550 = vadd.f32 %v1320, %v1516
      %v1551 = vadd.f32 %v1321, %v1521
      %v1552 = vadd.f32 %v1322, %v1526
      %v1553 = vadd.f32 %v1323, %v1531
      %v1554 = vadd.f32 %v1324, %v1536
      %s1555 = scalar_lea.vmem [#allocation2], 24
      %v1556 = vld [vmem:[%s1555] sm:$0xff]
      %v1557 = vld [vmem:[%s1555 + $0x8] sm:$0xff]
      %v1558 = vld [vmem:[%s1555 + $0x18] sm:$0xff]
      %v1559 = vld [vmem:[%s1555 + $0x20] sm:$0xff]
      %v1560 = vld [vmem:[%s1555 + $0x30] sm:$0xff]
      %v1561 = vld [vmem:[%s1555 + $0x38] sm:$0xff]
      %v1562 = vld [vmem:[%s1555 + $0x48] sm:$0xff]
      %v1563 = vld [vmem:[%s1555 + $0x50] sm:$0xff]
      %v1564 = vld [vmem:[%s1555 + $0x60] sm:$0xff]
      %v1565 = vld [vmem:[%s1555 + $0x68] sm:$0xff]
      %v1566 = vld [vmem:[%s1555 + $0x78] sm:$0xff]
      %v1567 = vld [vmem:[%s1555 + $0x80] sm:$0xff]
      %v1568 = vld [vmem:[%s1555 + $0x90] sm:$0xff]
      %v1569 = vld [vmem:[%s1555 + $0x98] sm:$0xff]
      %v1570 = vld [vmem:[%s1555 + $0xa8] sm:$0xff]
      %v1571 = vld [vmem:[%s1555 + $0xb0] sm:$0xff]
      %s1572 = scalar_lea.vmem %s3, 6
      %v1573 = vld [vmem:[%s1572] sm:$0x3]
      %v1575 = vsel %vm834, %v1556, 0
      %v1578 = vsel %vm834, %v1557, 0
      %v1581 = vsel %vm834, %v1558, 0
      %v1584 = vsel %vm834, %v1559, 0
      %v1587 = vsel %vm834, %v1560, 0
      %v1590 = vsel %vm834, %v1561, 0
      %v1593 = vsel %vm834, %v1562, 0
      %v1596 = vsel %vm834, %v1563, 0
      %v1599 = vsel %vm834, %v1564, 0
      %v1602 = vsel %vm834, %v1565, 0
      %v1605 = vsel %vm834, %v1566, 0
      %v1608 = vsel %vm834, %v1567, 0
      %v1611 = vsel %vm834, %v1568, 0
      %v1614 = vsel %vm834, %v1569, 0
      %v1617 = vsel %vm834, %v1570, 0
      %v1620 = vsel %vm834, %v1571, 0
      %v1623 = vsel %vm930, %v1573, 0
      %1625 = vmatprep.subr.mxu0 0.0
      %1626 = vmatpush1.msra.mxu0 %v1623
      %1627 = vmatprep.subr.mxu0 0.0
      %1628 = vmatpush1.msra.mxu0 0.0
      %1629 = vmatprep.subr.mxu0 0.0
      %1630 = vmatpush1.msra.mxu0 0.0
      %1631 = vmatprep.subr.mxu0 0.0
      %1632 = vmatpush1.msra.mxu0 0.0
      %1633 = vmatprep.subr.mxu0 0.0
      %1634 = vmatpush1.msra.mxu0 0.0
      %1635 = vmatprep.subr.mxu0 0.0
      %1636 = vmatpush1.msra.mxu0 0.0
      %1637 = vmatprep.subr.mxu0 0.0
      %1638 = vmatpush1.msra.mxu0 0.0
      %1639 = vmatprep.subr.mxu0 0.0
      %1640 = vmatpush1.msra.mxu0 0.0
      %1641 = vmatprep.subr.mxu0 0.0
      %1642 = vmatpush1.msra.mxu0 0.0
      %1643 = vmatprep.subr.mxu0 0.0
      %1644 = vmatpush1.msra.mxu0 0.0
      %1645 = vmatprep.subr.mxu0 0.0
      %1646 = vmatpush1.msra.mxu0 0.0
      %1647 = vmatprep.subr.mxu0 0.0
      %1648 = vmatpush1.msra.mxu0 0.0
      %1649 = vmatprep.subr.mxu0 0.0
      %1650 = vmatpush1.msra.mxu0 0.0
      %1651 = vmatprep.subr.mxu0 0.0
      %1652 = vmatpush1.msra.mxu0 0.0
      %1653 = vmatprep.subr.mxu0 0.0
      %1654 = vmatpush1.msra.mxu0 0.0
      %1655 = vmatprep.subr.mxu0 0.0
      %1656 = vmatpush1.msra.mxu0 0.0
      %1657 = vmatprep.subr.mxu0 0.0
      %1658 = vmatpush1.msra.mxu0 0.0
      %1659 = vmatprep.subr.mxu0 0.0
      %1660 = vmatpush1.msra.mxu0 0.0
      %1661 = vmatprep.subr.mxu0 0.0
      %1662 = vmatpush1.msra.mxu0 0.0
      %1663 = vmatprep.subr.mxu0 0.0
      %1664 = vmatpush1.msra.mxu0 0.0
      %1665 = vmatprep.subr.mxu0 0.0
      %1666 = vmatpush1.msra.mxu0 0.0
      %1667 = vmatprep.subr.mxu0 0.0
      %1668 = vmatpush1.msra.mxu0 0.0
      %1669 = vmatprep.subr.mxu0 0.0
      %1670 = vmatpush1.msra.mxu0 0.0
      %1671 = vmatprep.subr.mxu0 0.0
      %1672 = vmatpush1.msra.mxu0 0.0
      %1673 = vmatprep.subr.mxu0 0.0
      %1674 = vmatpush1.msra.mxu0 0.0
      %1675 = vmatprep.subr.mxu0 0.0
      %1676 = vmatpush1.msra.mxu0 0.0
      %1677 = vmatprep.subr.mxu0 0.0
      %1678 = vmatpush1.msra.mxu0 0.0
      %1679 = vmatprep.subr.mxu0 0.0
      %1680 = vmatpush1.msra.mxu0 0.0
      %1681 = vmatprep.subr.mxu0 0.0
      %1682 = vmatpush1.msra.mxu0 0.0
      %1683 = vmatprep.subr.mxu0 0.0
      %1684 = vmatpush1.msra.mxu0 0.0
      %1685 = vmatprep.subr.mxu0 0.0
      %1686 = vmatpush1.msra.mxu0 0.0
      %1687 = vmatprep.subr.mxu0 0.0
      %1688 = vmatpush1.msra.mxu0 0.0
      %1689 = vmatprep.mubr.f32.mxu0 0.0
      %1690 = vmatmul.mubr.f32.gmra.mrb[0].mxu0 %v1575
      %v1691 = vpop.f32.mrb[0].mxu0
      %v1692 = vadd.f32 0.0, %v1691
      %v1693 = vpop.f32.mrb[0].mxu0
      %1694 = vmatprep.mubr.f32.mxu0 0.0
      %1695 = vmatmul.mubr.f32.gmra.mrb[0].mxu0 %v1578
      %v1696 = vpop.f32.mrb[0].mxu0
      %v1697 = vadd.f32 0.0, %v1696
      %v1698 = vpop.f32.mrb[0].mxu0
      %1699 = vmatprep.mubr.f32.mxu0 0.0
      %1700 = vmatmul.mubr.f32.gmra.mrb[0].mxu0 %v1581
      %v1701 = vpop.f32.mrb[0].mxu0
      %v1702 = vadd.f32 0.0, %v1701
      %v1703 = vpop.f32.mrb[0].mxu0
      %1704 = vmatprep.mubr.f32.mxu0 0.0
      %1705 = vmatmul.mubr.f32.gmra.mrb[0].mxu0 %v1584
      %v1706 = vpop.f32.mrb[0].mxu0
      %v1707 = vadd.f32 0.0, %v1706
      %v1708 = vpop.f32.mrb[0].mxu0
      %1709 = vmatprep.mubr.f32.mxu0 0.0
      %1710 = vmatmul.mubr.f32.gmra.mrb[0].mxu0 %v1587
      %v1711 = vpop.f32.mrb[0].mxu0
      %v1712 = vadd.f32 0.0, %v1711
      %v1713 = vpop.f32.mrb[0].mxu0
      %1714 = vmatprep.mubr.f32.mxu0 0.0
      %1715 = vmatmul.mubr.f32.gmra.mrb[0].mxu0 %v1590
      %v1716 = vpop.f32.mrb[0].mxu0
      %v1717 = vadd.f32 0.0, %v1716
      %v1718 = vpop.f32.mrb[0].mxu0
      %1719 = vmatprep.mubr.f32.mxu0 0.0
      %1720 = vmatmul.mubr.f32.gmra.mrb[0].mxu0 %v1593
      %v1721 = vpop.f32.mrb[0].mxu0
      %v1722 = vadd.f32 0.0, %v1721
      %v1723 = vpop.f32.mrb[0].mxu0
      %1724 = vmatprep.mubr.f32.mxu0 0.0
      %1725 = vmatmul.mubr.f32.gmra.mrb[0].mxu0 %v1596
      %v1726 = vpop.f32.mrb[0].mxu0
      %v1727 = vadd.f32 0.0, %v1726
      %v1728 = vpop.f32.mrb[0].mxu0
      %1729 = vmatprep.mubr.f32.mxu0 0.0
      %1730 = vmatmul.mubr.f32.gmra.mrb[0].mxu0 %v1599
      %v1731 = vpop.f32.mrb[0].mxu0
      %v1732 = vadd.f32 0.0, %v1731
      %v1733 = vpop.f32.mrb[0].mxu0
      %1734 = vmatprep.mubr.f32.mxu0 0.0
      %1735 = vmatmul.mubr.f32.gmra.mrb[0].mxu0 %v1602
      %v1736 = vpop.f32.mrb[0].mxu0
      %v1737 = vadd.f32 0.0, %v1736
      %v1738 = vpop.f32.mrb[0].mxu0
      %1739 = vmatprep.mubr.f32.mxu0 0.0
      %1740 = vmatmul.mubr.f32.gmra.mrb[0].mxu0 %v1605
      %v1741 = vpop.f32.mrb[0].mxu0
      %v1742 = vadd.f32 0.0, %v1741
      %v1743 = vpop.f32.mrb[0].mxu0
      %1744 = vmatprep.mubr.f32.mxu0 0.0
      %1745 = vmatmul.mubr.f32.gmra.mrb[0].mxu0 %v1608
      %v1746 = vpop.f32.mrb[0].mxu0
      %v1747 = vadd.f32 0.0, %v1746
      %v1748 = vpop.f32.mrb[0].mxu0
      %1749 = vmatprep.mubr.f32.mxu0 0.0
      %1750 = vmatmul.mubr.f32.gmra.mrb[0].mxu0 %v1611
      %v1751 = vpop.f32.mrb[0].mxu0
      %v1752 = vadd.f32 0.0, %v1751
      %v1753 = vpop.f32.mrb[0].mxu0
      %1754 = vmatprep.mubr.f32.mxu0 0.0
      %1755 = vmatmul.mubr.f32.gmra.mrb[0].mxu0 %v1614
      %v1756 = vpop.f32.mrb[0].mxu0
      %v1757 = vadd.f32 0.0, %v1756
      %v1758 = vpop.f32.mrb[0].mxu0
      %1759 = vmatprep.mubr.f32.mxu0 0.0
      %1760 = vmatmul.mubr.f32.gmra.mrb[0].mxu0 %v1617
      %v1761 = vpop.f32.mrb[0].mxu0
      %v1762 = vadd.f32 0.0, %v1761
      %v1763 = vpop.f32.mrb[0].mxu0
      %1764 = vmatprep.mubr.f32.mxu0 0.0
      %1765 = vmatmul.mubr.f32.gmra.mrb[0].mxu0 %v1620
      %v1766 = vpop.f32.mrb[0].mxu0
      %v1767 = vadd.f32 0.0, %v1766
      %v1768 = vpop.f32.mrb[0].mxu0
      %1769 = vdwg.mxu0
      %v1770 = vadd.f32 %v1539, %v1692
      %v1771 = vadd.f32 %v1540, %v1697
      %v1772 = vadd.f32 %v1541, %v1702
      %v1773 = vadd.f32 %v1542, %v1707
      %v1774 = vadd.f32 %v1543, %v1712
      %v1775 = vadd.f32 %v1544, %v1717
      %v1776 = vadd.f32 %v1545, %v1722
      %v1777 = vadd.f32 %v1546, %v1727
      %v1778 = vadd.f32 %v1547, %v1732
      %v1779 = vadd.f32 %v1548, %v1737
      %v1780 = vadd.f32 %v1549, %v1742
      %v1781 = vadd.f32 %v1550, %v1747
      %v1782 = vadd.f32 %v1551, %v1752
      %v1783 = vadd.f32 %v1552, %v1757
      %v1784 = vadd.f32 %v1553, %v1762
      %v1785 = vadd.f32 %v1554, %v1767
      %v1786 = vld [vmem:[%s1555 + $0x1] sm:$0xff]
      %v1787 = vld [vmem:[%s1555 + $0x9] sm:$0xff]
      %v1788 = vld [vmem:[%s1555 + $0x19] sm:$0xff]
      %v1789 = vld [vmem:[%s1555 + $0x21] sm:$0xff]
      %v1790 = vld [vmem:[%s1555 + $0x31] sm:$0xff]
      %v1791 = vld [vmem:[%s1555 + $0x39] sm:$0xff]
      %v1792 = vld [vmem:[%s1555 + $0x49] sm:$0xff]
      %v1793 = vld [vmem:[%s1555 + $0x51] sm:$0xff]
      %v1794 = vld [vmem:[%s1555 + $0x61] sm:$0xff]
      %v1795 = vld [vmem:[%s1555 + $0x69] sm:$0xff]
      %v1796 = vld [vmem:[%s1555 + $0x79] sm:$0xff]
      %v1797 = vld [vmem:[%s1555 + $0x81] sm:$0xff]
      %v1798 = vld [vmem:[%s1555 + $0x91] sm:$0xff]
      %v1799 = vld [vmem:[%s1555 + $0x99] sm:$0xff]
      %v1800 = vld [vmem:[%s1555 + $0xa9] sm:$0xff]
      %v1801 = vld [vmem:[%s1555 + $0xb1] sm:$0xff]
      %s1802 = scalar_lea.vmem %s3, 8
      %v1803 = vld [vmem:[%s1802] sm:$0x3]
      %v1805 = vsel %vm834, %v1786, 0
      %v1808 = vsel %vm834, %v1787, 0
      %v1811 = vsel %vm834, %v1788, 0
      %v1814 = vsel %vm834, %v1789, 0
      %v1817 = vsel %vm834, %v1790, 0
      %v1820 = vsel %vm834, %v1791, 0
      %v1823 = vsel %vm834, %v1792, 0
      %v1826 = vsel %vm834, %v1793, 0
      %v1829 = vsel %vm834, %v1794, 0
      %v1832 = vsel %vm834, %v1795, 0
      %v1835 = vsel %vm834, %v1796, 0
      %v1838 = vsel %vm834, %v1797, 0
      %v1841 = vsel %vm834, %v1798, 0
      %v1844 = vsel %vm834, %v1799, 0
      %v1847 = vsel %vm834, %v1800, 0
      %v1850 = vsel %vm834, %v1801, 0
      %v1853 = vsel %vm930, %v1803, 0
      %1855 = vmatprep.subr.mxu0 0.0
      %1856 = vmatpush1.msra.mxu0 %v1853
      %1857 = vmatprep.subr.mxu0 0.0
      %1858 = vmatpush1.msra.mxu0 0.0
      %1859 = vmatprep.subr.mxu0 0.0
      %1860 = vmatpush1.msra.mxu0 0.0
      %1861 = vmatprep.subr.mxu0 0.0
      %1862 = vmatpush1.msra.mxu0 0.0
      %1863 = vmatprep.subr.mxu0 0.0
      %1864 = vmatpush1.msra.mxu0 0.0
      %1865 = vmatprep.subr.mxu0 0.0
      %1866 = vmatpush1.msra.mxu0 0.0
      %1867 = vmatprep.subr.mxu0 0.0
      %1868 = vmatpush1.msra.mxu0 0.0
      %1869 = vmatprep.subr.mxu0 0.0
      %1870 = vmatpush1.msra.mxu0 0.0
      %1871 = vmatprep.subr.mxu0 0.0
      %1872 = vmatpush1.msra.mxu0 0.0
      %1873 = vmatprep.subr.mxu0 0.0
      %1874 = vmatpush1.msra.mxu0 0.0
      %1875 = vmatprep.subr.mxu0 0.0
      %1876 = vmatpush1.msra.mxu0 0.0
      %1877 = vmatprep.subr.mxu0 0.0
      %1878 = vmatpush1.msra.mxu0 0.0
      %1879 = vmatprep.subr.mxu0 0.0
      %1880 = vmatpush1.msra.mxu0 0.0
      %1881 = vmatprep.subr.mxu0 0.0
      %1882 = vmatpush1.msra.mxu0 0.0
      %1883 = vmatprep.subr.mxu0 0.0
      %1884 = vmatpush1.msra.mxu0 0.0
      %1885 = vmatprep.subr.mxu0 0.0
      %1886 = vmatpush1.msra.mxu0 0.0
      %1887 = vmatprep.subr.mxu0 0.0
      %1888 = vmatpush1.msra.mxu0 0.0
      %1889 = vmatprep.subr.mxu0 0.0
      %1890 = vmatpush1.msra.mxu0 0.0
      %1891 = vmatprep.subr.mxu0 0.0
      %1892 = vmatpush1.msra.mxu0 0.0
      %1893 = vmatprep.subr.mxu0 0.0
      %1894 = vmatpush1.msra.mxu0 0.0
      %1895 = vmatprep.subr.mxu0 0.0
      %1896 = vmatpush1.msra.mxu0 0.0
      %1897 = vmatprep.subr.mxu0 0.0
      %1898 = vmatpush1.msra.mxu0 0.0
      %1899 = vmatprep.subr.mxu0 0.0
      %1900 = vmatpush1.msra.mxu0 0.0
      %1901 = vmatprep.subr.mxu0 0.0
      %1902 = vmatpush1.msra.mxu0 0.0
      %1903 = vmatprep.subr.mxu0 0.0
      %1904 = vmatpush1.msra.mxu0 0.0
      %1905 = vmatprep.subr.mxu0 0.0
      %1906 = vmatpush1.msra.mxu0 0.0
      %1907 = vmatprep.subr.mxu0 0.0
      %1908 = vmatpush1.msra.mxu0 0.0
      %1909 = vmatprep.subr.mxu0 0.0
      %1910 = vmatpush1.msra.mxu0 0.0
      %1911 = vmatprep.subr.mxu0 0.0
      %1912 = vmatpush1.msra.mxu0 0.0
      %1913 = vmatprep.subr.mxu0 0.0
      %1914 = vmatpush1.msra.mxu0 0.0
      %1915 = vmatprep.subr.mxu0 0.0
      %1916 = vmatpush1.msra.mxu0 0.0
      %1917 = vmatprep.subr.mxu0 0.0
      %1918 = vmatpush1.msra.mxu0 0.0
      %1919 = vmatprep.mubr.f32.mxu0 0.0
      %1920 = vmatmul.mubr.f32.gmra.mrb[0].mxu0 %v1805
      %v1921 = vpop.f32.mrb[0].mxu0
      %v1922 = vadd.f32 0.0, %v1921
      %v1923 = vpop.f32.mrb[0].mxu0
      %1924 = vmatprep.mubr.f32.mxu0 0.0
      %1925 = vmatmul.mubr.f32.gmra.mrb[0].mxu0 %v1808
      %v1926 = vpop.f32.mrb[0].mxu0
      %v1927 = vadd.f32 0.0, %v1926
      %v1928 = vpop.f32.mrb[0].mxu0
      %1929 = vmatprep.mubr.f32.mxu0 0.0
      %1930 = vmatmul.mubr.f32.gmra.mrb[0].mxu0 %v1811
      %v1931 = vpop.f32.mrb[0].mxu0
      %v1932 = vadd.f32 0.0, %v1931
      %v1933 = vpop.f32.mrb[0].mxu0
      %1934 = vmatprep.mubr.f32.mxu0 0.0
      %1935 = vmatmul.mubr.f32.gmra.mrb[0].mxu0 %v1814
      %v1936 = vpop.f32.mrb[0].mxu0
      %v1937 = vadd.f32 0.0, %v1936
      %v1938 = vpop.f32.mrb[0].mxu0
      %1939 = vmatprep.mubr.f32.mxu0 0.0
      %1940 = vmatmul.mubr.f32.gmra.mrb[0].mxu0 %v1817
      %v1941 = vpop.f32.mrb[0].mxu0
      %v1942 = vadd.f32 0.0, %v1941
      %v1943 = vpop.f32.mrb[0].mxu0
      %1944 = vmatprep.mubr.f32.mxu0 0.0
      %1945 = vmatmul.mubr.f32.gmra.mrb[0].mxu0 %v1820
      %v1946 = vpop.f32.mrb[0].mxu0
      %v1947 = vadd.f32 0.0, %v1946
      %v1948 = vpop.f32.mrb[0].mxu0
      %1949 = vmatprep.mubr.f32.mxu0 0.0
      %1950 = vmatmul.mubr.f32.gmra.mrb[0].mxu0 %v1823
      %v1951 = vpop.f32.mrb[0].mxu0
      %v1952 = vadd.f32 0.0, %v1951
      %v1953 = vpop.f32.mrb[0].mxu0
      %1954 = vmatprep.mubr.f32.mxu0 0.0
      %1955 = vmatmul.mubr.f32.gmra.mrb[0].mxu0 %v1826
      %v1956 = vpop.f32.mrb[0].mxu0
      %v1957 = vadd.f32 0.0, %v1956
      %v1958 = vpop.f32.mrb[0].mxu0
      %1959 = vmatprep.mubr.f32.mxu0 0.0
      %1960 = vmatmul.mubr.f32.gmra.mrb[0].mxu0 %v1829
      %v1961 = vpop.f32.mrb[0].mxu0
      %v1962 = vadd.f32 0.0, %v1961
      %v1963 = vpop.f32.mrb[0].mxu0
      %1964 = vmatprep.mubr.f32.mxu0 0.0
      %1965 = vmatmul.mubr.f32.gmra.mrb[0].mxu0 %v1832
      %v1966 = vpop.f32.mrb[0].mxu0
      %v1967 = vadd.f32 0.0, %v1966
      %v1968 = vpop.f32.mrb[0].mxu0
      %1969 = vmatprep.mubr.f32.mxu0 0.0
      %1970 = vmatmul.mubr.f32.gmra.mrb[0].mxu0 %v1835
      %v1971 = vpop.f32.mrb[0].mxu0
      %v1972 = vadd.f32 0.0, %v1971
      %v1973 = vpop.f32.mrb[0].mxu0
      %1974 = vmatprep.mubr.f32.mxu0 0.0
      %1975 = vmatmul.mubr.f32.gmra.mrb[0].mxu0 %v1838
      %v1976 = vpop.f32.mrb[0].mxu0
      %v1977 = vadd.f32 0.0, %v1976
      %v1978 = vpop.f32.mrb[0].mxu0
      %1979 = vmatprep.mubr.f32.mxu0 0.0
      %1980 = vmatmul.mubr.f32.gmra.mrb[0].mxu0 %v1841
      %v1981 = vpop.f32.mrb[0].mxu0
      %v1982 = vadd.f32 0.0, %v1981
      %v1983 = vpop.f32.mrb[0].mxu0
      %1984 = vmatprep.mubr.f32.mxu0 0.0
      %1985 = vmatmul.mubr.f32.gmra.mrb[0].mxu0 %v1844
      %v1986 = vpop.f32.mrb[0].mxu0
      %v1987 = vadd.f32 0.0, %v1986
      %v1988 = vpop.f32.mrb[0].mxu0
      %1989 = vmatprep.mubr.f32.mxu0 0.0
      %1990 = vmatmul.mubr.f32.gmra.mrb[0].mxu0 %v1847
      %v1991 = vpop.f32.mrb[0].mxu0
      %v1992 = vadd.f32 0.0, %v1991
      %v1993 = vpop.f32.mrb[0].mxu0
      %1994 = vmatprep.mubr.f32.mxu0 0.0
      %1995 = vmatmul.mubr.f32.gmra.mrb[0].mxu0 %v1850
      %v1996 = vpop.f32.mrb[0].mxu0
      %v1997 = vadd.f32 0.0, %v1996
      %v1998 = vpop.f32.mrb[0].mxu0
      %1999 = vdwg.mxu0
      %v2000 = vadd.f32 %v1770, %v1922
      %v2001 = vadd.f32 %v1771, %v1927
      %v2002 = vadd.f32 %v1772, %v1932
      %v2003 = vadd.f32 %v1773, %v1937
      %v2004 = vadd.f32 %v1774, %v1942
      %v2005 = vadd.f32 %v1775, %v1947
      %v2006 = vadd.f32 %v1776, %v1952
      %v2007 = vadd.f32 %v1777, %v1957
      %v2008 = vadd.f32 %v1778, %v1962
      %v2009 = vadd.f32 %v1779, %v1967
      %v2010 = vadd.f32 %v1780, %v1972
      %v2011 = vadd.f32 %v1781, %v1977
      %v2012 = vadd.f32 %v1782, %v1982
      %v2013 = vadd.f32 %v1783, %v1987
      %v2014 = vadd.f32 %v1784, %v1992
      %v2015 = vadd.f32 %v1785, %v1997
      %v2016 = vld [vmem:[%s1555 + $0x2] sm:$0xff]
      %v2017 = vld [vmem:[%s1555 + $0xa] sm:$0xff]
      %v2018 = vld [vmem:[%s1555 + $0x1a] sm:$0xff]
      %v2019 = vld [vmem:[%s1555 + $0x22] sm:$0xff]
      %v2020 = vld [vmem:[%s1555 + $0x32] sm:$0xff]
      %v2021 = vld [vmem:[%s1555 + $0x3a] sm:$0xff]
      %v2022 = vld [vmem:[%s1555 + $0x4a] sm:$0xff]
      %v2023 = vld [vmem:[%s1555 + $0x52] sm:$0xff]
      %v2024 = vld [vmem:[%s1555 + $0x62] sm:$0xff]
      %v2025 = vld [vmem:[%s1555 + $0x6a] sm:$0xff]
      %v2026 = vld [vmem:[%s1555 + $0x7a] sm:$0xff]
      %v2027 = vld [vmem:[%s1555 + $0x82] sm:$0xff]
      %v2028 = vld [vmem:[%s1555 + $0x92] sm:$0xff]
      %v2029 = vld [vmem:[%s1555 + $0x9a] sm:$0xff]
      %v2030 = vld [vmem:[%s1555 + $0xaa] sm:$0xff]
      %v2031 = vld [vmem:[%s1555 + $0xb2] sm:$0xff]
      %s2032 = scalar_lea.vmem %s3, 10
      %v2033 = vld [vmem:[%s2032] sm:$0x3]
      %v2035 = vsel %vm834, %v2016, 0
      %v2038 = vsel %vm834, %v2017, 0
      %v2041 = vsel %vm834, %v2018, 0
      %v2044 = vsel %vm834, %v2019, 0
      %v2047 = vsel %vm834, %v2020, 0
      %v2050 = vsel %vm834, %v2021, 0
      %v2053 = vsel %vm834, %v2022, 0
      %v2056 = vsel %vm834, %v2023, 0
      %v2059 = vsel %vm834, %v2024, 0
      %v2062 = vsel %vm834, %v2025, 0
      %v2065 = vsel %vm834, %v2026, 0
      %v2068 = vsel %vm834, %v2027, 0
      %v2071 = vsel %vm834, %v2028, 0
      %v2074 = vsel %vm834, %v2029, 0
      %v2077 = vsel %vm834, %v2030, 0
      %v2080 = vsel %vm834, %v2031, 0
      %v2083 = vsel %vm930, %v2033, 0
      %2085 = vmatprep.subr.mxu0 0.0
      %2086 = vmatpush1.msra.mxu0 %v2083
      %2087 = vmatprep.subr.mxu0 0.0
      %2088 = vmatpush1.msra.mxu0 0.0
      %2089 = vmatprep.subr.mxu0 0.0
      %2090 = vmatpush1.msra.mxu0 0.0
      %2091 = vmatprep.subr.mxu0 0.0
      %2092 = vmatpush1.msra.mxu0 0.0
      %2093 = vmatprep.subr.mxu0 0.0
      %2094 = vmatpush1.msra.mxu0 0.0
      %2095 = vmatprep.subr.mxu0 0.0
      %2096 = vmatpush1.msra.mxu0 0.0
      %2097 = vmatprep.subr.mxu0 0.0
      %2098 = vmatpush1.msra.mxu0 0.0
      %2099 = vmatprep.subr.mxu0 0.0
      %2100 = vmatpush1.msra.mxu0 0.0
      %2101 = vmatprep.subr.mxu0 0.0
      %2102 = vmatpush1.msra.mxu0 0.0
      %2103 = vmatprep.subr.mxu0 0.0
      %2104 = vmatpush1.msra.mxu0 0.0
      %2105 = vmatprep.subr.mxu0 0.0
      %2106 = vmatpush1.msra.mxu0 0.0
      %2107 = vmatprep.subr.mxu0 0.0
      %2108 = vmatpush1.msra.mxu0 0.0
      %2109 = vmatprep.subr.mxu0 0.0
      %2110 = vmatpush1.msra.mxu0 0.0
      %2111 = vmatprep.subr.mxu0 0.0
      %2112 = vmatpush1.msra.mxu0 0.0
      %2113 = vmatprep.subr.mxu0 0.0
      %2114 = vmatpush1.msra.mxu0 0.0
      %2115 = vmatprep.subr.mxu0 0.0
      %2116 = vmatpush1.msra.mxu0 0.0
      %2117 = vmatprep.subr.mxu0 0.0
      %2118 = vmatpush1.msra.mxu0 0.0
      %2119 = vmatprep.subr.mxu0 0.0
      %2120 = vmatpush1.msra.mxu0 0.0
      %2121 = vmatprep.subr.mxu0 0.0
      %2122 = vmatpush1.msra.mxu0 0.0
      %2123 = vmatprep.subr.mxu0 0.0
      %2124 = vmatpush1.msra.mxu0 0.0
      %2125 = vmatprep.subr.mxu0 0.0
      %2126 = vmatpush1.msra.mxu0 0.0
      %2127 = vmatprep.subr.mxu0 0.0
      %2128 = vmatpush1.msra.mxu0 0.0
      %2129 = vmatprep.subr.mxu0 0.0
      %2130 = vmatpush1.msra.mxu0 0.0
      %2131 = vmatprep.subr.mxu0 0.0
      %2132 = vmatpush1.msra.mxu0 0.0
      %2133 = vmatprep.subr.mxu0 0.0
      %2134 = vmatpush1.msra.mxu0 0.0
      %2135 = vmatprep.subr.mxu0 0.0
      %2136 = vmatpush1.msra.mxu0 0.0
      %2137 = vmatprep.subr.mxu0 0.0
      %2138 = vmatpush1.msra.mxu0 0.0
      %2139 = vmatprep.subr.mxu0 0.0
      %2140 = vmatpush1.msra.mxu0 0.0
      %2141 = vmatprep.subr.mxu0 0.0
      %2142 = vmatpush1.msra.mxu0 0.0
      %2143 = vmatprep.subr.mxu0 0.0
      %2144 = vmatpush1.msra.mxu0 0.0
      %2145 = vmatprep.subr.mxu0 0.0
      %2146 = vmatpush1.msra.mxu0 0.0
      %2147 = vmatprep.subr.mxu0 0.0
      %2148 = vmatpush1.msra.mxu0 0.0
      %2149 = vmatprep.mubr.f32.mxu0 0.0
      %2150 = vmatmul.mubr.f32.gmra.mrb[0].mxu0 %v2035
      %v2151 = vpop.f32.mrb[0].mxu0
      %v2152 = vadd.f32 0.0, %v2151
      %v2153 = vpop.f32.mrb[0].mxu0
      %2154 = vmatprep.mubr.f32.mxu0 0.0
      %2155 = vmatmul.mubr.f32.gmra.mrb[0].mxu0 %v2038
      %v2156 = vpop.f32.mrb[0].mxu0
      %v2157 = vadd.f32 0.0, %v2156
      %v2158 = vpop.f32.mrb[0].mxu0
      %2159 = vmatprep.mubr.f32.mxu0 0.0
      %2160 = vmatmul.mubr.f32.gmra.mrb[0].mxu0 %v2041
      %v2161 = vpop.f32.mrb[0].mxu0
      %v2162 = vadd.f32 0.0, %v2161
      %v2163 = vpop.f32.mrb[0].mxu0
      %2164 = vmatprep.mubr.f32.mxu0 0.0
      %2165 = vmatmul.mubr.f32.gmra.mrb[0].mxu0 %v2044
      %v2166 = vpop.f32.mrb[0].mxu0
      %v2167 = vadd.f32 0.0, %v2166
      %v2168 = vpop.f32.mrb[0].mxu0
      %2169 = vmatprep.mubr.f32.mxu0 0.0
      %2170 = vmatmul.mubr.f32.gmra.mrb[0].mxu0 %v2047
      %v2171 = vpop.f32.mrb[0].mxu0
      %v2172 = vadd.f32 0.0, %v2171
      %v2173 = vpop.f32.mrb[0].mxu0
      %2174 = vmatprep.mubr.f32.mxu0 0.0
      %2175 = vmatmul.mubr.f32.gmra.mrb[0].mxu0 %v2050
      %v2176 = vpop.f32.mrb[0].mxu0
      %v2177 = vadd.f32 0.0, %v2176
      %v2178 = vpop.f32.mrb[0].mxu0
      %2179 = vmatprep.mubr.f32.mxu0 0.0
      %2180 = vmatmul.mubr.f32.gmra.mrb[0].mxu0 %v2053
      %v2181 = vpop.f32.mrb[0].mxu0
      %v2182 = vadd.f32 0.0, %v2181
      %v2183 = vpop.f32.mrb[0].mxu0
      %2184 = vmatprep.mubr.f32.mxu0 0.0
      %2185 = vmatmul.mubr.f32.gmra.mrb[0].mxu0 %v2056
      %v2186 = vpop.f32.mrb[0].mxu0
      %v2187 = vadd.f32 0.0, %v2186
      %v2188 = vpop.f32.mrb[0].mxu0
      %2189 = vmatprep.mubr.f32.mxu0 0.0
      %2190 = vmatmul.mubr.f32.gmra.mrb[0].mxu0 %v2059
      %v2191 = vpop.f32.mrb[0].mxu0
      %v2192 = vadd.f32 0.0, %v2191
      %v2193 = vpop.f32.mrb[0].mxu0
      %2194 = vmatprep.mubr.f32.mxu0 0.0
      %2195 = vmatmul.mubr.f32.gmra.mrb[0].mxu0 %v2062
      %v2196 = vpop.f32.mrb[0].mxu0
      %v2197 = vadd.f32 0.0, %v2196
      %v2198 = vpop.f32.mrb[0].mxu0
      %2199 = vmatprep.mubr.f32.mxu0 0.0
      %2200 = vmatmul.mubr.f32.gmra.mrb[0].mxu0 %v2065
      %v2201 = vpop.f32.mrb[0].mxu0
      %v2202 = vadd.f32 0.0, %v2201
      %v2203 = vpop.f32.mrb[0].mxu0
      %2204 = vmatprep.mubr.f32.mxu0 0.0
      %2205 = vmatmul.mubr.f32.gmra.mrb[0].mxu0 %v2068
      %v2206 = vpop.f32.mrb[0].mxu0
      %v2207 = vadd.f32 0.0, %v2206
      %v2208 = vpop.f32.mrb[0].mxu0
      %2209 = vmatprep.mubr.f32.mxu0 0.0
      %2210 = vmatmul.mubr.f32.gmra.mrb[0].mxu0 %v2071
      %v2211 = vpop.f32.mrb[0].mxu0
      %v2212 = vadd.f32 0.0, %v2211
      %v2213 = vpop.f32.mrb[0].mxu0
      %2214 = vmatprep.mubr.f32.mxu0 0.0
      %2215 = vmatmul.mubr.f32.gmra.mrb[0].mxu0 %v2074
      %v2216 = vpop.f32.mrb[0].mxu0
      %v2217 = vadd.f32 0.0, %v2216
      %v2218 = vpop.f32.mrb[0].mxu0
      %2219 = vmatprep.mubr.f32.mxu0 0.0
      %2220 = vmatmul.mubr.f32.gmra.mrb[0].mxu0 %v2077
      %v2221 = vpop.f32.mrb[0].mxu0
      %v2222 = vadd.f32 0.0, %v2221
      %v2223 = vpop.f32.mrb[0].mxu0
      %2224 = vmatprep.mubr.f32.mxu0 0.0
      %2225 = vmatmul.mubr.f32.gmra.mrb[0].mxu0 %v2080
      %v2226 = vpop.f32.mrb[0].mxu0
      %v2227 = vadd.f32 0.0, %v2226
      %v2228 = vpop.f32.mrb[0].mxu0
      %2229 = vdwg.mxu0
      %v2230 = vadd.f32 %v2000, %v2152
      %v2231 = vadd.f32 %v2001, %v2157
      %v2232 = vadd.f32 %v2002, %v2162
      %v2233 = vadd.f32 %v2003, %v2167
      %v2234 = vadd.f32 %v2004, %v2172
      %v2235 = vadd.f32 %v2005, %v2177
      %v2236 = vadd.f32 %v2006, %v2182
      %v2237 = vadd.f32 %v2007, %v2187
      %v2238 = vadd.f32 %v2008, %v2192
      %v2239 = vadd.f32 %v2009, %v2197
      %v2240 = vadd.f32 %v2010, %v2202
      %v2241 = vadd.f32 %v2011, %v2207
      %v2242 = vadd.f32 %v2012, %v2212
      %v2243 = vadd.f32 %v2013, %v2217
      %v2244 = vadd.f32 %v2014, %v2222
      %v2245 = vadd.f32 %v2015, %v2227
      %s2246 = scalar_lea.vmem [#allocation2], 48
      %v2247 = vld [vmem:[%s2246] sm:$0xff]
      %v2248 = vld [vmem:[%s2246 + $0x8] sm:$0xff]
      %v2249 = vld [vmem:[%s2246 + $0x18] sm:$0xff]
      %v2250 = vld [vmem:[%s2246 + $0x20] sm:$0xff]
      %v2251 = vld [vmem:[%s2246 + $0x30] sm:$0xff]
      %v2252 = vld [vmem:[%s2246 + $0x38] sm:$0xff]
      %v2253 = vld [vmem:[%s2246 + $0x48] sm:$0xff]
      %v2254 = vld [vmem:[%s2246 + $0x50] sm:$0xff]
      %v2255 = vld [vmem:[%s2246 + $0x60] sm:$0xff]
      %v2256 = vld [vmem:[%s2246 + $0x68] sm:$0xff]
      %v2257 = vld [vmem:[%s2246 + $0x78] sm:$0xff]
      %v2258 = vld [vmem:[%s2246 + $0x80] sm:$0xff]
      %v2259 = vld [vmem:[%s2246 + $0x90] sm:$0xff]
      %v2260 = vld [vmem:[%s2246 + $0x98] sm:$0xff]
      %v2261 = vld [vmem:[%s2246 + $0xa8] sm:$0xff]
      %v2262 = vld [vmem:[%s2246 + $0xb0] sm:$0xff]
      %s2263 = scalar_lea.vmem %s3, 12
      %v2264 = vld [vmem:[%s2263] sm:$0x3]
      %v2266 = vsel %vm834, %v2247, 0
      %v2269 = vsel %vm834, %v2248, 0
      %v2272 = vsel %vm834, %v2249, 0
      %v2275 = vsel %vm834, %v2250, 0
      %v2278 = vsel %vm834, %v2251, 0
      %v2281 = vsel %vm834, %v2252, 0
      %v2284 = vsel %vm834, %v2253, 0
      %v2287 = vsel %vm834, %v2254, 0
      %v2290 = vsel %vm834, %v2255, 0
      %v2293 = vsel %vm834, %v2256, 0
      %v2296 = vsel %vm834, %v2257, 0
      %v2299 = vsel %vm834, %v2258, 0
      %v2302 = vsel %vm834, %v2259, 0
      %v2305 = vsel %vm834, %v2260, 0
      %v2308 = vsel %vm834, %v2261, 0
      %v2311 = vsel %vm834, %v2262, 0
      %v2314 = vsel %vm930, %v2264, 0
      %2316 = vmatprep.subr.mxu0 0.0
      %2317 = vmatpush1.msra.mxu0 %v2314
      %2318 = vmatprep.subr.mxu0 0.0
      %2319 = vmatpush1.msra.mxu0 0.0
      %2320 = vmatprep.subr.mxu0 0.0
      %2321 = vmatpush1.msra.mxu0 0.0
      %2322 = vmatprep.subr.mxu0 0.0
      %2323 = vmatpush1.msra.mxu0 0.0
      %2324 = vmatprep.subr.mxu0 0.0
      %2325 = vmatpush1.msra.mxu0 0.0
      %2326 = vmatprep.subr.mxu0 0.0
      %2327 = vmatpush1.msra.mxu0 0.0
      %2328 = vmatprep.subr.mxu0 0.0
      %2329 = vmatpush1.msra.mxu0 0.0
      %2330 = vmatprep.subr.mxu0 0.0
      %2331 = vmatpush1.msra.mxu0 0.0
      %2332 = vmatprep.subr.mxu0 0.0
      %2333 = vmatpush1.msra.mxu0 0.0
      %2334 = vmatprep.subr.mxu0 0.0
      %2335 = vmatpush1.msra.mxu0 0.0
      %2336 = vmatprep.subr.mxu0 0.0
      %2337 = vmatpush1.msra.mxu0 0.0
      %2338 = vmatprep.subr.mxu0 0.0
      %2339 = vmatpush1.msra.mxu0 0.0
      %2340 = vmatprep.subr.mxu0 0.0
      %2341 = vmatpush1.msra.mxu0 0.0
      %2342 = vmatprep.subr.mxu0 0.0
      %2343 = vmatpush1.msra.mxu0 0.0
      %2344 = vmatprep.subr.mxu0 0.0
      %2345 = vmatpush1.msra.mxu0 0.0
      %2346 = vmatprep.subr.mxu0 0.0
      %2347 = vmatpush1.msra.mxu0 0.0
      %2348 = vmatprep.subr.mxu0 0.0
      %2349 = vmatpush1.msra.mxu0 0.0
      %2350 = vmatprep.subr.mxu0 0.0
      %2351 = vmatpush1.msra.mxu0 0.0
      %2352 = vmatprep.subr.mxu0 0.0
      %2353 = vmatpush1.msra.mxu0 0.0
      %2354 = vmatprep.subr.mxu0 0.0
      %2355 = vmatpush1.msra.mxu0 0.0
      %2356 = vmatprep.subr.mxu0 0.0
      %2357 = vmatpush1.msra.mxu0 0.0
      %2358 = vmatprep.subr.mxu0 0.0
      %2359 = vmatpush1.msra.mxu0 0.0
      %2360 = vmatprep.subr.mxu0 0.0
      %2361 = vmatpush1.msra.mxu0 0.0
      %2362 = vmatprep.subr.mxu0 0.0
      %2363 = vmatpush1.msra.mxu0 0.0
      %2364 = vmatprep.subr.mxu0 0.0
      %2365 = vmatpush1.msra.mxu0 0.0
      %2366 = vmatprep.subr.mxu0 0.0
      %2367 = vmatpush1.msra.mxu0 0.0
      %2368 = vmatprep.subr.mxu0 0.0
      %2369 = vmatpush1.msra.mxu0 0.0
      %2370 = vmatprep.subr.mxu0 0.0
      %2371 = vmatpush1.msra.mxu0 0.0
      %2372 = vmatprep.subr.mxu0 0.0
      %2373 = vmatpush1.msra.mxu0 0.0
      %2374 = vmatprep.subr.mxu0 0.0
      %2375 = vmatpush1.msra.mxu0 0.0
      %2376 = vmatprep.subr.mxu0 0.0
      %2377 = vmatpush1.msra.mxu0 0.0
      %2378 = vmatprep.subr.mxu0 0.0
      %2379 = vmatpush1.msra.mxu0 0.0
      %2380 = vmatprep.mubr.f32.mxu0 0.0
      %2381 = vmatmul.mubr.f32.gmra.mrb[0].mxu0 %v2266
      %v2382 = vpop.f32.mrb[0].mxu0
      %v2383 = vadd.f32 0.0, %v2382
      %v2384 = vpop.f32.mrb[0].mxu0
      %2385 = vmatprep.mubr.f32.mxu0 0.0
      %2386 = vmatmul.mubr.f32.gmra.mrb[0].mxu0 %v2269
      %v2387 = vpop.f32.mrb[0].mxu0
      %v2388 = vadd.f32 0.0, %v2387
      %v2389 = vpop.f32.mrb[0].mxu0
      %2390 = vmatprep.mubr.f32.mxu0 0.0
      %2391 = vmatmul.mubr.f32.gmra.mrb[0].mxu0 %v2272
      %v2392 = vpop.f32.mrb[0].mxu0
      %v2393 = vadd.f32 0.0, %v2392
      %v2394 = vpop.f32.mrb[0].mxu0
      %2395 = vmatprep.mubr.f32.mxu0 0.0
      %2396 = vmatmul.mubr.f32.gmra.mrb[0].mxu0 %v2275
      %v2397 = vpop.f32.mrb[0].mxu0
      %v2398 = vadd.f32 0.0, %v2397
      %v2399 = vpop.f32.mrb[0].mxu0
      %2400 = vmatprep.mubr.f32.mxu0 0.0
      %2401 = vmatmul.mubr.f32.gmra.mrb[0].mxu0 %v2278
      %v2402 = vpop.f32.mrb[0].mxu0
      %v2403 = vadd.f32 0.0, %v2402
      %v2404 = vpop.f32.mrb[0].mxu0
      %2405 = vmatprep.mubr.f32.mxu0 0.0
      %2406 = vmatmul.mubr.f32.gmra.mrb[0].mxu0 %v2281
      %v2407 = vpop.f32.mrb[0].mxu0
      %v2408 = vadd.f32 0.0, %v2407
      %v2409 = vpop.f32.mrb[0].mxu0
      %2410 = vmatprep.mubr.f32.mxu0 0.0
      %2411 = vmatmul.mubr.f32.gmra.mrb[0].mxu0 %v2284
      %v2412 = vpop.f32.mrb[0].mxu0
      %v2413 = vadd.f32 0.0, %v2412
      %v2414 = vpop.f32.mrb[0].mxu0
      %2415 = vmatprep.mubr.f32.mxu0 0.0
      %2416 = vmatmul.mubr.f32.gmra.mrb[0].mxu0 %v2287
      %v2417 = vpop.f32.mrb[0].mxu0
      %v2418 = vadd.f32 0.0, %v2417
      %v2419 = vpop.f32.mrb[0].mxu0
      %2420 = vmatprep.mubr.f32.mxu0 0.0
      %2421 = vmatmul.mubr.f32.gmra.mrb[0].mxu0 %v2290
      %v2422 = vpop.f32.mrb[0].mxu0
      %v2423 = vadd.f32 0.0, %v2422
      %v2424 = vpop.f32.mrb[0].mxu0
      %2425 = vmatprep.mubr.f32.mxu0 0.0
      %2426 = vmatmul.mubr.f32.gmra.mrb[0].mxu0 %v2293
      %v2427 = vpop.f32.mrb[0].mxu0
      %v2428 = vadd.f32 0.0, %v2427
      %v2429 = vpop.f32.mrb[0].mxu0
      %2430 = vmatprep.mubr.f32.mxu0 0.0
      %2431 = vmatmul.mubr.f32.gmra.mrb[0].mxu0 %v2296
      %v2432 = vpop.f32.mrb[0].mxu0
      %v2433 = vadd.f32 0.0, %v2432
      %v2434 = vpop.f32.mrb[0].mxu0
      %2435 = vmatprep.mubr.f32.mxu0 0.0
      %2436 = vmatmul.mubr.f32.gmra.mrb[0].mxu0 %v2299
      %v2437 = vpop.f32.mrb[0].mxu0
      %v2438 = vadd.f32 0.0, %v2437
      %v2439 = vpop.f32.mrb[0].mxu0
      %2440 = vmatprep.mubr.f32.mxu0 0.0
      %2441 = vmatmul.mubr.f32.gmra.mrb[0].mxu0 %v2302
      %v2442 = vpop.f32.mrb[0].mxu0
      %v2443 = vadd.f32 0.0, %v2442
      %v2444 = vpop.f32.mrb[0].mxu0
      %2445 = vmatprep.mubr.f32.mxu0 0.0
      %2446 = vmatmul.mubr.f32.gmra.mrb[0].mxu0 %v2305
      %v2447 = vpop.f32.mrb[0].mxu0
      %v2448 = vadd.f32 0.0, %v2447
      %v2449 = vpop.f32.mrb[0].mxu0
      %2450 = vmatprep.mubr.f32.mxu0 0.0
      %2451 = vmatmul.mubr.f32.gmra.mrb[0].mxu0 %v2308
      %v2452 = vpop.f32.mrb[0].mxu0
      %v2453 = vadd.f32 0.0, %v2452
      %v2454 = vpop.f32.mrb[0].mxu0
      %2455 = vmatprep.mubr.f32.mxu0 0.0
      %2456 = vmatmul.mubr.f32.gmra.mrb[0].mxu0 %v2311
      %v2457 = vpop.f32.mrb[0].mxu0
      %v2458 = vadd.f32 0.0, %v2457
      %v2459 = vpop.f32.mrb[0].mxu0
      %2460 = vdwg.mxu0
      %v2461 = vadd.f32 %v2230, %v2383
      %v2462 = vadd.f32 %v2231, %v2388
      %v2463 = vadd.f32 %v2232, %v2393
      %v2464 = vadd.f32 %v2233, %v2398
      %v2465 = vadd.f32 %v2234, %v2403
      %v2466 = vadd.f32 %v2235, %v2408
      %v2467 = vadd.f32 %v2236, %v2413
      %v2468 = vadd.f32 %v2237, %v2418
      %v2469 = vadd.f32 %v2238, %v2423
      %v2470 = vadd.f32 %v2239, %v2428
      %v2471 = vadd.f32 %v2240, %v2433
      %v2472 = vadd.f32 %v2241, %v2438
      %v2473 = vadd.f32 %v2242, %v2443
      %v2474 = vadd.f32 %v2243, %v2448
      %v2475 = vadd.f32 %v2244, %v2453
      %v2476 = vadd.f32 %v2245, %v2458
      %v2477 = vld [vmem:[%s2246 + $0x1] sm:$0xff]
      %v2478 = vld [vmem:[%s2246 + $0x9] sm:$0xff]
      %v2479 = vld [vmem:[%s2246 + $0x19] sm:$0xff]
      %v2480 = vld [vmem:[%s2246 + $0x21] sm:$0xff]
      %v2481 = vld [vmem:[%s2246 + $0x31] sm:$0xff]
      %v2482 = vld [vmem:[%s2246 + $0x39] sm:$0xff]
      %v2483 = vld [vmem:[%s2246 + $0x49] sm:$0xff]
      %v2484 = vld [vmem:[%s2246 + $0x51] sm:$0xff]
      %v2485 = vld [vmem:[%s2246 + $0x61] sm:$0xff]
      %v2486 = vld [vmem:[%s2246 + $0x69] sm:$0xff]
      %v2487 = vld [vmem:[%s2246 + $0x79] sm:$0xff]
      %v2488 = vld [vmem:[%s2246 + $0x81] sm:$0xff]
      %v2489 = vld [vmem:[%s2246 + $0x91] sm:$0xff]
      %v2490 = vld [vmem:[%s2246 + $0x99] sm:$0xff]
      %v2491 = vld [vmem:[%s2246 + $0xa9] sm:$0xff]
      %v2492 = vld [vmem:[%s2246 + $0xb1] sm:$0xff]
      %s2493 = scalar_lea.vmem %s3, 14
      %v2494 = vld [vmem:[%s2493] sm:$0x3]
      %v2496 = vsel %vm834, %v2477, 0
      %v2499 = vsel %vm834, %v2478, 0
      %v2502 = vsel %vm834, %v2479, 0
      %v2505 = vsel %vm834, %v2480, 0
      %v2508 = vsel %vm834, %v2481, 0
      %v2511 = vsel %vm834, %v2482, 0
      %v2514 = vsel %vm834, %v2483, 0
      %v2517 = vsel %vm834, %v2484, 0
      %v2520 = vsel %vm834, %v2485, 0
      %v2523 = vsel %vm834, %v2486, 0
      %v2526 = vsel %vm834, %v2487, 0
      %v2529 = vsel %vm834, %v2488, 0
      %v2532 = vsel %vm834, %v2489, 0
      %v2535 = vsel %vm834, %v2490, 0
      %v2538 = vsel %vm834, %v2491, 0
      %v2541 = vsel %vm834, %v2492, 0
      %v2544 = vsel %vm930, %v2494, 0
      %2546 = vmatprep.subr.mxu0 0.0
      %2547 = vmatpush1.msra.mxu0 %v2544
      %2548 = vmatprep.subr.mxu0 0.0
      %2549 = vmatpush1.msra.mxu0 0.0
      %2550 = vmatprep.subr.mxu0 0.0
      %2551 = vmatpush1.msra.mxu0 0.0
      %2552 = vmatprep.subr.mxu0 0.0
      %2553 = vmatpush1.msra.mxu0 0.0
      %2554 = vmatprep.subr.mxu0 0.0
      %2555 = vmatpush1.msra.mxu0 0.0
      %2556 = vmatprep.subr.mxu0 0.0
      %2557 = vmatpush1.msra.mxu0 0.0
      %2558 = vmatprep.subr.mxu0 0.0
      %2559 = vmatpush1.msra.mxu0 0.0
      %2560 = vmatprep.subr.mxu0 0.0
      %2561 = vmatpush1.msra.mxu0 0.0
      %2562 = vmatprep.subr.mxu0 0.0
      %2563 = vmatpush1.msra.mxu0 0.0
      %2564 = vmatprep.subr.mxu0 0.0
      %2565 = vmatpush1.msra.mxu0 0.0
      %2566 = vmatprep.subr.mxu0 0.0
      %2567 = vmatpush1.msra.mxu0 0.0
      %2568 = vmatprep.subr.mxu0 0.0
      %2569 = vmatpush1.msra.mxu0 0.0
      %2570 = vmatprep.subr.mxu0 0.0
      %2571 = vmatpush1.msra.mxu0 0.0
      %2572 = vmatprep.subr.mxu0 0.0
      %2573 = vmatpush1.msra.mxu0 0.0
      %2574 = vmatprep.subr.mxu0 0.0
      %2575 = vmatpush1.msra.mxu0 0.0
      %2576 = vmatprep.subr.mxu0 0.0
      %2577 = vmatpush1.msra.mxu0 0.0
      %2578 = vmatprep.subr.mxu0 0.0
      %2579 = vmatpush1.msra.mxu0 0.0
      %2580 = vmatprep.subr.mxu0 0.0
      %2581 = vmatpush1.msra.mxu0 0.0
      %2582 = vmatprep.subr.mxu0 0.0
      %2583 = vmatpush1.msra.mxu0 0.0
      %2584 = vmatprep.subr.mxu0 0.0
      %2585 = vmatpush1.msra.mxu0 0.0
      %2586 = vmatprep.subr.mxu0 0.0
      %2587 = vmatpush1.msra.mxu0 0.0
      %2588 = vmatprep.subr.mxu0 0.0
      %2589 = vmatpush1.msra.mxu0 0.0
      %2590 = vmatprep.subr.mxu0 0.0
      %2591 = vmatpush1.msra.mxu0 0.0
      %2592 = vmatprep.subr.mxu0 0.0
      %2593 = vmatpush1.msra.mxu0 0.0
      %2594 = vmatprep.subr.mxu0 0.0
      %2595 = vmatpush1.msra.mxu0 0.0
      %2596 = vmatprep.subr.mxu0 0.0
      %2597 = vmatpush1.msra.mxu0 0.0
      %2598 = vmatprep.subr.mxu0 0.0
      %2599 = vmatpush1.msra.mxu0 0.0
      %2600 = vmatprep.subr.mxu0 0.0
      %2601 = vmatpush1.msra.mxu0 0.0
      %2602 = vmatprep.subr.mxu0 0.0
      %2603 = vmatpush1.msra.mxu0 0.0
      %2604 = vmatprep.subr.mxu0 0.0
      %2605 = vmatpush1.msra.mxu0 0.0
      %2606 = vmatprep.subr.mxu0 0.0
      %2607 = vmatpush1.msra.mxu0 0.0
      %2608 = vmatprep.subr.mxu0 0.0
      %2609 = vmatpush1.msra.mxu0 0.0
      %2610 = vmatprep.mubr.f32.mxu0 0.0
      %2611 = vmatmul.mubr.f32.gmra.mrb[0].mxu0 %v2496
      %v2612 = vpop.f32.mrb[0].mxu0
      %v2613 = vadd.f32 0.0, %v2612
      %v2614 = vpop.f32.mrb[0].mxu0
      %2615 = vmatprep.mubr.f32.mxu0 0.0
      %2616 = vmatmul.mubr.f32.gmra.mrb[0].mxu0 %v2499
      %v2617 = vpop.f32.mrb[0].mxu0
      %v2618 = vadd.f32 0.0, %v2617
      %v2619 = vpop.f32.mrb[0].mxu0
      %2620 = vmatprep.mubr.f32.mxu0 0.0
      %2621 = vmatmul.mubr.f32.gmra.mrb[0].mxu0 %v2502
      %v2622 = vpop.f32.mrb[0].mxu0
      %v2623 = vadd.f32 0.0, %v2622
      %v2624 = vpop.f32.mrb[0].mxu0
      %2625 = vmatprep.mubr.f32.mxu0 0.0
      %2626 = vmatmul.mubr.f32.gmra.mrb[0].mxu0 %v2505
      %v2627 = vpop.f32.mrb[0].mxu0
      %v2628 = vadd.f32 0.0, %v2627
      %v2629 = vpop.f32.mrb[0].mxu0
      %2630 = vmatprep.mubr.f32.mxu0 0.0
      %2631 = vmatmul.mubr.f32.gmra.mrb[0].mxu0 %v2508
      %v2632 = vpop.f32.mrb[0].mxu0
      %v2633 = vadd.f32 0.0, %v2632
      %v2634 = vpop.f32.mrb[0].mxu0
      %2635 = vmatprep.mubr.f32.mxu0 0.0
      %2636 = vmatmul.mubr.f32.gmra.mrb[0].mxu0 %v2511
      %v2637 = vpop.f32.mrb[0].mxu0
      %v2638 = vadd.f32 0.0, %v2637
      %v2639 = vpop.f32.mrb[0].mxu0
      %2640 = vmatprep.mubr.f32.mxu0 0.0
      %2641 = vmatmul.mubr.f32.gmra.mrb[0].mxu0 %v2514
      %v2642 = vpop.f32.mrb[0].mxu0
      %v2643 = vadd.f32 0.0, %v2642
      %v2644 = vpop.f32.mrb[0].mxu0
      %2645 = vmatprep.mubr.f32.mxu0 0.0
      %2646 = vmatmul.mubr.f32.gmra.mrb[0].mxu0 %v2517
      %v2647 = vpop.f32.mrb[0].mxu0
      %v2648 = vadd.f32 0.0, %v2647
      %v2649 = vpop.f32.mrb[0].mxu0
      %2650 = vmatprep.mubr.f32.mxu0 0.0
      %2651 = vmatmul.mubr.f32.gmra.mrb[0].mxu0 %v2520
      %v2652 = vpop.f32.mrb[0].mxu0
      %v2653 = vadd.f32 0.0, %v2652
      %v2654 = vpop.f32.mrb[0].mxu0
      %2655 = vmatprep.mubr.f32.mxu0 0.0
      %2656 = vmatmul.mubr.f32.gmra.mrb[0].mxu0 %v2523
      %v2657 = vpop.f32.mrb[0].mxu0
      %v2658 = vadd.f32 0.0, %v2657
      %v2659 = vpop.f32.mrb[0].mxu0
      %2660 = vmatprep.mubr.f32.mxu0 0.0
      %2661 = vmatmul.mubr.f32.gmra.mrb[0].mxu0 %v2526
      %v2662 = vpop.f32.mrb[0].mxu0
      %v2663 = vadd.f32 0.0, %v2662
      %v2664 = vpop.f32.mrb[0].mxu0
      %2665 = vmatprep.mubr.f32.mxu0 0.0
      %2666 = vmatmul.mubr.f32.gmra.mrb[0].mxu0 %v2529
      %v2667 = vpop.f32.mrb[0].mxu0
      %v2668 = vadd.f32 0.0, %v2667
      %v2669 = vpop.f32.mrb[0].mxu0
      %2670 = vmatprep.mubr.f32.mxu0 0.0
      %2671 = vmatmul.mubr.f32.gmra.mrb[0].mxu0 %v2532
      %v2672 = vpop.f32.mrb[0].mxu0
      %v2673 = vadd.f32 0.0, %v2672
      %v2674 = vpop.f32.mrb[0].mxu0
      %2675 = vmatprep.mubr.f32.mxu0 0.0
      %2676 = vmatmul.mubr.f32.gmra.mrb[0].mxu0 %v2535
      %v2677 = vpop.f32.mrb[0].mxu0
      %v2678 = vadd.f32 0.0, %v2677
      %v2679 = vpop.f32.mrb[0].mxu0
      %2680 = vmatprep.mubr.f32.mxu0 0.0
      %2681 = vmatmul.mubr.f32.gmra.mrb[0].mxu0 %v2538
      %v2682 = vpop.f32.mrb[0].mxu0
      %v2683 = vadd.f32 0.0, %v2682
      %v2684 = vpop.f32.mrb[0].mxu0
      %2685 = vmatprep.mubr.f32.mxu0 0.0
      %2686 = vmatmul.mubr.f32.gmra.mrb[0].mxu0 %v2541
      %v2687 = vpop.f32.mrb[0].mxu0
      %v2688 = vadd.f32 0.0, %v2687
      %v2689 = vpop.f32.mrb[0].mxu0
      %2690 = vdwg.mxu0
      %v2691 = vadd.f32 %v2461, %v2613
      %v2692 = vadd.f32 %v2462, %v2618
      %v2693 = vadd.f32 %v2463, %v2623
      %v2694 = vadd.f32 %v2464, %v2628
      %v2695 = vadd.f32 %v2465, %v2633
      %v2696 = vadd.f32 %v2466, %v2638
      %v2697 = vadd.f32 %v2467, %v2643
      %v2698 = vadd.f32 %v2468, %v2648
      %v2699 = vadd.f32 %v2469, %v2653
      %v2700 = vadd.f32 %v2470, %v2658
      %v2701 = vadd.f32 %v2471, %v2663
      %v2702 = vadd.f32 %v2472, %v2668
      %v2703 = vadd.f32 %v2473, %v2673
      %v2704 = vadd.f32 %v2474, %v2678
      %v2705 = vadd.f32 %v2475, %v2683
      %v2706 = vadd.f32 %v2476, %v2688
      %v2707 = vld [vmem:[%s2246 + $0x2] sm:$0xff]
      %v2708 = vld [vmem:[%s2246 + $0xa] sm:$0xff]
      %v2709 = vld [vmem:[%s2246 + $0x1a] sm:$0xff]
      %v2710 = vld [vmem:[%s2246 + $0x22] sm:$0xff]
      %v2711 = vld [vmem:[%s2246 + $0x32] sm:$0xff]
      %v2712 = vld [vmem:[%s2246 + $0x3a] sm:$0xff]
      %v2713 = vld [vmem:[%s2246 + $0x4a] sm:$0xff]
      %v2714 = vld [vmem:[%s2246 + $0x52] sm:$0xff]
      %v2715 = vld [vmem:[%s2246 + $0x62] sm:$0xff]
      %v2716 = vld [vmem:[%s2246 + $0x6a] sm:$0xff]
      %v2717 = vld [vmem:[%s2246 + $0x7a] sm:$0xff]
      %v2718 = vld [vmem:[%s2246 + $0x82] sm:$0xff]
      %v2719 = vld [vmem:[%s2246 + $0x92] sm:$0xff]
      %v2720 = vld [vmem:[%s2246 + $0x9a] sm:$0xff]
      %v2721 = vld [vmem:[%s2246 + $0xaa] sm:$0xff]
      %v2722 = vld [vmem:[%s2246 + $0xb2] sm:$0xff]
      %s2723 = scalar_lea.vmem %s3, 16
      %v2724 = vld [vmem:[%s2723] sm:$0x3]
      %v2726 = vsel %vm834, %v2707, 0
      %v2729 = vsel %vm834, %v2708, 0
      %v2732 = vsel %vm834, %v2709, 0
      %v2735 = vsel %vm834, %v2710, 0
      %v2738 = vsel %vm834, %v2711, 0
      %v2741 = vsel %vm834, %v2712, 0
      %v2744 = vsel %vm834, %v2713, 0
      %v2747 = vsel %vm834, %v2714, 0
      %v2750 = vsel %vm834, %v2715, 0
      %v2753 = vsel %vm834, %v2716, 0
      %v2756 = vsel %vm834, %v2717, 0
      %v2759 = vsel %vm834, %v2718, 0
      %v2762 = vsel %vm834, %v2719, 0
      %v2765 = vsel %vm834, %v2720, 0
      %v2768 = vsel %vm834, %v2721, 0
      %v2771 = vsel %vm834, %v2722, 0
      %v2774 = vsel %vm930, %v2724, 0
      %2776 = vmatprep.subr.mxu0 0.0
      %2777 = vmatpush1.msra.mxu0 %v2774
      %2778 = vmatprep.subr.mxu0 0.0
      %2779 = vmatpush1.msra.mxu0 0.0
      %2780 = vmatprep.subr.mxu0 0.0
      %2781 = vmatpush1.msra.mxu0 0.0
      %2782 = vmatprep.subr.mxu0 0.0
      %2783 = vmatpush1.msra.mxu0 0.0
      %2784 = vmatprep.subr.mxu0 0.0
      %2785 = vmatpush1.msra.mxu0 0.0
      %2786 = vmatprep.subr.mxu0 0.0
      %2787 = vmatpush1.msra.mxu0 0.0
      %2788 = vmatprep.subr.mxu0 0.0
      %2789 = vmatpush1.msra.mxu0 0.0
      %2790 = vmatprep.subr.mxu0 0.0
      %2791 = vmatpush1.msra.mxu0 0.0
      %2792 = vmatprep.subr.mxu0 0.0
      %2793 = vmatpush1.msra.mxu0 0.0
      %2794 = vmatprep.subr.mxu0 0.0
      %2795 = vmatpush1.msra.mxu0 0.0
      %2796 = vmatprep.subr.mxu0 0.0
      %2797 = vmatpush1.msra.mxu0 0.0
      %2798 = vmatprep.subr.mxu0 0.0
      %2799 = vmatpush1.msra.mxu0 0.0
      %2800 = vmatprep.subr.mxu0 0.0
      %2801 = vmatpush1.msra.mxu0 0.0
      %2802 = vmatprep.subr.mxu0 0.0
      %2803 = vmatpush1.msra.mxu0 0.0
      %2804 = vmatprep.subr.mxu0 0.0
      %2805 = vmatpush1.msra.mxu0 0.0
      %2806 = vmatprep.subr.mxu0 0.0
      %2807 = vmatpush1.msra.mxu0 0.0
      %2808 = vmatprep.subr.mxu0 0.0
      %2809 = vmatpush1.msra.mxu0 0.0
      %2810 = vmatprep.subr.mxu0 0.0
      %2811 = vmatpush1.msra.mxu0 0.0
      %2812 = vmatprep.subr.mxu0 0.0
      %2813 = vmatpush1.msra.mxu0 0.0
      %2814 = vmatprep.subr.mxu0 0.0
      %2815 = vmatpush1.msra.mxu0 0.0
      %2816 = vmatprep.subr.mxu0 0.0
      %2817 = vmatpush1.msra.mxu0 0.0
      %2818 = vmatprep.subr.mxu0 0.0
      %2819 = vmatpush1.msra.mxu0 0.0
      %2820 = vmatprep.subr.mxu0 0.0
      %2821 = vmatpush1.msra.mxu0 0.0
      %2822 = vmatprep.subr.mxu0 0.0
      %2823 = vmatpush1.msra.mxu0 0.0
      %2824 = vmatprep.subr.mxu0 0.0
      %2825 = vmatpush1.msra.mxu0 0.0
      %2826 = vmatprep.subr.mxu0 0.0
      %2827 = vmatpush1.msra.mxu0 0.0
      %2828 = vmatprep.subr.mxu0 0.0
      %2829 = vmatpush1.msra.mxu0 0.0
      %2830 = vmatprep.subr.mxu0 0.0
      %2831 = vmatpush1.msra.mxu0 0.0
      %2832 = vmatprep.subr.mxu0 0.0
      %2833 = vmatpush1.msra.mxu0 0.0
      %2834 = vmatprep.subr.mxu0 0.0
      %2835 = vmatpush1.msra.mxu0 0.0
      %2836 = vmatprep.subr.mxu0 0.0
      %2837 = vmatpush1.msra.mxu0 0.0
      %2838 = vmatprep.subr.mxu0 0.0
      %2839 = vmatpush1.msra.mxu0 0.0
      %2840 = vmatprep.mubr.f32.mxu0 0.0
      %2841 = vmatmul.mubr.f32.gmra.mrb[0].mxu0 %v2726
      %v2842 = vpop.f32.mrb[0].mxu0
      %v2843 = vadd.f32 0.0, %v2842
      %v2844 = vpop.f32.mrb[0].mxu0
      %2845 = vmatprep.mubr.f32.mxu0 0.0
      %2846 = vmatmul.mubr.f32.gmra.mrb[0].mxu0 %v2729
      %v2847 = vpop.f32.mrb[0].mxu0
      %v2848 = vadd.f32 0.0, %v2847
      %v2849 = vpop.f32.mrb[0].mxu0
      %2850 = vmatprep.mubr.f32.mxu0 0.0
      %2851 = vmatmul.mubr.f32.gmra.mrb[0].mxu0 %v2732
      %v2852 = vpop.f32.mrb[0].mxu0
      %v2853 = vadd.f32 0.0, %v2852
      %v2854 = vpop.f32.mrb[0].mxu0
      %2855 = vmatprep.mubr.f32.mxu0 0.0
      %2856 = vmatmul.mubr.f32.gmra.mrb[0].mxu0 %v2735
      %v2857 = vpop.f32.mrb[0].mxu0
      %v2858 = vadd.f32 0.0, %v2857
      %v2859 = vpop.f32.mrb[0].mxu0
      %2860 = vmatprep.mubr.f32.mxu0 0.0
      %2861 = vmatmul.mubr.f32.gmra.mrb[0].mxu0 %v2738
      %v2862 = vpop.f32.mrb[0].mxu0
      %v2863 = vadd.f32 0.0, %v2862
      %v2864 = vpop.f32.mrb[0].mxu0
      %2865 = vmatprep.mubr.f32.mxu0 0.0
      %2866 = vmatmul.mubr.f32.gmra.mrb[0].mxu0 %v2741
      %v2867 = vpop.f32.mrb[0].mxu0
      %v2868 = vadd.f32 0.0, %v2867
      %v2869 = vpop.f32.mrb[0].mxu0
      %2870 = vmatprep.mubr.f32.mxu0 0.0
      %2871 = vmatmul.mubr.f32.gmra.mrb[0].mxu0 %v2744
      %v2872 = vpop.f32.mrb[0].mxu0
      %v2873 = vadd.f32 0.0, %v2872
      %v2874 = vpop.f32.mrb[0].mxu0
      %2875 = vmatprep.mubr.f32.mxu0 0.0
      %2876 = vmatmul.mubr.f32.gmra.mrb[0].mxu0 %v2747
      %v2877 = vpop.f32.mrb[0].mxu0
      %v2878 = vadd.f32 0.0, %v2877
      %v2879 = vpop.f32.mrb[0].mxu0
      %2880 = vmatprep.mubr.f32.mxu0 0.0
      %2881 = vmatmul.mubr.f32.gmra.mrb[0].mxu0 %v2750
      %v2882 = vpop.f32.mrb[0].mxu0
      %v2883 = vadd.f32 0.0, %v2882
      %v2884 = vpop.f32.mrb[0].mxu0
      %2885 = vmatprep.mubr.f32.mxu0 0.0
      %2886 = vmatmul.mubr.f32.gmra.mrb[0].mxu0 %v2753
      %v2887 = vpop.f32.mrb[0].mxu0
      %v2888 = vadd.f32 0.0, %v2887
      %v2889 = vpop.f32.mrb[0].mxu0
      %2890 = vmatprep.mubr.f32.mxu0 0.0
      %2891 = vmatmul.mubr.f32.gmra.mrb[0].mxu0 %v2756
      %v2892 = vpop.f32.mrb[0].mxu0
      %v2893 = vadd.f32 0.0, %v2892
      %v2894 = vpop.f32.mrb[0].mxu0
      %2895 = vmatprep.mubr.f32.mxu0 0.0
      %2896 = vmatmul.mubr.f32.gmra.mrb[0].mxu0 %v2759
      %v2897 = vpop.f32.mrb[0].mxu0
      %v2898 = vadd.f32 0.0, %v2897
      %v2899 = vpop.f32.mrb[0].mxu0
      %2900 = vmatprep.mubr.f32.mxu0 0.0
      %2901 = vmatmul.mubr.f32.gmra.mrb[0].mxu0 %v2762
      %v2902 = vpop.f32.mrb[0].mxu0
      %v2903 = vadd.f32 0.0, %v2902
      %v2904 = vpop.f32.mrb[0].mxu0
      %2905 = vmatprep.mubr.f32.mxu0 0.0
      %2906 = vmatmul.mubr.f32.gmra.mrb[0].mxu0 %v2765
      %v2907 = vpop.f32.mrb[0].mxu0
      %v2908 = vadd.f32 0.0, %v2907
      %v2909 = vpop.f32.mrb[0].mxu0
      %2910 = vmatprep.mubr.f32.mxu0 0.0
      %2911 = vmatmul.mubr.f32.gmra.mrb[0].mxu0 %v2768
      %v2912 = vpop.f32.mrb[0].mxu0
      %v2913 = vadd.f32 0.0, %v2912
      %v2914 = vpop.f32.mrb[0].mxu0
      %2915 = vmatprep.mubr.f32.mxu0 0.0
      %2916 = vmatmul.mubr.f32.gmra.mrb[0].mxu0 %v2771
      %v2917 = vpop.f32.mrb[0].mxu0
      %v2918 = vadd.f32 0.0, %v2917
      %v2919 = vpop.f32.mrb[0].mxu0
      %2920 = vdwg.mxu0
      %v2921 = vadd.f32 %v2691, %v2843
      %v2922 = vadd.f32 %v2692, %v2848
      %v2923 = vadd.f32 %v2693, %v2853
      %v2924 = vadd.f32 %v2694, %v2858
      %v2925 = vadd.f32 %v2695, %v2863
      %v2926 = vadd.f32 %v2696, %v2868
      %v2927 = vadd.f32 %v2697, %v2873
      %v2928 = vadd.f32 %v2698, %v2878
      %v2929 = vadd.f32 %v2699, %v2883
      %v2930 = vadd.f32 %v2700, %v2888
      %v2931 = vadd.f32 %v2701, %v2893
      %v2932 = vadd.f32 %v2702, %v2898
      %v2933 = vadd.f32 %v2703, %v2903
      %v2934 = vadd.f32 %v2704, %v2908
      %v2935 = vadd.f32 %v2705, %v2913
      %v2936 = vadd.f32 %v2706, %v2918
      %vm2937 = vcmask 130048
      %2938 = vst.msk [vmem:[%s248] sm:$0xff] %vm2937, %v2921
      %2939 = vst.msk [vmem:[%s248 + $0x8] sm:$0xff] %vm2937, %v2922
      %2940 = vst.msk [vmem:[%s248 + $0x10] sm:$0xff] %vm2937, %v2923
      %2941 = vst.msk [vmem:[%s248 + $0x18] sm:$0xff] %vm2937, %v2924
      %2942 = vst.msk [vmem:[%s248 + $0x20] sm:$0xff] %vm2937, %v2925
      %2943 = vst.msk [vmem:[%s248 + $0x28] sm:$0xff] %vm2937, %v2926
      %2944 = vst.msk [vmem:[%s248 + $0x30] sm:$0xff] %vm2937, %v2927
      %2945 = vst.msk [vmem:[%s248 + $0x38] sm:$0xff] %vm2937, %v2928
      %2946 = vst.msk [vmem:[%s248 + $0x40] sm:$0xff] %vm2937, %v2929
      %2947 = vst.msk [vmem:[%s248 + $0x48] sm:$0xff] %vm2937, %v2930
      %2948 = vst.msk [vmem:[%s248 + $0x50] sm:$0xff] %vm2937, %v2931
      %2949 = vst.msk [vmem:[%s248 + $0x58] sm:$0xff] %vm2937, %v2932
      %2950 = vst.msk [vmem:[%s248 + $0x60] sm:$0xff] %vm2937, %v2933
      %2951 = vst.msk [vmem:[%s248 + $0x68] sm:$0xff] %vm2937, %v2934
      %2952 = vst.msk [vmem:[%s248 + $0x70] sm:$0xff] %vm2937, %v2935
      %2953 = vst.msk [vmem:[%s248 + $0x78] sm:$0xff] %vm2937, %v2936
      %s2954 = smul.u32 8, %s21
      %p2955 = scmp.lt.s32.totalorder %s20, 1
      %s2956 = scalar_select %p2955, %s20, 1
      %p2957 = scmp.lt.s32.totalorder %s2954, 15
      %s2958 = scalar_select %p2957, %s2954, 15
      %s2959 = smul.addr %s2958, 2
      %s2960 = smul.addr %s2956, 32
      %s2961 = sadd.s32 %s2959, %s2960
      %s2962 = smul.addr %s2961, 8
      %s2963 = scalar_lea.vmem %s5, %s2962
      // Predicated region
      $region41: #{one_three_conv_forward.1} parent=39 // pred_check
        %p2964 = pneg %p158
      $region42: #{one_three_conv_forward.1} parent=39 // pred_check_branch
        %2966 = sbr.rel (%p2964) target = $region44
      $region43: #{one_three_conv_forward.1} parent=39 // pred_region
        %s2967 = smul.u32 8, %s21
      $region44: #{one_three_conv_forward.1} parent=39 // pred_fallthru
        _
    $region40: #{one_three_conv_forward.1} parent=5 // pred_fallthru
      _
    %p2968 = scmp.le.s32.totalorder 2, %s11
    // Predicated region
    $region45: #{one_three_conv_forward.1} parent=5 // pred_check
      %p2969 = pneg %p2968
    $region46: #{one_three_conv_forward.1} parent=5 // pred_check_branch
      %2971 = sbr.rel (%p2969) target = $region48
    $region47: #{one_three_conv_forward.1} parent=5 // pred_region
      %s2972 = ssub.s32 %s11, 2
      // Predicated region
      $region49: #{one_three_conv_forward.1} parent=47 // pred_check
        %p2973 = pneg %p164
      $region50: #{one_three_conv_forward.1} parent=47 // pred_check_branch
        %2975 = sbr.rel (%p2973) target = $region52
      $region51: #{one_three_conv_forward.1} parent=47 // pred_region
        %s2976 = smul.u32 8, %s23
        %p2977 = scmp.lt.s32.totalorder %s22, 1
        %s2978 = scalar_select %p2977, %s22, 1
        %p2979 = scmp.lt.s32.totalorder %s2976, 15
        %s2980 = scalar_select %p2979, %s2976, 15
        %s2981 = smul.addr %s2980, 2
        %s2982 = smul.addr %s2978, 32
        %s2983 = sadd.s32 %s2981, %s2982
        %s2984 = smul.addr %s2983, 8
        %s2985 = scalar_lea.vmem %s5, %s2984
      $region52: #{one_three_conv_forward.1} parent=47 // pred_fallthru
        _
    $region48: #{one_three_conv_forward.1} parent=5 // pred_fallthru
      _
  $region6: #{one_three_conv_forward.1} parent=0 // loop_footer
    %s15 = sadd.s32 1, %s11
  $region7: #{one_three_conv_forward.1} parent=0 // loop_footer_branch
    %10 = sbr.rel target = $region3
  $region8: #{one_three_conv_forward.1} parent=0 // loop_exit
    _

</llo_original>
